<compile_context>
chip_gen: v7x
topology: tpu7x:2x2x1
jax: 0.10.0
libtpu: 0.0.40
codegen_flags: <defaults>
</compile_context>

<pallas_src>
import functools
import math

import jax
import jax.numpy as jnp
from jax.experimental import pallas as pl
from jax.experimental.pallas import tpu as pltpu

NHEAD = 8
LN_EPS = 1e-5


def _layernorm(x, gamma, beta):
    mean = jnp.mean(x, axis=-1, keepdims=True)
    var = jnp.mean((x - mean) ** 2, axis=-1, keepdims=True)
    return (x - mean) * jax.lax.rsqrt(var + LN_EPS) * gamma + beta


def _softmax_last(s):
    m = jnp.max(s, axis=-1, keepdims=True)
    e = jnp.exp(s - m)
    return e * pl.reciprocal(jnp.sum(e, axis=-1, keepdims=True), approx=True)


def cvae_kernel(
    # per-batch inputs
    x_ref, cond_ref, eps_ref,
    # constant head-column mask (NHEAD, 1, H), 0/1 f32
    hm_ref,
    # input_projection
    win_ref, bin_ref,
    # encoder layer: fused QKV + out-proj
    wqkv_ref, bqkv_ref, wo_ref, bo_ref,
    # norm1
    g1_ref, be1_ref,
    # feed-forward
    w1_ref, bf1_ref, w2_ref, bf2_ref,
    # norm2
    g2_ref, be2_ref,
    # fused mu/logvar head, latent2hidden, split output projection
    wmulv_ref, bmulv_ref, wl2h_ref, bl2h_ref,
    wouth_ref, woutc_ref, bout_ref,
    # outputs
    dec_ref, mulv_ref,
):
    _, S, Din = x_ref.shape
    H = win_ref.shape[1]
    L = wl2h_ref.shape[0]
    V = wouth_ref.shape[1]

    x = x_ref[...].reshape(S, Din)
    cond = cond_ref[...].reshape(S, Din)
    eps = eps_ref[...].reshape(S, L)

    def mm(a, w_ref, b_ref=None):
        # bf16 x bf16 MXU matmul with f32 accumulation; f32 epilogue.
        out = jnp.dot(a.astype(jnp.bfloat16), w_ref[...],
                      preferred_element_type=jnp.float32)
        if b_ref is not None:
            out = out + b_ref[...]
        return out

    # ---- input_projection ----
    h = mm(x, win_ref, bin_ref)                                   # (S, H) f32

    # ---- fused QKV projection (1/sqrt(head_dim) folded into q cols/bias) ----
    qkv = mm(h, wqkv_ref, bqkv_ref)                               # (S, 3H)
    q = qkv[:, :H]
    k = qkv[:, H:2 * H]
    v = qkv[:, 2 * H:]

    # ---- multi-head self-attention: heads stacked along rows ----
    hm = hm_ref[...]                                              # (NHEAD,1,H)
    q_stack = (q[None, :, :] * hm).reshape(NHEAD * S, H)          # (N*S, H)
    scores = jnp.dot(q_stack, k.T, preferred_element_type=jnp.float32)
    p = _softmax_last(scores)                                     # (N*S, S)
    ctx = jnp.dot(p, v, preferred_element_type=jnp.float32)       # (N*S, H)
    attn = jnp.sum(ctx.reshape(NHEAD, S, H) * hm, axis=0)         # (S, H)
    attn = mm(attn, wo_ref, bo_ref)

    # ---- post-norm encoder layer ----
    x1 = _layernorm(h + attn, g1_ref[...], be1_ref[...])

    ff = mm(x1, w1_ref, bf1_ref)
    ff = jnp.maximum(ff, 0.0)        # f32 ReLU (v5e VPU has no bf16 path)
    ff = mm(ff, w2_ref, bf2_ref)

    x2 = _layernorm(x1 + ff, g2_ref[...], be2_ref[...])

    # ---- fused mu / logvar head + reparameterize ----
    mulv = mm(x2, wmulv_ref, bmulv_ref)                           # (S, 2L)
    mu = mulv[:, :L]
    logv = mulv[:, L:]
    z = mu + eps * jnp.exp(0.5 * logv)
    hid = mm(z, wl2h_ref, bl2h_ref)

    # ---- decode: concat replaced by split output projection ----
    dec = mm(hid, wouth_ref) + mm(cond, woutc_ref) + bout_ref[...]

    dec_ref[...] = dec.reshape(1, S, V)
    mulv_ref[...] = mulv.reshape(1, S, 2 * L)   # lane-dense fused mu|logvar


def init_params(key, input_dim, hidden_dim, latent_dim, vocab_size, ff_dim):
    """Deterministic synthetic parameters.  Weights stored transposed to
    (in_features, out_features) and in bf16; biases / layernorm params f32.
    QKV and mu/logvar heads fused; output projection split into its hidden
    and condition halves; per-head column mask precomputed."""
    ks = iter(jax.random.split(key, 32))

    def w(shape, s=0.05):
        return jax.random.normal(next(ks), shape, jnp.float32) * s

    def b(n):
        return jnp.zeros((1, n), jnp.float32)

    head_dim = hidden_dim // NHEAD
    scale = 1.0 / math.sqrt(head_dim)

    wq = w((hidden_dim, hidden_dim)) * scale      # query scale folded in
    wk = w((hidden_dim, hidden_dim))
    wv = w((hidden_dim, hidden_dim))
    bq = b(hidden_dim) * scale
    bk = b(hidden_dim)
    bv = b(hidden_dim)

    wmu = w((hidden_dim, latent_dim))
    wlv = w((hidden_dim, latent_dim))
    wout = w((hidden_dim + input_dim, vocab_size))

    bf16 = jnp.bfloat16
    # per-head column mask: hm[n, 0, c] = 1.0 iff column c belongs to head n
    hm = (jnp.arange(hidden_dim, dtype=jnp.int32)[None, :] // head_dim
          == jnp.arange(NHEAD, dtype=jnp.int32)[:, None])
    hm = hm.astype(jnp.float32).reshape(NHEAD, 1, hidden_dim)

    p = {
        "hm": hm,
        "win": w((input_dim, hidden_dim)).astype(bf16), "bin": b(hidden_dim),
        "wqkv": jnp.concatenate([wq, wk, wv], axis=1).astype(bf16),
        "bqkv": jnp.concatenate([bq, bk, bv], axis=1),
        "wo": w((hidden_dim, hidden_dim)).astype(bf16), "bo": b(hidden_dim),
        "g1": jnp.ones((1, hidden_dim), jnp.float32), "be1": b(hidden_dim),
        "w1": w((hidden_dim, ff_dim)).astype(bf16), "bf1": b(ff_dim),
        "w2": w((ff_dim, hidden_dim)).astype(bf16), "bf2": b(hidden_dim),
        "g2": jnp.ones((1, hidden_dim), jnp.float32), "be2": b(hidden_dim),
        "wmulv": jnp.concatenate([wmu, wlv], axis=1).astype(bf16),
        "bmulv": jnp.concatenate([b(latent_dim), b(latent_dim)], axis=1),
        "wl2h": w((latent_dim, hidden_dim)).astype(bf16), "bl2h": b(hidden_dim),
        "wouth": wout[:hidden_dim].astype(bf16),
        "woutc": wout[hidden_dim:].astype(bf16),
        "bout": b(vocab_size),
    }
    return p


_PARAM_ORDER = [
    "hm",
    "win", "bin",
    "wqkv", "bqkv", "wo", "bo",
    "g1", "be1", "w1", "bf1", "w2", "bf2", "g2", "be2",
    "wmulv", "bmulv", "wl2h", "bl2h",
    "wouth", "woutc", "bout",
]


@functools.partial(jax.jit)
def cvae_forward(params, input_embeddings, condition_embeddings, eps):
    B, S, input_dim = input_embeddings.shape
    hidden_dim = params["win"].shape[1]
    ff_dim = params["w1"].shape[1]
    latent_dim = params["wl2h"].shape[0]
    vocab_size = params["wouth"].shape[1]

    flat_params = [params[name] for name in _PARAM_ORDER]

    in_specs = [
        pl.BlockSpec((1, S, input_dim), lambda b: (b, 0, 0)),    # x
        pl.BlockSpec((1, S, input_dim), lambda b: (b, 0, 0)),    # cond
        pl.BlockSpec((1, S, latent_dim), lambda b: (b, 0, 0)),   # eps
        pl.BlockSpec((NHEAD, 1, hidden_dim), lambda b: (0, 0, 0)),  # head mask
    ] + [
        pl.BlockSpec(p.shape, lambda b: (0, 0)) for p in flat_params[1:]
    ]
    out_specs = (
        pl.BlockSpec((1, S, vocab_size), lambda b: (b, 0, 0)),
        pl.BlockSpec((1, S, 2 * latent_dim), lambda b: (b, 0, 0)),
    )

    # advisory cost estimate (dominated by the FFN + decoder projections)
    R = B * S
    flops = 2 * R * (
        input_dim * hidden_dim
        + 3 * hidden_dim * hidden_dim
        + hidden_dim * hidden_dim
        + 2 * hidden_dim * ff_dim
        + 2 * hidden_dim * latent_dim
        + latent_dim * hidden_dim
        + hidden_dim * vocab_size
        + input_dim * vocab_size
    ) + 4 * B * NHEAD * S * S * hidden_dim
    transcendentals = B * NHEAD * S * S + R * latent_dim + 4 * R
    bytes_accessed = (
        sum(int(a.size) * a.dtype.itemsize
            for a in (input_embeddings, condition_embeddings, eps))
        + sum(int(p.size) * p.dtype.itemsize for p in flat_params)
        + R * vocab_size * 4 + R * 2 * latent_dim * 4
    )

    dec, mulv = pl.pallas_call(
        cvae_kernel,
        grid=(B,),
        out_shape=(
            jax.ShapeDtypeStruct((B, S, vocab_size), jnp.float32),
            jax.ShapeDtypeStruct((B, S, 2 * latent_dim), jnp.float32),
        ),
        in_specs=in_specs,
        out_specs=out_specs,
        compiler_params=pltpu.CompilerParams(
            dimension_semantics=("parallel",),
            vmem_limit_bytes=32 * 1024 * 1024,
        ),
        cost_estimate=pl.CostEstimate(
            flops=int(flops),
            transcendentals=int(transcendentals),
            bytes_accessed=int(bytes_accessed),
        ),
    )(input_embeddings, condition_embeddings, eps, *flat_params)

    mu = mulv[..., :latent_dim]
    logvar = mulv[..., latent_dim:]
    return dec, mu, logvar


if __name__ == "__main__":
    # Small shapes consistent with the module: hidden_dim divisible by nhead=8.
    B, S = 2, 8
    input_dim, hidden_dim, latent_dim, vocab_size = 16, 32, 16, 128
    ff_dim = 2048  # PyTorch TransformerEncoderLayer default dim_feedforward

    key = jax.random.PRNGKey(0)
    k_param, k_x, k_c, k_eps = jax.random.split(key, 4)

    params = init_params(k_param, input_dim, hidden_dim, latent_dim,
                         vocab_size, ff_dim)

    input_embeddings = jax.random.normal(k_x, (B, S, input_dim), jnp.float32)
    condition_embeddings = jax.random.normal(k_c, (B, S, input_dim),
                                             jnp.float32)
    # torch.randn_like(std) equivalent, generated host-side, consumed in-kernel.
    eps = jax.random.normal(k_eps, (B, S, latent_dim), jnp.float32)

    decoder_output, mu, logvar = cvae_forward(
        params, input_embeddings, condition_embeddings, eps)
    jax.block_until_ready((decoder_output, mu, logvar))

    assert decoder_output.shape == (B, S, vocab_size)
    assert mu.shape == (B, S, latent_dim)
    assert logvar.shape == (B, S, latent_dim)
    print("KERNEL_OK")
</pallas_src>

<mosaic_0001>
module attributes {stable_mosaic.version = 11 : i64} {
  func.func @cvae_kernel(%arg0: i32, %arg1: memref<1x8x16xf32, #tpu.memory_space<vmem>>, %arg2: memref<1x8x16xf32, #tpu.memory_space<vmem>>, %arg3: memref<1x8x16xf32, #tpu.memory_space<vmem>>, %arg4: memref<8x1x32xf32, #tpu.memory_space<vmem>>, %arg5: memref<16x32xbf16, #tpu.memory_space<vmem>>, %arg6: memref<1x32xf32, #tpu.memory_space<vmem>>, %arg7: memref<32x96xbf16, #tpu.memory_space<vmem>>, %arg8: memref<1x96xf32, #tpu.memory_space<vmem>>, %arg9: memref<32x32xbf16, #tpu.memory_space<vmem>>, %arg10: memref<1x32xf32, #tpu.memory_space<vmem>>, %arg11: memref<1x32xf32, #tpu.memory_space<vmem>>, %arg12: memref<1x32xf32, #tpu.memory_space<vmem>>, %arg13: memref<32x2048xbf16, #tpu.memory_space<vmem>>, %arg14: memref<1x2048xf32, #tpu.memory_space<vmem>>, %arg15: memref<2048x32xbf16, #tpu.memory_space<vmem>>, %arg16: memref<1x32xf32, #tpu.memory_space<vmem>>, %arg17: memref<1x32xf32, #tpu.memory_space<vmem>>, %arg18: memref<1x32xf32, #tpu.memory_space<vmem>>, %arg19: memref<32x32xbf16, #tpu.memory_space<vmem>>, %arg20: memref<1x32xf32, #tpu.memory_space<vmem>>, %arg21: memref<16x32xbf16, #tpu.memory_space<vmem>>, %arg22: memref<1x32xf32, #tpu.memory_space<vmem>>, %arg23: memref<32x128xbf16, #tpu.memory_space<vmem>>, %arg24: memref<16x128xbf16, #tpu.memory_space<vmem>>, %arg25: memref<1x128xf32, #tpu.memory_space<vmem>>, %arg26: memref<1x8x128xf32, #tpu.memory_space<vmem>>, %arg27: memref<1x8x32xf32, #tpu.memory_space<vmem>>) attributes {dimension_semantics = [#tpu.dimension_semantics<parallel>], iteration_bounds = array<i64: 2>, scalar_prefetch = 0 : i64, scratch_operands = 0 : i64, tpu.core_type = #tpu.core_type<tc>, window_params = [{transform_indices = @transform_0, window_bounds = array<i64: 1, 8, 16>}, {transform_indices = @transform_1, window_bounds = array<i64: 1, 8, 16>}, {transform_indices = @transform_2, window_bounds = array<i64: 1, 8, 16>}, {pipeline_mode = #tpu.pipeline_mode<synchronous>, transform_indices = @transform_3, window_bounds = array<i64: 8, 1, 32>}, {pipeline_mode = #tpu.pipeline_mode<synchronous>, transform_indices = @transform_4, window_bounds = array<i64: 16, 32>}, {pipeline_mode = #tpu.pipeline_mode<synchronous>, transform_indices = @transform_5, window_bounds = array<i64: 1, 32>}, {pipeline_mode = #tpu.pipeline_mode<synchronous>, transform_indices = @transform_6, window_bounds = array<i64: 32, 96>}, {pipeline_mode = #tpu.pipeline_mode<synchronous>, transform_indices = @transform_7, window_bounds = array<i64: 1, 96>}, {pipeline_mode = #tpu.pipeline_mode<synchronous>, transform_indices = @transform_8, window_bounds = array<i64: 32, 32>}, {pipeline_mode = #tpu.pipeline_mode<synchronous>, transform_indices = @transform_9, window_bounds = array<i64: 1, 32>}, {pipeline_mode = #tpu.pipeline_mode<synchronous>, transform_indices = @transform_10, window_bounds = array<i64: 1, 32>}, {pipeline_mode = #tpu.pipeline_mode<synchronous>, transform_indices = @transform_11, window_bounds = array<i64: 1, 32>}, {pipeline_mode = #tpu.pipeline_mode<synchronous>, transform_indices = @transform_12, window_bounds = array<i64: 32, 2048>}, {pipeline_mode = #tpu.pipeline_mode<synchronous>, transform_indices = @transform_13, window_bounds = array<i64: 1, 2048>}, {pipeline_mode = #tpu.pipeline_mode<synchronous>, transform_indices = @transform_14, window_bounds = array<i64: 2048, 32>}, {pipeline_mode = #tpu.pipeline_mode<synchronous>, transform_indices = @transform_15, window_bounds = array<i64: 1, 32>}, {pipeline_mode = #tpu.pipeline_mode<synchronous>, transform_indices = @transform_16, window_bounds = array<i64: 1, 32>}, {pipeline_mode = #tpu.pipeline_mode<synchronous>, transform_indices = @transform_17, window_bounds = array<i64: 1, 32>}, {pipeline_mode = #tpu.pipeline_mode<synchronous>, transform_indices = @transform_18, window_bounds = array<i64: 32, 32>}, {pipeline_mode = #tpu.pipeline_mode<synchronous>, transform_indices = @transform_19, window_bounds = array<i64: 1, 32>}, {pipeline_mode = #tpu.pipeline_mode<synchronous>, transform_indices = @transform_20, window_bounds = array<i64: 16, 32>}, {pipeline_mode = #tpu.pipeline_mode<synchronous>, transform_indices = @transform_21, window_bounds = array<i64: 1, 32>}, {pipeline_mode = #tpu.pipeline_mode<synchronous>, transform_indices = @transform_22, window_bounds = array<i64: 32, 128>}, {pipeline_mode = #tpu.pipeline_mode<synchronous>, transform_indices = @transform_23, window_bounds = array<i64: 16, 128>}, {pipeline_mode = #tpu.pipeline_mode<synchronous>, transform_indices = @transform_24, window_bounds = array<i64: 1, 128>}, {transform_indices = @transform_25, window_bounds = array<i64: 1, 8, 128>}, {transform_indices = @transform_26, window_bounds = array<i64: 1, 8, 32>}]} {
    %c0 = arith.constant 0 : index
    %c0_0 = arith.constant 0 : index
    %c0_1 = arith.constant 0 : index
    %0 = vector.load %arg1[%c0, %c0_0, %c0_1] : memref<1x8x16xf32, #tpu.memory_space<vmem>>, vector<1x8x16xf32>
    %1 = vector.shape_cast %0 : vector<1x8x16xf32> to vector<8x16xf32>
    %c0_2 = arith.constant 0 : index
    %c0_3 = arith.constant 0 : index
    %c0_4 = arith.constant 0 : index
    %2 = vector.load %arg2[%c0_2, %c0_3, %c0_4] : memref<1x8x16xf32, #tpu.memory_space<vmem>>, vector<1x8x16xf32>
    %3 = vector.shape_cast %2 : vector<1x8x16xf32> to vector<8x16xf32>
    %c0_5 = arith.constant 0 : index
    %c0_6 = arith.constant 0 : index
    %c0_7 = arith.constant 0 : index
    %4 = vector.load %arg3[%c0_5, %c0_6, %c0_7] : memref<1x8x16xf32, #tpu.memory_space<vmem>>, vector<1x8x16xf32>
    %5 = vector.shape_cast %4 : vector<1x8x16xf32> to vector<8x16xf32>
    %6 = arith.truncf %1 : vector<8x16xf32> to vector<8x16xbf16>
    %c0_8 = arith.constant 0 : index
    %c0_9 = arith.constant 0 : index
    %7 = vector.load %arg5[%c0_8, %c0_9] : memref<16x32xbf16, #tpu.memory_space<vmem>>, vector<16x32xbf16>
    %cst = arith.constant dense<0.000000e+00> : vector<8x32xf32>
    %8 = tpu.matmul %6, %7, %cst {dimension_numbers = #tpu.dot_dimension_numbers<[1], [0], [0], [1], [0, 0, 1, 1], [], []>} : vector<8x16xbf16>, vector<16x32xbf16>, vector<8x32xf32> -> vector<8x32xf32>
    %c0_10 = arith.constant 0 : index
    %c0_11 = arith.constant 0 : index
    %9 = vector.load %arg6[%c0_10, %c0_11] : memref<1x32xf32, #tpu.memory_space<vmem>>, vector<1x32xf32>
    %10 = vector.broadcast %9 : vector<1x32xf32> to vector<8x32xf32>
    %11 = arith.addf %8, %10 : vector<8x32xf32>
    %12 = arith.truncf %11 : vector<8x32xf32> to vector<8x32xbf16>
    %c0_12 = arith.constant 0 : index
    %c0_13 = arith.constant 0 : index
    %13 = vector.load %arg7[%c0_12, %c0_13] : memref<32x96xbf16, #tpu.memory_space<vmem>>, vector<32x96xbf16>
    %cst_14 = arith.constant dense<0.000000e+00> : vector<8x96xf32>
    %14 = tpu.matmul %12, %13, %cst_14 {dimension_numbers = #tpu.dot_dimension_numbers<[1], [0], [0], [1], [0, 0, 1, 1], [], []>} : vector<8x32xbf16>, vector<32x96xbf16>, vector<8x96xf32> -> vector<8x96xf32>
    %c0_15 = arith.constant 0 : index
    %c0_16 = arith.constant 0 : index
    %15 = vector.load %arg8[%c0_15, %c0_16] : memref<1x96xf32, #tpu.memory_space<vmem>>, vector<1x96xf32>
    %16 = vector.broadcast %15 : vector<1x96xf32> to vector<8x96xf32>
    %17 = arith.addf %14, %16 : vector<8x96xf32>
    %18 = vector.extract_strided_slice %17 {offsets = [0, 0], sizes = [8, 32], strides = [1, 1]} : vector<8x96xf32> to vector<8x32xf32>
    %19 = vector.extract_strided_slice %17 {offsets = [0, 32], sizes = [8, 32], strides = [1, 1]} : vector<8x96xf32> to vector<8x32xf32>
    %20 = vector.extract_strided_slice %17 {offsets = [0, 64], sizes = [8, 32], strides = [1, 1]} : vector<8x96xf32> to vector<8x32xf32>
    %c0_17 = arith.constant 0 : index
    %c0_18 = arith.constant 0 : index
    %c0_19 = arith.constant 0 : index
    %21 = vector.load %arg4[%c0_17, %c0_18, %c0_19] : memref<8x1x32xf32, #tpu.memory_space<vmem>>, vector<8x1x32xf32>
    %22 = vector.shape_cast %18 : vector<8x32xf32> to vector<1x8x32xf32>
    %23 = vector.broadcast %22 : vector<1x8x32xf32> to vector<8x8x32xf32>
    %24 = vector.broadcast %21 : vector<8x1x32xf32> to vector<8x8x32xf32>
    %25 = arith.mulf %23, %24 : vector<8x8x32xf32>
    %26 = vector.shape_cast %25 : vector<8x8x32xf32> to vector<64x32xf32>
    %27 = tpu.transpose %19, [1, 0] : vector<8x32xf32> -> vector<32x8xf32>
    %cst_20 = arith.constant dense<0.000000e+00> : vector<64x8xf32>
    %28 = tpu.matmul %26, %27, %cst_20 {dimension_numbers = #tpu.dot_dimension_numbers<[1], [0], [0], [1], [0, 0, 1, 1], [], []>} : vector<64x32xf32>, vector<32x8xf32>, vector<64x8xf32> -> vector<64x8xf32>
    %cst_21 = arith.constant dense<0xFF800000> : vector<64xf32>
    %29 = vector.multi_reduction <maximumf>, %28, %cst_21 [1] : vector<64x8xf32> to vector<64xf32>
    %30 = vector.shape_cast %29 : vector<64xf32> to vector<64x1xf32>
    %31 = vector.broadcast %30 : vector<64x1xf32> to vector<64x8xf32>
    %32 = arith.subf %28, %31 : vector<64x8xf32>
    %33 = math.exp %32 : vector<64x8xf32>
    %cst_22 = arith.constant dense<0.000000e+00> : vector<64xf32>
    %34 = vector.multi_reduction <add>, %33, %cst_22 [1] : vector<64x8xf32> to vector<64xf32>
    %35 = vector.shape_cast %34 : vector<64xf32> to vector<64x1xf32>
    %36 = tpu.reciprocal %35 {approx = true} : vector<64x1xf32> -> vector<64x1xf32>
    %37 = vector.broadcast %36 : vector<64x1xf32> to vector<64x8xf32>
    %38 = arith.mulf %33, %37 : vector<64x8xf32>
    %cst_23 = arith.constant dense<0.000000e+00> : vector<64x32xf32>
    %39 = tpu.matmul %38, %20, %cst_23 {dimension_numbers = #tpu.dot_dimension_numbers<[1], [0], [0], [1], [0, 0, 1, 1], [], []>} : vector<64x8xf32>, vector<8x32xf32>, vector<64x32xf32> -> vector<64x32xf32>
    %40 = vector.shape_cast %39 : vector<64x32xf32> to vector<8x8x32xf32>
    %41 = vector.broadcast %21 : vector<8x1x32xf32> to vector<8x8x32xf32>
    %42 = arith.mulf %40, %41 : vector<8x8x32xf32>
    %cst_24 = arith.constant dense<0.000000e+00> : vector<8x32xf32>
    %43 = vector.multi_reduction <add>, %42, %cst_24 [0] : vector<8x8x32xf32> to vector<8x32xf32>
    %44 = arith.truncf %43 : vector<8x32xf32> to vector<8x32xbf16>
    %c0_25 = arith.constant 0 : index
    %c0_26 = arith.constant 0 : index
    %45 = vector.load %arg9[%c0_25, %c0_26] : memref<32x32xbf16, #tpu.memory_space<vmem>>, vector<32x32xbf16>
    %cst_27 = arith.constant dense<0.000000e+00> : vector<8x32xf32>
    %46 = tpu.matmul %44, %45, %cst_27 {dimension_numbers = #tpu.dot_dimension_numbers<[1], [0], [0], [1], [0, 0, 1, 1], [], []>} : vector<8x32xbf16>, vector<32x32xbf16>, vector<8x32xf32> -> vector<8x32xf32>
    %c0_28 = arith.constant 0 : index
    %c0_29 = arith.constant 0 : index
    %47 = vector.load %arg10[%c0_28, %c0_29] : memref<1x32xf32, #tpu.memory_space<vmem>>, vector<1x32xf32>
    %48 = vector.broadcast %47 : vector<1x32xf32> to vector<8x32xf32>
    %49 = arith.addf %46, %48 : vector<8x32xf32>
    %50 = arith.addf %11, %49 : vector<8x32xf32>
    %c0_30 = arith.constant 0 : index
    %c0_31 = arith.constant 0 : index
    %51 = vector.load %arg11[%c0_30, %c0_31] : memref<1x32xf32, #tpu.memory_space<vmem>>, vector<1x32xf32>
    %c0_32 = arith.constant 0 : index
    %c0_33 = arith.constant 0 : index
    %52 = vector.load %arg12[%c0_32, %c0_33] : memref<1x32xf32, #tpu.memory_space<vmem>>, vector<1x32xf32>
    %cst_34 = arith.constant dense<0.000000e+00> : vector<8xf32>
    %53 = vector.multi_reduction <add>, %50, %cst_34 [1] : vector<8x32xf32> to vector<8xf32>
    %54 = vector.shape_cast %53 : vector<8xf32> to vector<8x1xf32>
    %cst_35 = arith.constant 3.200000e+01 : f32
    %55 = vector.broadcast %cst_35 : f32 to vector<8x1xf32>
    %56 = arith.divf %54, %55 : vector<8x1xf32>
    %57 = vector.broadcast %56 : vector<8x1xf32> to vector<8x32xf32>
    %58 = arith.subf %50, %57 : vector<8x32xf32>
    %59 = arith.mulf %58, %58 : vector<8x32xf32>
    %cst_36 = arith.constant dense<0.000000e+00> : vector<8xf32>
    %60 = vector.multi_reduction <add>, %59, %cst_36 [1] : vector<8x32xf32> to vector<8xf32>
    %61 = vector.shape_cast %60 : vector<8xf32> to vector<8x1xf32>
    %cst_37 = arith.constant 3.200000e+01 : f32
    %62 = vector.broadcast %cst_37 : f32 to vector<8x1xf32>
    %63 = arith.divf %61, %62 : vector<8x1xf32>
    %64 = vector.broadcast %56 : vector<8x1xf32> to vector<8x32xf32>
    %65 = arith.subf %50, %64 : vector<8x32xf32>
    %cst_38 = arith.constant 9.99999974E-6 : f32
    %66 = vector.broadcast %cst_38 : f32 to vector<8x1xf32>
    %67 = arith.addf %63, %66 : vector<8x1xf32>
    %68 = math.rsqrt %67 : vector<8x1xf32>
    %69 = vector.broadcast %68 : vector<8x1xf32> to vector<8x32xf32>
    %70 = arith.mulf %65, %69 : vector<8x32xf32>
    %71 = vector.broadcast %51 : vector<1x32xf32> to vector<8x32xf32>
    %72 = arith.mulf %70, %71 : vector<8x32xf32>
    %73 = vector.broadcast %52 : vector<1x32xf32> to vector<8x32xf32>
    %74 = arith.addf %72, %73 : vector<8x32xf32>
    %75 = arith.truncf %74 : vector<8x32xf32> to vector<8x32xbf16>
    %c0_39 = arith.constant 0 : index
    %c0_40 = arith.constant 0 : index
    %76 = vector.load %arg13[%c0_39, %c0_40] : memref<32x2048xbf16, #tpu.memory_space<vmem>>, vector<32x2048xbf16>
    %cst_41 = arith.constant dense<0.000000e+00> : vector<8x2048xf32>
    %77 = tpu.matmul %75, %76, %cst_41 {dimension_numbers = #tpu.dot_dimension_numbers<[1], [0], [0], [1], [0, 0, 1, 1], [], []>} : vector<8x32xbf16>, vector<32x2048xbf16>, vector<8x2048xf32> -> vector<8x2048xf32>
    %c0_42 = arith.constant 0 : index
    %c0_43 = arith.constant 0 : index
    %78 = vector.load %arg14[%c0_42, %c0_43] : memref<1x2048xf32, #tpu.memory_space<vmem>>, vector<1x2048xf32>
    %79 = vector.broadcast %78 : vector<1x2048xf32> to vector<8x2048xf32>
    %80 = arith.addf %77, %79 : vector<8x2048xf32>
    %cst_44 = arith.constant 0.000000e+00 : f32
    %81 = vector.broadcast %cst_44 : f32 to vector<8x2048xf32>
    %82 = arith.maximumf %80, %81 : vector<8x2048xf32>
    %83 = arith.truncf %82 : vector<8x2048xf32> to vector<8x2048xbf16>
    %c0_45 = arith.constant 0 : index
    %c0_46 = arith.constant 0 : index
    %84 = vector.load %arg15[%c0_45, %c0_46] : memref<2048x32xbf16, #tpu.memory_space<vmem>>, vector<2048x32xbf16>
    %cst_47 = arith.constant dense<0.000000e+00> : vector<8x32xf32>
    %85 = tpu.matmul %83, %84, %cst_47 {dimension_numbers = #tpu.dot_dimension_numbers<[1], [0], [0], [1], [0, 0, 1, 1], [], []>} : vector<8x2048xbf16>, vector<2048x32xbf16>, vector<8x32xf32> -> vector<8x32xf32>
    %c0_48 = arith.constant 0 : index
    %c0_49 = arith.constant 0 : index
    %86 = vector.load %arg16[%c0_48, %c0_49] : memref<1x32xf32, #tpu.memory_space<vmem>>, vector<1x32xf32>
    %87 = vector.broadcast %86 : vector<1x32xf32> to vector<8x32xf32>
    %88 = arith.addf %85, %87 : vector<8x32xf32>
    %89 = arith.addf %74, %88 : vector<8x32xf32>
    %c0_50 = arith.constant 0 : index
    %c0_51 = arith.constant 0 : index
    %90 = vector.load %arg17[%c0_50, %c0_51] : memref<1x32xf32, #tpu.memory_space<vmem>>, vector<1x32xf32>
    %c0_52 = arith.constant 0 : index
    %c0_53 = arith.constant 0 : index
    %91 = vector.load %arg18[%c0_52, %c0_53] : memref<1x32xf32, #tpu.memory_space<vmem>>, vector<1x32xf32>
    %cst_54 = arith.constant dense<0.000000e+00> : vector<8xf32>
    %92 = vector.multi_reduction <add>, %89, %cst_54 [1] : vector<8x32xf32> to vector<8xf32>
    %93 = vector.shape_cast %92 : vector<8xf32> to vector<8x1xf32>
    %cst_55 = arith.constant 3.200000e+01 : f32
    %94 = vector.broadcast %cst_55 : f32 to vector<8x1xf32>
    %95 = arith.divf %93, %94 : vector<8x1xf32>
    %96 = vector.broadcast %95 : vector<8x1xf32> to vector<8x32xf32>
    %97 = arith.subf %89, %96 : vector<8x32xf32>
    %98 = arith.mulf %97, %97 : vector<8x32xf32>
    %cst_56 = arith.constant dense<0.000000e+00> : vector<8xf32>
    %99 = vector.multi_reduction <add>, %98, %cst_56 [1] : vector<8x32xf32> to vector<8xf32>
    %100 = vector.shape_cast %99 : vector<8xf32> to vector<8x1xf32>
    %cst_57 = arith.constant 3.200000e+01 : f32
    %101 = vector.broadcast %cst_57 : f32 to vector<8x1xf32>
    %102 = arith.divf %100, %101 : vector<8x1xf32>
    %103 = vector.broadcast %95 : vector<8x1xf32> to vector<8x32xf32>
    %104 = arith.subf %89, %103 : vector<8x32xf32>
    %cst_58 = arith.constant 9.99999974E-6 : f32
    %105 = vector.broadcast %cst_58 : f32 to vector<8x1xf32>
    %106 = arith.addf %102, %105 : vector<8x1xf32>
    %107 = math.rsqrt %106 : vector<8x1xf32>
    %108 = vector.broadcast %107 : vector<8x1xf32> to vector<8x32xf32>
    %109 = arith.mulf %104, %108 : vector<8x32xf32>
    %110 = vector.broadcast %90 : vector<1x32xf32> to vector<8x32xf32>
    %111 = arith.mulf %109, %110 : vector<8x32xf32>
    %112 = vector.broadcast %91 : vector<1x32xf32> to vector<8x32xf32>
    %113 = arith.addf %111, %112 : vector<8x32xf32>
    %114 = arith.truncf %113 : vector<8x32xf32> to vector<8x32xbf16>
    %c0_59 = arith.constant 0 : index
    %c0_60 = arith.constant 0 : index
    %115 = vector.load %arg19[%c0_59, %c0_60] : memref<32x32xbf16, #tpu.memory_space<vmem>>, vector<32x32xbf16>
    %cst_61 = arith.constant dense<0.000000e+00> : vector<8x32xf32>
    %116 = tpu.matmul %114, %115, %cst_61 {dimension_numbers = #tpu.dot_dimension_numbers<[1], [0], [0], [1], [0, 0, 1, 1], [], []>} : vector<8x32xbf16>, vector<32x32xbf16>, vector<8x32xf32> -> vector<8x32xf32>
    %c0_62 = arith.constant 0 : index
    %c0_63 = arith.constant 0 : index
    %117 = vector.load %arg20[%c0_62, %c0_63] : memref<1x32xf32, #tpu.memory_space<vmem>>, vector<1x32xf32>
    %118 = vector.broadcast %117 : vector<1x32xf32> to vector<8x32xf32>
    %119 = arith.addf %116, %118 : vector<8x32xf32>
    %120 = vector.extract_strided_slice %119 {offsets = [0, 0], sizes = [8, 16], strides = [1, 1]} : vector<8x32xf32> to vector<8x16xf32>
    %121 = vector.extract_strided_slice %119 {offsets = [0, 16], sizes = [8, 16], strides = [1, 1]} : vector<8x32xf32> to vector<8x16xf32>
    %cst_64 = arith.constant 5.000000e-01 : f32
    %122 = vector.broadcast %cst_64 : f32 to vector<8x16xf32>
    %123 = arith.mulf %122, %121 : vector<8x16xf32>
    %124 = math.exp %123 : vector<8x16xf32>
    %125 = arith.mulf %5, %124 : vector<8x16xf32>
    %126 = arith.addf %120, %125 : vector<8x16xf32>
    %127 = arith.truncf %126 : vector<8x16xf32> to vector<8x16xbf16>
    %c0_65 = arith.constant 0 : index
    %c0_66 = arith.constant 0 : index
    %128 = vector.load %arg21[%c0_65, %c0_66] : memref<16x32xbf16, #tpu.memory_space<vmem>>, vector<16x32xbf16>
    %cst_67 = arith.constant dense<0.000000e+00> : vector<8x32xf32>
    %129 = tpu.matmul %127, %128, %cst_67 {dimension_numbers = #tpu.dot_dimension_numbers<[1], [0], [0], [1], [0, 0, 1, 1], [], []>} : vector<8x16xbf16>, vector<16x32xbf16>, vector<8x32xf32> -> vector<8x32xf32>
    %c0_68 = arith.constant 0 : index
    %c0_69 = arith.constant 0 : index
    %130 = vector.load %arg22[%c0_68, %c0_69] : memref<1x32xf32, #tpu.memory_space<vmem>>, vector<1x32xf32>
    %131 = vector.broadcast %130 : vector<1x32xf32> to vector<8x32xf32>
    %132 = arith.addf %129, %131 : vector<8x32xf32>
    %133 = arith.truncf %132 : vector<8x32xf32> to vector<8x32xbf16>
    %c0_70 = arith.constant 0 : index
    %c0_71 = arith.constant 0 : index
    %134 = vector.load %arg23[%c0_70, %c0_71] : memref<32x128xbf16, #tpu.memory_space<vmem>>, vector<32x128xbf16>
    %cst_72 = arith.constant dense<0.000000e+00> : vector<8x128xf32>
    %135 = tpu.matmul %133, %134, %cst_72 {dimension_numbers = #tpu.dot_dimension_numbers<[1], [0], [0], [1], [0, 0, 1, 1], [], []>} : vector<8x32xbf16>, vector<32x128xbf16>, vector<8x128xf32> -> vector<8x128xf32>
    %136 = arith.truncf %3 : vector<8x16xf32> to vector<8x16xbf16>
    %c0_73 = arith.constant 0 : index
    %c0_74 = arith.constant 0 : index
    %137 = vector.load %arg24[%c0_73, %c0_74] : memref<16x128xbf16, #tpu.memory_space<vmem>>, vector<16x128xbf16>
    %cst_75 = arith.constant dense<0.000000e+00> : vector<8x128xf32>
    %138 = tpu.matmul %136, %137, %cst_75 {dimension_numbers = #tpu.dot_dimension_numbers<[1], [0], [0], [1], [0, 0, 1, 1], [], []>} : vector<8x16xbf16>, vector<16x128xbf16>, vector<8x128xf32> -> vector<8x128xf32>
    %139 = arith.addf %135, %138 : vector<8x128xf32>
    %c0_76 = arith.constant 0 : index
    %c0_77 = arith.constant 0 : index
    %140 = vector.load %arg25[%c0_76, %c0_77] : memref<1x128xf32, #tpu.memory_space<vmem>>, vector<1x128xf32>
    %141 = vector.broadcast %140 : vector<1x128xf32> to vector<8x128xf32>
    %142 = arith.addf %139, %141 : vector<8x128xf32>
    %143 = vector.shape_cast %142 : vector<8x128xf32> to vector<1x8x128xf32>
    %c0_78 = arith.constant 0 : index
    %c0_79 = arith.constant 0 : index
    %c0_80 = arith.constant 0 : index
    %144 = vector.load %arg26[%c0_78, %c0_79, %c0_80] : memref<1x8x128xf32, #tpu.memory_space<vmem>>, vector<1x8x128xf32>
    tpu.vector_store %arg26[%c0_78, %c0_79, %c0_80], %143 {strides = array<i32>} : memref<1x8x128xf32, #tpu.memory_space<vmem>>, vector<1x8x128xf32>,
    %145 = vector.shape_cast %119 : vector<8x32xf32> to vector<1x8x32xf32>
    %c0_81 = arith.constant 0 : index
    %c0_82 = arith.constant 0 : index
    %c0_83 = arith.constant 0 : index
    %146 = vector.load %arg27[%c0_81, %c0_82, %c0_83] : memref<1x8x32xf32, #tpu.memory_space<vmem>>, vector<1x8x32xf32>
    tpu.vector_store %arg27[%c0_81, %c0_82, %c0_83], %145 {strides = array<i32>} : memref<1x8x32xf32, #tpu.memory_space<vmem>>, vector<1x8x32xf32>,
    return
  }
  func.func @transform_0(%arg0: i32) -> (i32, i32, i32) {
    %c0_i32 = arith.constant 0 : i32
    %c0_i32_0 = arith.constant 0 : i32
    %c0_i32_1 = arith.constant 0 : i32
    return %arg0, %c0_i32, %c0_i32_0 : i32, i32, i32
  }
  func.func @transform_1(%arg0: i32) -> (i32, i32, i32) {
    %c0_i32 = arith.constant 0 : i32
    %c0_i32_0 = arith.constant 0 : i32
    %c0_i32_1 = arith.constant 0 : i32
    return %arg0, %c0_i32, %c0_i32_0 : i32, i32, i32
  }
  func.func @transform_2(%arg0: i32) -> (i32, i32, i32) {
    %c0_i32 = arith.constant 0 : i32
    %c0_i32_0 = arith.constant 0 : i32
    %c0_i32_1 = arith.constant 0 : i32
    return %arg0, %c0_i32, %c0_i32_0 : i32, i32, i32
  }
  func.func @transform_3(%arg0: i32) -> (i32, i32, i32) {
    %c0_i32 = arith.constant 0 : i32
    %c0_i32_0 = arith.constant 0 : i32
    %c0_i32_1 = arith.constant 0 : i32
    %c0_i32_2 = arith.constant 0 : i32
    return %c0_i32, %c0_i32_0, %c0_i32_1 : i32, i32, i32
  }
  func.func @transform_4(%arg0: i32) -> (i32, i32) {
    %c0_i32 = arith.constant 0 : i32
    %c0_i32_0 = arith.constant 0 : i32
    %c0_i32_1 = arith.constant 0 : i32
    return %c0_i32, %c0_i32_0 : i32, i32
  }
  func.func @transform_5(%arg0: i32) -> (i32, i32) {
    %c0_i32 = arith.constant 0 : i32
    %c0_i32_0 = arith.constant 0 : i32
    %c0_i32_1 = arith.constant 0 : i32
    return %c0_i32, %c0_i32_0 : i32, i32
  }
  func.func @transform_6(%arg0: i32) -> (i32, i32) {
    %c0_i32 = arith.constant 0 : i32
    %c0_i32_0 = arith.constant 0 : i32
    %c0_i32_1 = arith.constant 0 : i32
    return %c0_i32, %c0_i32_0 : i32, i32
  }
  func.func @transform_7(%arg0: i32) -> (i32, i32) {
    %c0_i32 = arith.constant 0 : i32
    %c0_i32_0 = arith.constant 0 : i32
    %c0_i32_1 = arith.constant 0 : i32
    return %c0_i32, %c0_i32_0 : i32, i32
  }
  func.func @transform_8(%arg0: i32) -> (i32, i32) {
    %c0_i32 = arith.constant 0 : i32
    %c0_i32_0 = arith.constant 0 : i32
    %c0_i32_1 = arith.constant 0 : i32
    return %c0_i32, %c0_i32_0 : i32, i32
  }
  func.func @transform_9(%arg0: i32) -> (i32, i32) {
    %c0_i32 = arith.constant 0 : i32
    %c0_i32_0 = arith.constant 0 : i32
    %c0_i32_1 = arith.constant 0 : i32
    return %c0_i32, %c0_i32_0 : i32, i32
  }
  func.func @transform_10(%arg0: i32) -> (i32, i32) {
    %c0_i32 = arith.constant 0 : i32
    %c0_i32_0 = arith.constant 0 : i32
    %c0_i32_1 = arith.constant 0 : i32
    return %c0_i32, %c0_i32_0 : i32, i32
  }
  func.func @transform_11(%arg0: i32) -> (i32, i32) {
    %c0_i32 = arith.constant 0 : i32
    %c0_i32_0 = arith.constant 0 : i32
    %c0_i32_1 = arith.constant 0 : i32
    return %c0_i32, %c0_i32_0 : i32, i32
  }
  func.func @transform_12(%arg0: i32) -> (i32, i32) {
    %c0_i32 = arith.constant 0 : i32
    %c0_i32_0 = arith.constant 0 : i32
    %c0_i32_1 = arith.constant 0 : i32
    return %c0_i32, %c0_i32_0 : i32, i32
  }
  func.func @transform_13(%arg0: i32) -> (i32, i32) {
    %c0_i32 = arith.constant 0 : i32
    %c0_i32_0 = arith.constant 0 : i32
    %c0_i32_1 = arith.constant 0 : i32
    return %c0_i32, %c0_i32_0 : i32, i32
  }
  func.func @transform_14(%arg0: i32) -> (i32, i32) {
    %c0_i32 = arith.constant 0 : i32
    %c0_i32_0 = arith.constant 0 : i32
    %c0_i32_1 = arith.constant 0 : i32
    return %c0_i32, %c0_i32_0 : i32, i32
  }
  func.func @transform_15(%arg0: i32) -> (i32, i32) {
    %c0_i32 = arith.constant 0 : i32
    %c0_i32_0 = arith.constant 0 : i32
    %c0_i32_1 = arith.constant 0 : i32
    return %c0_i32, %c0_i32_0 : i32, i32
  }
  func.func @transform_16(%arg0: i32) -> (i32, i32) {
    %c0_i32 = arith.constant 0 : i32
    %c0_i32_0 = arith.constant 0 : i32
    %c0_i32_1 = arith.constant 0 : i32
    return %c0_i32, %c0_i32_0 : i32, i32
  }
  func.func @transform_17(%arg0: i32) -> (i32, i32) {
    %c0_i32 = arith.constant 0 : i32
    %c0_i32_0 = arith.constant 0 : i32
    %c0_i32_1 = arith.constant 0 : i32
    return %c0_i32, %c0_i32_0 : i32, i32
  }
  func.func @transform_18(%arg0: i32) -> (i32, i32) {
    %c0_i32 = arith.constant 0 : i32
    %c0_i32_0 = arith.constant 0 : i32
    %c0_i32_1 = arith.constant 0 : i32
    return %c0_i32, %c0_i32_0 : i32, i32
  }
  func.func @transform_19(%arg0: i32) -> (i32, i32) {
    %c0_i32 = arith.constant 0 : i32
    %c0_i32_0 = arith.constant 0 : i32
    %c0_i32_1 = arith.constant 0 : i32
    return %c0_i32, %c0_i32_0 : i32, i32
  }
  func.func @transform_20(%arg0: i32) -> (i32, i32) {
    %c0_i32 = arith.constant 0 : i32
    %c0_i32_0 = arith.constant 0 : i32
    %c0_i32_1 = arith.constant 0 : i32
    return %c0_i32, %c0_i32_0 : i32, i32
  }
  func.func @transform_21(%arg0: i32) -> (i32, i32) {
    %c0_i32 = arith.constant 0 : i32
    %c0_i32_0 = arith.constant 0 : i32
    %c0_i32_1 = arith.constant 0 : i32
    return %c0_i32, %c0_i32_0 : i32, i32
  }
  func.func @transform_22(%arg0: i32) -> (i32, i32) {
    %c0_i32 = arith.constant 0 : i32
    %c0_i32_0 = arith.constant 0 : i32
    %c0_i32_1 = arith.constant 0 : i32
    return %c0_i32, %c0_i32_0 : i32, i32
  }
  func.func @transform_23(%arg0: i32) -> (i32, i32) {
    %c0_i32 = arith.constant 0 : i32
    %c0_i32_0 = arith.constant 0 : i32
    %c0_i32_1 = arith.constant 0 : i32
    return %c0_i32, %c0_i32_0 : i32, i32
  }
  func.func @transform_24(%arg0: i32) -> (i32, i32) {
    %c0_i32 = arith.constant 0 : i32
    %c0_i32_0 = arith.constant 0 : i32
    %c0_i32_1 = arith.constant 0 : i32
    return %c0_i32, %c0_i32_0 : i32, i32
  }
  func.func @transform_25(%arg0: i32) -> (i32, i32, i32) {
    %c0_i32 = arith.constant 0 : i32
    %c0_i32_0 = arith.constant 0 : i32
    %c0_i32_1 = arith.constant 0 : i32
    return %arg0, %c0_i32, %c0_i32_0 : i32, i32, i32
  }
  func.func @transform_26(%arg0: i32) -> (i32, i32, i32) {
    %c0_i32 = arith.constant 0 : i32
    %c0_i32_0 = arith.constant 0 : i32
    %c0_i32_1 = arith.constant 0 : i32
    return %arg0, %c0_i32, %c0_i32_0 : i32, i32, i32
  }
}

</mosaic_0001>

<llo_original>
// kernel: cvae_forward.1
$region0: #{cvae_forward.1}
  #allocation0 [shape = 'u32[]', space=smem, size = 0x4, offset = 0x4, fixed_abs, tag = 'smem constant byte address 0x4 - core index']
  #allocation1 [shape = 'u32[144,128]{1,0:T(1,128)}', space=vmem, size = 0x12000, scoped, tag = 'internal scratch']
  %s0 = inlined_call_operand.vmem [shape: f32[2,8,16], index: 0, kind: input, shape index: {}]
  %s1 = inlined_call_operand.vmem [shape: f32[2,8,16], index: 1, kind: input, shape index: {}]
  %s2 = inlined_call_operand.vmem [shape: f32[2,8,16], index: 2, kind: input, shape index: {}]
  %s3 = inlined_call_operand.vmem [shape: f32[8,1,32], index: 3, kind: input, shape index: {}]
  %s4 = inlined_call_operand.vmem [shape: bf16[16,32], index: 4, kind: input, shape index: {}]
  %s5 = inlined_call_operand.vmem [shape: f32[1,32], index: 5, kind: input, shape index: {}]
  %s6 = inlined_call_operand.vmem [shape: bf16[32,96], index: 6, kind: input, shape index: {}]
  %s7 = inlined_call_operand.vmem [shape: f32[1,96], index: 7, kind: input, shape index: {}]
  %s8 = inlined_call_operand.vmem [shape: bf16[32,32], index: 8, kind: input, shape index: {}]
  %s9 = inlined_call_operand.vmem [shape: f32[1,32], index: 9, kind: input, shape index: {}]
  %s10 = inlined_call_operand.vmem [shape: f32[1,32], index: 10, kind: input, shape index: {}]
  %s11 = inlined_call_operand.vmem [shape: f32[1,32], index: 11, kind: input, shape index: {}]
  %s12 = inlined_call_operand.vmem [shape: bf16[32,2048], index: 12, kind: input, shape index: {}]
  %s13 = inlined_call_operand.vmem [shape: f32[1,2048], index: 13, kind: input, shape index: {}]
  %s14 = inlined_call_operand.vmem [shape: bf16[2048,32], index: 14, kind: input, shape index: {}]
  %s15 = inlined_call_operand.vmem [shape: f32[1,32], index: 15, kind: input, shape index: {}]
  %s16 = inlined_call_operand.vmem [shape: f32[1,32], index: 16, kind: input, shape index: {}]
  %s17 = inlined_call_operand.vmem [shape: f32[1,32], index: 17, kind: input, shape index: {}]
  %s18 = inlined_call_operand.vmem [shape: bf16[32,32], index: 18, kind: input, shape index: {}]
  %s19 = inlined_call_operand.vmem [shape: f32[1,32], index: 19, kind: input, shape index: {}]
  %s20 = inlined_call_operand.vmem [shape: bf16[16,32], index: 20, kind: input, shape index: {}]
  %s21 = inlined_call_operand.vmem [shape: f32[1,32], index: 21, kind: input, shape index: {}]
  %s22 = inlined_call_operand.vmem [shape: bf16[32,128], index: 22, kind: input, shape index: {}]
  %s23 = inlined_call_operand.vmem [shape: bf16[16,128], index: 23, kind: input, shape index: {}]
  %s24 = inlined_call_operand.vmem [shape: f32[1,128], index: 24, kind: input, shape index: {}]
  %s25 = inlined_call_operand.hbm [shape: f32[2,8,128], index: 25, kind: output, shape index: {0}]
  %s26 = inlined_call_operand.vmem [shape: f32[2,8,32], index: 26, kind: output, shape index: {1}]
  %27 = xla_tuple %s25, %s26
  %s28 = sld [smem:[#allocation0]]
  $region141: #{cvae_forward.1} parent=0
    _
  %s30 = ssub.s32 1, %s28
  %s31 = scalar_select 0, %s30, %s28
  $region1: #{cvae_forward.1} parent=0
    #allocation2 [shape = 'u8[8192]{0}', space=vmem, size = 0x2000, scoped, tag = 'output window, operand 0']
    #allocation3 [shape = 's32[2]{0}', space=sflag, size = 0x8, scoped, tag = 'scoped memory for cvae_forward.1']
    %32 = vsyncpa [#allocation3], 0
    %s33 = scalar_lea.sflag [#allocation3], 1
    %34 = vsyncpa %s33, 0
    loop: start=0, step=1, limit=4
    $region2: #{cvae_forward.1} parent=1 // loop_pre_header
      _
    $region3: #{cvae_forward.1} parent=1 // loop_header
      %s36 = sphi 0, %s40
      %p37 = scmp.ge.s32.totalorder %s36, 4
      %s46 = sphi 0, %s48
      %s49 = sphi 0, %s46
      %s50 = sphi 0, %s49
      %s66 = sphi 0, %s50
      %s72 = sphi 0, %s74
      %s75 = sphi 0, %s72
      %s76 = sphi 0, %s75
      %s92 = sphi 0, %s76
      %s98 = sphi 0, %s100
      %s101 = sphi 0, %s98
      %s102 = sphi 0, %s101
      %s118 = sphi 0, %s102
      %s122 = sphi 0, %s122
      %s124 = sphi 0, %s122
      %s125 = sphi 0, %s124
      %s139 = sphi 0, %s125
      %s143 = sphi 0, %s143
      %s145 = sphi 0, %s143
      %s146 = sphi 0, %s145
      %s160 = sphi 0, %s146
      %s164 = sphi 0, %s164
      %s166 = sphi 0, %s164
      %s167 = sphi 0, %s166
      %s181 = sphi 0, %s167
      %s185 = sphi 0, %s185
      %s187 = sphi 0, %s185
      %s188 = sphi 0, %s187
      %s202 = sphi 0, %s188
      %s206 = sphi 0, %s206
      %s208 = sphi 0, %s206
      %s209 = sphi 0, %s208
      %s223 = sphi 0, %s209
      %s227 = sphi 0, %s227
      %s229 = sphi 0, %s227
      %s230 = sphi 0, %s229
      %s244 = sphi 0, %s230
      %s248 = sphi 0, %s248
      %s250 = sphi 0, %s248
      %s251 = sphi 0, %s250
      %s265 = sphi 0, %s251
      %s269 = sphi 0, %s269
      %s271 = sphi 0, %s269
      %s272 = sphi 0, %s271
      %s286 = sphi 0, %s272
      %s290 = sphi 0, %s290
      %s292 = sphi 0, %s290
      %s293 = sphi 0, %s292
      %s307 = sphi 0, %s293
      %s311 = sphi 0, %s311
      %s313 = sphi 0, %s311
      %s314 = sphi 0, %s313
      %s328 = sphi 0, %s314
      %s332 = sphi 0, %s332
      %s334 = sphi 0, %s332
      %s335 = sphi 0, %s334
      %s349 = sphi 0, %s335
      %s353 = sphi 0, %s353
      %s355 = sphi 0, %s353
      %s356 = sphi 0, %s355
      %s370 = sphi 0, %s356
      %s374 = sphi 0, %s374
      %s376 = sphi 0, %s374
      %s377 = sphi 0, %s376
      %s391 = sphi 0, %s377
      %s395 = sphi 0, %s395
      %s397 = sphi 0, %s395
      %s398 = sphi 0, %s397
      %s412 = sphi 0, %s398
      %s416 = sphi 0, %s416
      %s418 = sphi 0, %s416
      %s419 = sphi 0, %s418
      %s433 = sphi 0, %s419
      %s437 = sphi 0, %s437
      %s439 = sphi 0, %s437
      %s440 = sphi 0, %s439
      %s454 = sphi 0, %s440
      %s458 = sphi 0, %s458
      %s460 = sphi 0, %s458
      %s461 = sphi 0, %s460
      %s475 = sphi 0, %s461
      %s479 = sphi 0, %s479
      %s481 = sphi 0, %s479
      %s482 = sphi 0, %s481
      %s496 = sphi 0, %s482
      %s500 = sphi 0, %s500
      %s502 = sphi 0, %s500
      %s503 = sphi 0, %s502
      %s517 = sphi 0, %s503
      %s521 = sphi 0, %s521
      %s523 = sphi 0, %s521
      %s524 = sphi 0, %s523
      %s538 = sphi 0, %s524
      %s542 = sphi 0, %s542
      %s544 = sphi 0, %s542
      %s545 = sphi 0, %s544
      %s559 = sphi 0, %s545
      %s563 = sphi 0, %s563
      %s565 = sphi 0, %s563
      %s566 = sphi 0, %s565
      %s580 = sphi 0, %s566
      %s586 = sphi 0, %s588
      %s589 = sphi 0, %s586
      %s590 = sphi 0, %s589
      %s606 = sphi 0, %s590
      %s612 = sphi 0, %s614
      %s615 = sphi 0, %s612
      %s616 = sphi 0, %s615
      %s632 = sphi 0, %s616
    $region4: #{cvae_forward.1} parent=1 // loop_header_branch
      %39 = sbr.rel (%p37) target = $region8
    $region5: #{cvae_forward.1} parent=1 // loop_body
      %s41 = ssub.s32 %s36, 1
      %s42 = ssub.s32 %s36, 2
      %s43 = sadd.s32 %s36, 1
      %s44 = ssub.s32 %s36, %s43
      %p45 = scmp.eq.s32.totalorder %s44, 0
      %s47 = sadd.s32 %s46, 1
      %s48 = scalar_select %p45, %s46, %s47
      %p51 = pneg %p45
      %p52 = scmp.eq.s32.totalorder %s36, 1
      %p53 = por %p51, %p52
      %p54 = scmp.ne.s32.totalorder %s46, %s49
      %p55 = scmp.eq.s32.totalorder %s36, 0
      %p56 = por %p54, %p55
      %p57 = scmp.ne.s32.totalorder %s46, %s49
      %p58 = scmp.eq.s32.totalorder %s41, 1
      %p59 = por %p57, %p58
      %p60 = scmp.ne.s32.totalorder %s49, %s50
      %p61 = scmp.eq.s32.totalorder %s41, 0
      %p62 = por %p60, %p61
      %p63 = scmp.ne.s32.totalorder %s49, %s50
      %p64 = scmp.eq.s32.totalorder %s42, 1
      %p65 = por %p63, %p64
      %p67 = scmp.ne.s32.totalorder %s50, %s66
      %p68 = scmp.eq.s32.totalorder %s42, 0
      %p69 = por %p67, %p68
      %s70 = ssub.s32 %s36, %s43
      %p71 = scmp.eq.s32.totalorder %s70, 0
      %s73 = sadd.s32 %s72, 1
      %s74 = scalar_select %p71, %s72, %s73
      %p77 = pneg %p71
      %p78 = scmp.eq.s32.totalorder %s36, 1
      %p79 = por %p77, %p78
      %p80 = scmp.ne.s32.totalorder %s72, %s75
      %p81 = scmp.eq.s32.totalorder %s36, 0
      %p82 = por %p80, %p81
      %p83 = scmp.ne.s32.totalorder %s72, %s75
      %p84 = scmp.eq.s32.totalorder %s41, 1
      %p85 = por %p83, %p84
      %p86 = scmp.ne.s32.totalorder %s75, %s76
      %p87 = scmp.eq.s32.totalorder %s41, 0
      %p88 = por %p86, %p87
      %p89 = scmp.ne.s32.totalorder %s75, %s76
      %p90 = scmp.eq.s32.totalorder %s42, 1
      %p91 = por %p89, %p90
      %p93 = scmp.ne.s32.totalorder %s76, %s92
      %p94 = scmp.eq.s32.totalorder %s42, 0
      %p95 = por %p93, %p94
      %s96 = ssub.s32 %s36, %s43
      %p97 = scmp.eq.s32.totalorder %s96, 0
      %s99 = sadd.s32 %s98, 1
      %s100 = scalar_select %p97, %s98, %s99
      %p103 = pneg %p97
      %p104 = scmp.eq.s32.totalorder %s36, 1
      %p105 = por %p103, %p104
      %p106 = scmp.ne.s32.totalorder %s98, %s101
      %p107 = scmp.eq.s32.totalorder %s36, 0
      %p108 = por %p106, %p107
      %p109 = scmp.ne.s32.totalorder %s98, %s101
      %p110 = scmp.eq.s32.totalorder %s41, 1
      %p111 = por %p109, %p110
      %p112 = scmp.ne.s32.totalorder %s101, %s102
      %p113 = scmp.eq.s32.totalorder %s41, 0
      %p114 = por %p112, %p113
      %p115 = scmp.ne.s32.totalorder %s101, %s102
      %p116 = scmp.eq.s32.totalorder %s42, 1
      %p117 = por %p115, %p116
      %p119 = scmp.ne.s32.totalorder %s102, %s118
      %p120 = scmp.eq.s32.totalorder %s42, 0
      %p121 = por %p119, %p120
      %s123 = sadd.s32 %s122, 1
      %p126 = scmp.eq.s32.totalorder %s36, 1
      %p127 = scmp.ne.s32.totalorder %s122, %s124
      %p128 = scmp.eq.s32.totalorder %s36, 0
      %p129 = por %p127, %p128
      %p130 = scmp.ne.s32.totalorder %s122, %s124
      %p131 = scmp.eq.s32.totalorder %s41, 1
      %p132 = por %p130, %p131
      %p133 = scmp.ne.s32.totalorder %s124, %s125
      %p134 = scmp.eq.s32.totalorder %s41, 0
      %p135 = por %p133, %p134
      %p136 = scmp.ne.s32.totalorder %s124, %s125
      %p137 = scmp.eq.s32.totalorder %s42, 1
      %p138 = por %p136, %p137
      %p140 = scmp.ne.s32.totalorder %s125, %s139
      %p141 = scmp.eq.s32.totalorder %s42, 0
      %p142 = por %p140, %p141
      %s144 = sadd.s32 %s143, 1
      %p147 = scmp.eq.s32.totalorder %s36, 1
      %p148 = scmp.ne.s32.totalorder %s143, %s145
      %p149 = scmp.eq.s32.totalorder %s36, 0
      %p150 = por %p148, %p149
      %p151 = scmp.ne.s32.totalorder %s143, %s145
      %p152 = scmp.eq.s32.totalorder %s41, 1
      %p153 = por %p151, %p152
      %p154 = scmp.ne.s32.totalorder %s145, %s146
      %p155 = scmp.eq.s32.totalorder %s41, 0
      %p156 = por %p154, %p155
      %p157 = scmp.ne.s32.totalorder %s145, %s146
      %p158 = scmp.eq.s32.totalorder %s42, 1
      %p159 = por %p157, %p158
      %p161 = scmp.ne.s32.totalorder %s146, %s160
      %p162 = scmp.eq.s32.totalorder %s42, 0
      %p163 = por %p161, %p162
      %s165 = sadd.s32 %s164, 1
      %p168 = scmp.eq.s32.totalorder %s36, 1
      %p169 = scmp.ne.s32.totalorder %s164, %s166
      %p170 = scmp.eq.s32.totalorder %s36, 0
      %p171 = por %p169, %p170
      %p172 = scmp.ne.s32.totalorder %s164, %s166
      %p173 = scmp.eq.s32.totalorder %s41, 1
      %p174 = por %p172, %p173
      %p175 = scmp.ne.s32.totalorder %s166, %s167
      %p176 = scmp.eq.s32.totalorder %s41, 0
      %p177 = por %p175, %p176
      %p178 = scmp.ne.s32.totalorder %s166, %s167
      %p179 = scmp.eq.s32.totalorder %s42, 1
      %p180 = por %p178, %p179
      %p182 = scmp.ne.s32.totalorder %s167, %s181
      %p183 = scmp.eq.s32.totalorder %s42, 0
      %p184 = por %p182, %p183
      %s186 = sadd.s32 %s185, 1
      %p189 = scmp.eq.s32.totalorder %s36, 1
      %p190 = scmp.ne.s32.totalorder %s185, %s187
      %p191 = scmp.eq.s32.totalorder %s36, 0
      %p192 = por %p190, %p191
      %p193 = scmp.ne.s32.totalorder %s185, %s187
      %p194 = scmp.eq.s32.totalorder %s41, 1
      %p195 = por %p193, %p194
      %p196 = scmp.ne.s32.totalorder %s187, %s188
      %p197 = scmp.eq.s32.totalorder %s41, 0
      %p198 = por %p196, %p197
      %p199 = scmp.ne.s32.totalorder %s187, %s188
      %p200 = scmp.eq.s32.totalorder %s42, 1
      %p201 = por %p199, %p200
      %p203 = scmp.ne.s32.totalorder %s188, %s202
      %p204 = scmp.eq.s32.totalorder %s42, 0
      %p205 = por %p203, %p204
      %s207 = sadd.s32 %s206, 1
      %p210 = scmp.eq.s32.totalorder %s36, 1
      %p211 = scmp.ne.s32.totalorder %s206, %s208
      %p212 = scmp.eq.s32.totalorder %s36, 0
      %p213 = por %p211, %p212
      %p214 = scmp.ne.s32.totalorder %s206, %s208
      %p215 = scmp.eq.s32.totalorder %s41, 1
      %p216 = por %p214, %p215
      %p217 = scmp.ne.s32.totalorder %s208, %s209
      %p218 = scmp.eq.s32.totalorder %s41, 0
      %p219 = por %p217, %p218
      %p220 = scmp.ne.s32.totalorder %s208, %s209
      %p221 = scmp.eq.s32.totalorder %s42, 1
      %p222 = por %p220, %p221
      %p224 = scmp.ne.s32.totalorder %s209, %s223
      %p225 = scmp.eq.s32.totalorder %s42, 0
      %p226 = por %p224, %p225
      %s228 = sadd.s32 %s227, 1
      %p231 = scmp.eq.s32.totalorder %s36, 1
      %p232 = scmp.ne.s32.totalorder %s227, %s229
      %p233 = scmp.eq.s32.totalorder %s36, 0
      %p234 = por %p232, %p233
      %p235 = scmp.ne.s32.totalorder %s227, %s229
      %p236 = scmp.eq.s32.totalorder %s41, 1
      %p237 = por %p235, %p236
      %p238 = scmp.ne.s32.totalorder %s229, %s230
      %p239 = scmp.eq.s32.totalorder %s41, 0
      %p240 = por %p238, %p239
      %p241 = scmp.ne.s32.totalorder %s229, %s230
      %p242 = scmp.eq.s32.totalorder %s42, 1
      %p243 = por %p241, %p242
      %p245 = scmp.ne.s32.totalorder %s230, %s244
      %p246 = scmp.eq.s32.totalorder %s42, 0
      %p247 = por %p245, %p246
      %s249 = sadd.s32 %s248, 1
      %p252 = scmp.eq.s32.totalorder %s36, 1
      %p253 = scmp.ne.s32.totalorder %s248, %s250
      %p254 = scmp.eq.s32.totalorder %s36, 0
      %p255 = por %p253, %p254
      %p256 = scmp.ne.s32.totalorder %s248, %s250
      %p257 = scmp.eq.s32.totalorder %s41, 1
      %p258 = por %p256, %p257
      %p259 = scmp.ne.s32.totalorder %s250, %s251
      %p260 = scmp.eq.s32.totalorder %s41, 0
      %p261 = por %p259, %p260
      %p262 = scmp.ne.s32.totalorder %s250, %s251
      %p263 = scmp.eq.s32.totalorder %s42, 1
      %p264 = por %p262, %p263
      %p266 = scmp.ne.s32.totalorder %s251, %s265
      %p267 = scmp.eq.s32.totalorder %s42, 0
      %p268 = por %p266, %p267
      %s270 = sadd.s32 %s269, 1
      %p273 = scmp.eq.s32.totalorder %s36, 1
      %p274 = scmp.ne.s32.totalorder %s269, %s271
      %p275 = scmp.eq.s32.totalorder %s36, 0
      %p276 = por %p274, %p275
      %p277 = scmp.ne.s32.totalorder %s269, %s271
      %p278 = scmp.eq.s32.totalorder %s41, 1
      %p279 = por %p277, %p278
      %p280 = scmp.ne.s32.totalorder %s271, %s272
      %p281 = scmp.eq.s32.totalorder %s41, 0
      %p282 = por %p280, %p281
      %p283 = scmp.ne.s32.totalorder %s271, %s272
      %p284 = scmp.eq.s32.totalorder %s42, 1
      %p285 = por %p283, %p284
      %p287 = scmp.ne.s32.totalorder %s272, %s286
      %p288 = scmp.eq.s32.totalorder %s42, 0
      %p289 = por %p287, %p288
      %s291 = sadd.s32 %s290, 1
      %p294 = scmp.eq.s32.totalorder %s36, 1
      %p295 = scmp.ne.s32.totalorder %s290, %s292
      %p296 = scmp.eq.s32.totalorder %s36, 0
      %p297 = por %p295, %p296
      %p298 = scmp.ne.s32.totalorder %s290, %s292
      %p299 = scmp.eq.s32.totalorder %s41, 1
      %p300 = por %p298, %p299
      %p301 = scmp.ne.s32.totalorder %s292, %s293
      %p302 = scmp.eq.s32.totalorder %s41, 0
      %p303 = por %p301, %p302
      %p304 = scmp.ne.s32.totalorder %s292, %s293
      %p305 = scmp.eq.s32.totalorder %s42, 1
      %p306 = por %p304, %p305
      %p308 = scmp.ne.s32.totalorder %s293, %s307
      %p309 = scmp.eq.s32.totalorder %s42, 0
      %p310 = por %p308, %p309
      %s312 = sadd.s32 %s311, 1
      %p315 = scmp.eq.s32.totalorder %s36, 1
      %p316 = scmp.ne.s32.totalorder %s311, %s313
      %p317 = scmp.eq.s32.totalorder %s36, 0
      %p318 = por %p316, %p317
      %p319 = scmp.ne.s32.totalorder %s311, %s313
      %p320 = scmp.eq.s32.totalorder %s41, 1
      %p321 = por %p319, %p320
      %p322 = scmp.ne.s32.totalorder %s313, %s314
      %p323 = scmp.eq.s32.totalorder %s41, 0
      %p324 = por %p322, %p323
      %p325 = scmp.ne.s32.totalorder %s313, %s314
      %p326 = scmp.eq.s32.totalorder %s42, 1
      %p327 = por %p325, %p326
      %p329 = scmp.ne.s32.totalorder %s314, %s328
      %p330 = scmp.eq.s32.totalorder %s42, 0
      %p331 = por %p329, %p330
      %s333 = sadd.s32 %s332, 1
      %p336 = scmp.eq.s32.totalorder %s36, 1
      %p337 = scmp.ne.s32.totalorder %s332, %s334
      %p338 = scmp.eq.s32.totalorder %s36, 0
      %p339 = por %p337, %p338
      %p340 = scmp.ne.s32.totalorder %s332, %s334
      %p341 = scmp.eq.s32.totalorder %s41, 1
      %p342 = por %p340, %p341
      %p343 = scmp.ne.s32.totalorder %s334, %s335
      %p344 = scmp.eq.s32.totalorder %s41, 0
      %p345 = por %p343, %p344
      %p346 = scmp.ne.s32.totalorder %s334, %s335
      %p347 = scmp.eq.s32.totalorder %s42, 1
      %p348 = por %p346, %p347
      %p350 = scmp.ne.s32.totalorder %s335, %s349
      %p351 = scmp.eq.s32.totalorder %s42, 0
      %p352 = por %p350, %p351
      %s354 = sadd.s32 %s353, 1
      %p357 = scmp.eq.s32.totalorder %s36, 1
      %p358 = scmp.ne.s32.totalorder %s353, %s355
      %p359 = scmp.eq.s32.totalorder %s36, 0
      %p360 = por %p358, %p359
      %p361 = scmp.ne.s32.totalorder %s353, %s355
      %p362 = scmp.eq.s32.totalorder %s41, 1
      %p363 = por %p361, %p362
      %p364 = scmp.ne.s32.totalorder %s355, %s356
      %p365 = scmp.eq.s32.totalorder %s41, 0
      %p366 = por %p364, %p365
      %p367 = scmp.ne.s32.totalorder %s355, %s356
      %p368 = scmp.eq.s32.totalorder %s42, 1
      %p369 = por %p367, %p368
      %p371 = scmp.ne.s32.totalorder %s356, %s370
      %p372 = scmp.eq.s32.totalorder %s42, 0
      %p373 = por %p371, %p372
      %s375 = sadd.s32 %s374, 1
      %p378 = scmp.eq.s32.totalorder %s36, 1
      %p379 = scmp.ne.s32.totalorder %s374, %s376
      %p380 = scmp.eq.s32.totalorder %s36, 0
      %p381 = por %p379, %p380
      %p382 = scmp.ne.s32.totalorder %s374, %s376
      %p383 = scmp.eq.s32.totalorder %s41, 1
      %p384 = por %p382, %p383
      %p385 = scmp.ne.s32.totalorder %s376, %s377
      %p386 = scmp.eq.s32.totalorder %s41, 0
      %p387 = por %p385, %p386
      %p388 = scmp.ne.s32.totalorder %s376, %s377
      %p389 = scmp.eq.s32.totalorder %s42, 1
      %p390 = por %p388, %p389
      %p392 = scmp.ne.s32.totalorder %s377, %s391
      %p393 = scmp.eq.s32.totalorder %s42, 0
      %p394 = por %p392, %p393
      %s396 = sadd.s32 %s395, 1
      %p399 = scmp.eq.s32.totalorder %s36, 1
      %p400 = scmp.ne.s32.totalorder %s395, %s397
      %p401 = scmp.eq.s32.totalorder %s36, 0
      %p402 = por %p400, %p401
      %p403 = scmp.ne.s32.totalorder %s395, %s397
      %p404 = scmp.eq.s32.totalorder %s41, 1
      %p405 = por %p403, %p404
      %p406 = scmp.ne.s32.totalorder %s397, %s398
      %p407 = scmp.eq.s32.totalorder %s41, 0
      %p408 = por %p406, %p407
      %p409 = scmp.ne.s32.totalorder %s397, %s398
      %p410 = scmp.eq.s32.totalorder %s42, 1
      %p411 = por %p409, %p410
      %p413 = scmp.ne.s32.totalorder %s398, %s412
      %p414 = scmp.eq.s32.totalorder %s42, 0
      %p415 = por %p413, %p414
      %s417 = sadd.s32 %s416, 1
      %p420 = scmp.eq.s32.totalorder %s36, 1
      %p421 = scmp.ne.s32.totalorder %s416, %s418
      %p422 = scmp.eq.s32.totalorder %s36, 0
      %p423 = por %p421, %p422
      %p424 = scmp.ne.s32.totalorder %s416, %s418
      %p425 = scmp.eq.s32.totalorder %s41, 1
      %p426 = por %p424, %p425
      %p427 = scmp.ne.s32.totalorder %s418, %s419
      %p428 = scmp.eq.s32.totalorder %s41, 0
      %p429 = por %p427, %p428
      %p430 = scmp.ne.s32.totalorder %s418, %s419
      %p431 = scmp.eq.s32.totalorder %s42, 1
      %p432 = por %p430, %p431
      %p434 = scmp.ne.s32.totalorder %s419, %s433
      %p435 = scmp.eq.s32.totalorder %s42, 0
      %p436 = por %p434, %p435
      %s438 = sadd.s32 %s437, 1
      %p441 = scmp.eq.s32.totalorder %s36, 1
      %p442 = scmp.ne.s32.totalorder %s437, %s439
      %p443 = scmp.eq.s32.totalorder %s36, 0
      %p444 = por %p442, %p443
      %p445 = scmp.ne.s32.totalorder %s437, %s439
      %p446 = scmp.eq.s32.totalorder %s41, 1
      %p447 = por %p445, %p446
      %p448 = scmp.ne.s32.totalorder %s439, %s440
      %p449 = scmp.eq.s32.totalorder %s41, 0
      %p450 = por %p448, %p449
      %p451 = scmp.ne.s32.totalorder %s439, %s440
      %p452 = scmp.eq.s32.totalorder %s42, 1
      %p453 = por %p451, %p452
      %p455 = scmp.ne.s32.totalorder %s440, %s454
      %p456 = scmp.eq.s32.totalorder %s42, 0
      %p457 = por %p455, %p456
      %s459 = sadd.s32 %s458, 1
      %p462 = scmp.eq.s32.totalorder %s36, 1
      %p463 = scmp.ne.s32.totalorder %s458, %s460
      %p464 = scmp.eq.s32.totalorder %s36, 0
      %p465 = por %p463, %p464
      %p466 = scmp.ne.s32.totalorder %s458, %s460
      %p467 = scmp.eq.s32.totalorder %s41, 1
      %p468 = por %p466, %p467
      %p469 = scmp.ne.s32.totalorder %s460, %s461
      %p470 = scmp.eq.s32.totalorder %s41, 0
      %p471 = por %p469, %p470
      %p472 = scmp.ne.s32.totalorder %s460, %s461
      %p473 = scmp.eq.s32.totalorder %s42, 1
      %p474 = por %p472, %p473
      %p476 = scmp.ne.s32.totalorder %s461, %s475
      %p477 = scmp.eq.s32.totalorder %s42, 0
      %p478 = por %p476, %p477
      %s480 = sadd.s32 %s479, 1
      %p483 = scmp.eq.s32.totalorder %s36, 1
      %p484 = scmp.ne.s32.totalorder %s479, %s481
      %p485 = scmp.eq.s32.totalorder %s36, 0
      %p486 = por %p484, %p485
      %p487 = scmp.ne.s32.totalorder %s479, %s481
      %p488 = scmp.eq.s32.totalorder %s41, 1
      %p489 = por %p487, %p488
      %p490 = scmp.ne.s32.totalorder %s481, %s482
      %p491 = scmp.eq.s32.totalorder %s41, 0
      %p492 = por %p490, %p491
      %p493 = scmp.ne.s32.totalorder %s481, %s482
      %p494 = scmp.eq.s32.totalorder %s42, 1
      %p495 = por %p493, %p494
      %p497 = scmp.ne.s32.totalorder %s482, %s496
      %p498 = scmp.eq.s32.totalorder %s42, 0
      %p499 = por %p497, %p498
      %s501 = sadd.s32 %s500, 1
      %p504 = scmp.eq.s32.totalorder %s36, 1
      %p505 = scmp.ne.s32.totalorder %s500, %s502
      %p506 = scmp.eq.s32.totalorder %s36, 0
      %p507 = por %p505, %p506
      %p508 = scmp.ne.s32.totalorder %s500, %s502
      %p509 = scmp.eq.s32.totalorder %s41, 1
      %p510 = por %p508, %p509
      %p511 = scmp.ne.s32.totalorder %s502, %s503
      %p512 = scmp.eq.s32.totalorder %s41, 0
      %p513 = por %p511, %p512
      %p514 = scmp.ne.s32.totalorder %s502, %s503
      %p515 = scmp.eq.s32.totalorder %s42, 1
      %p516 = por %p514, %p515
      %p518 = scmp.ne.s32.totalorder %s503, %s517
      %p519 = scmp.eq.s32.totalorder %s42, 0
      %p520 = por %p518, %p519
      %s522 = sadd.s32 %s521, 1
      %p525 = scmp.eq.s32.totalorder %s36, 1
      %p526 = scmp.ne.s32.totalorder %s521, %s523
      %p527 = scmp.eq.s32.totalorder %s36, 0
      %p528 = por %p526, %p527
      %p529 = scmp.ne.s32.totalorder %s521, %s523
      %p530 = scmp.eq.s32.totalorder %s41, 1
      %p531 = por %p529, %p530
      %p532 = scmp.ne.s32.totalorder %s523, %s524
      %p533 = scmp.eq.s32.totalorder %s41, 0
      %p534 = por %p532, %p533
      %p535 = scmp.ne.s32.totalorder %s523, %s524
      %p536 = scmp.eq.s32.totalorder %s42, 1
      %p537 = por %p535, %p536
      %p539 = scmp.ne.s32.totalorder %s524, %s538
      %p540 = scmp.eq.s32.totalorder %s42, 0
      %p541 = por %p539, %p540
      %s543 = sadd.s32 %s542, 1
      %p546 = scmp.eq.s32.totalorder %s36, 1
      %p547 = scmp.ne.s32.totalorder %s542, %s544
      %p548 = scmp.eq.s32.totalorder %s36, 0
      %p549 = por %p547, %p548
      %p550 = scmp.ne.s32.totalorder %s542, %s544
      %p551 = scmp.eq.s32.totalorder %s41, 1
      %p552 = por %p550, %p551
      %p553 = scmp.ne.s32.totalorder %s544, %s545
      %p554 = scmp.eq.s32.totalorder %s41, 0
      %p555 = por %p553, %p554
      %p556 = scmp.ne.s32.totalorder %s544, %s545
      %p557 = scmp.eq.s32.totalorder %s42, 1
      %p558 = por %p556, %p557
      %p560 = scmp.ne.s32.totalorder %s545, %s559
      %p561 = scmp.eq.s32.totalorder %s42, 0
      %p562 = por %p560, %p561
      %s564 = sadd.s32 %s563, 1
      %p567 = scmp.eq.s32.totalorder %s36, 1
      %p568 = scmp.ne.s32.totalorder %s563, %s565
      %p569 = scmp.eq.s32.totalorder %s36, 0
      %p570 = por %p568, %p569
      %p571 = scmp.ne.s32.totalorder %s563, %s565
      %p572 = scmp.eq.s32.totalorder %s41, 1
      %p573 = por %p571, %p572
      %p574 = scmp.ne.s32.totalorder %s565, %s566
      %p575 = scmp.eq.s32.totalorder %s41, 0
      %p576 = por %p574, %p575
      %p577 = scmp.ne.s32.totalorder %s565, %s566
      %p578 = scmp.eq.s32.totalorder %s42, 1
      %p579 = por %p577, %p578
      %p581 = scmp.ne.s32.totalorder %s566, %s580
      %p582 = scmp.eq.s32.totalorder %s42, 0
      %p583 = por %p581, %p582
      %s584 = ssub.s32 %s36, %s43
      %p585 = scmp.eq.s32.totalorder %s584, 0
      %s587 = sadd.s32 %s586, 1
      %s588 = scalar_select %p585, %s586, %s587
      %p591 = pneg %p585
      %p592 = scmp.eq.s32.totalorder %s36, 1
      %p593 = por %p591, %p592
      %p594 = scmp.ne.s32.totalorder %s586, %s589
      %p595 = scmp.eq.s32.totalorder %s36, 0
      %p596 = por %p594, %p595
      %p597 = scmp.ne.s32.totalorder %s586, %s589
      %p598 = scmp.eq.s32.totalorder %s41, 1
      %p599 = por %p597, %p598
      %p600 = scmp.ne.s32.totalorder %s589, %s590
      %p601 = scmp.eq.s32.totalorder %s41, 0
      %p602 = por %p600, %p601
      %p603 = scmp.ne.s32.totalorder %s589, %s590
      %p604 = scmp.eq.s32.totalorder %s42, 1
      %p605 = por %p603, %p604
      %p607 = scmp.ne.s32.totalorder %s590, %s606
      %p608 = scmp.eq.s32.totalorder %s42, 0
      %p609 = por %p607, %p608
      %s610 = ssub.s32 %s36, %s43
      %p611 = scmp.eq.s32.totalorder %s610, 0
      %s613 = sadd.s32 %s612, 1
      %s614 = scalar_select %p611, %s612, %s613
      %p617 = pneg %p611
      %p618 = scmp.eq.s32.totalorder %s36, 1
      %p619 = por %p617, %p618
      %p620 = scmp.ne.s32.totalorder %s612, %s615
      %p621 = scmp.eq.s32.totalorder %s36, 0
      %p622 = por %p620, %p621
      %p623 = scmp.ne.s32.totalorder %s612, %s615
      %p624 = scmp.eq.s32.totalorder %s41, 1
      %p625 = por %p623, %p624
      %p626 = scmp.ne.s32.totalorder %s615, %s616
      %p627 = scmp.eq.s32.totalorder %s41, 0
      %p628 = por %p626, %p627
      %p629 = scmp.ne.s32.totalorder %s615, %s616
      %p630 = scmp.eq.s32.totalorder %s42, 1
      %p631 = por %p629, %p630
      %p633 = scmp.ne.s32.totalorder %s616, %s632
      %p634 = scmp.eq.s32.totalorder %s42, 0
      %p635 = por %p633, %p634
      %p636 = scmp.le.s32.totalorder 1, %s36
      %p637 = scmp.lt.s32.totalorder %s36, 3
      %p638 = pnand %p636, %p637
      %p639 = pneg %p638
      // Predicated region
      $region9: #{cvae_forward.1} parent=5 // pred_check
        _
      $region10: #{cvae_forward.1} parent=5 // pred_check_branch
        %641 = sbr.rel (%p638) target = $region12
      $region11: #{cvae_forward.1} parent=5 // pred_region
        %s642 = ssub.s32 %s36, 1
        // Predicated region
        $region13: #{cvae_forward.1} parent=11 // pred_check
          %p643 = pneg %p135
        $region14: #{cvae_forward.1} parent=11 // pred_check_branch
          %645 = sbr.rel (%p643) target = $region16
        $region15: #{cvae_forward.1} parent=11 // pred_region
          _
        $region16: #{cvae_forward.1} parent=11 // pred_fallthru
          _
        // Predicated region
        $region17: #{cvae_forward.1} parent=11 // pred_check
          %p646 = pneg %p156
        $region18: #{cvae_forward.1} parent=11 // pred_check_branch
          %648 = sbr.rel (%p646) target = $region20
        $region19: #{cvae_forward.1} parent=11 // pred_region
          _
        $region20: #{cvae_forward.1} parent=11 // pred_fallthru
          _
        // Predicated region
        $region21: #{cvae_forward.1} parent=11 // pred_check
          %p649 = pneg %p177
        $region22: #{cvae_forward.1} parent=11 // pred_check_branch
          %651 = sbr.rel (%p649) target = $region24
        $region23: #{cvae_forward.1} parent=11 // pred_region
          _
        $region24: #{cvae_forward.1} parent=11 // pred_fallthru
          _
        // Predicated region
        $region25: #{cvae_forward.1} parent=11 // pred_check
          %p652 = pneg %p198
        $region26: #{cvae_forward.1} parent=11 // pred_check_branch
          %654 = sbr.rel (%p652) target = $region28
        $region27: #{cvae_forward.1} parent=11 // pred_region
          _
        $region28: #{cvae_forward.1} parent=11 // pred_fallthru
          _
        // Predicated region
        $region29: #{cvae_forward.1} parent=11 // pred_check
          %p655 = pneg %p219
        $region30: #{cvae_forward.1} parent=11 // pred_check_branch
          %657 = sbr.rel (%p655) target = $region32
        $region31: #{cvae_forward.1} parent=11 // pred_region
          _
        $region32: #{cvae_forward.1} parent=11 // pred_fallthru
          _
        // Predicated region
        $region33: #{cvae_forward.1} parent=11 // pred_check
          %p658 = pneg %p240
        $region34: #{cvae_forward.1} parent=11 // pred_check_branch
          %660 = sbr.rel (%p658) target = $region36
        $region35: #{cvae_forward.1} parent=11 // pred_region
          _
        $region36: #{cvae_forward.1} parent=11 // pred_fallthru
          _
        // Predicated region
        $region37: #{cvae_forward.1} parent=11 // pred_check
          %p661 = pneg %p261
        $region38: #{cvae_forward.1} parent=11 // pred_check_branch
          %663 = sbr.rel (%p661) target = $region40
        $region39: #{cvae_forward.1} parent=11 // pred_region
          _
        $region40: #{cvae_forward.1} parent=11 // pred_fallthru
          _
        // Predicated region
        $region41: #{cvae_forward.1} parent=11 // pred_check
          %p664 = pneg %p282
        $region42: #{cvae_forward.1} parent=11 // pred_check_branch
          %666 = sbr.rel (%p664) target = $region44
        $region43: #{cvae_forward.1} parent=11 // pred_region
          _
        $region44: #{cvae_forward.1} parent=11 // pred_fallthru
          _
        // Predicated region
        $region45: #{cvae_forward.1} parent=11 // pred_check
          %p667 = pneg %p303
        $region46: #{cvae_forward.1} parent=11 // pred_check_branch
          %669 = sbr.rel (%p667) target = $region48
        $region47: #{cvae_forward.1} parent=11 // pred_region
          _
        $region48: #{cvae_forward.1} parent=11 // pred_fallthru
          _
        // Predicated region
        $region49: #{cvae_forward.1} parent=11 // pred_check
          %p670 = pneg %p324
        $region50: #{cvae_forward.1} parent=11 // pred_check_branch
          %672 = sbr.rel (%p670) target = $region52
        $region51: #{cvae_forward.1} parent=11 // pred_region
          _
        $region52: #{cvae_forward.1} parent=11 // pred_fallthru
          _
        // Predicated region
        $region53: #{cvae_forward.1} parent=11 // pred_check
          %p673 = pneg %p345
        $region54: #{cvae_forward.1} parent=11 // pred_check_branch
          %675 = sbr.rel (%p673) target = $region56
        $region55: #{cvae_forward.1} parent=11 // pred_region
          _
        $region56: #{cvae_forward.1} parent=11 // pred_fallthru
          _
        // Predicated region
        $region57: #{cvae_forward.1} parent=11 // pred_check
          %p676 = pneg %p366
        $region58: #{cvae_forward.1} parent=11 // pred_check_branch
          %678 = sbr.rel (%p676) target = $region60
        $region59: #{cvae_forward.1} parent=11 // pred_region
          _
        $region60: #{cvae_forward.1} parent=11 // pred_fallthru
          _
        // Predicated region
        $region61: #{cvae_forward.1} parent=11 // pred_check
          %p679 = pneg %p387
        $region62: #{cvae_forward.1} parent=11 // pred_check_branch
          %681 = sbr.rel (%p679) target = $region64
        $region63: #{cvae_forward.1} parent=11 // pred_region
          _
        $region64: #{cvae_forward.1} parent=11 // pred_fallthru
          _
        // Predicated region
        $region65: #{cvae_forward.1} parent=11 // pred_check
          %p682 = pneg %p408
        $region66: #{cvae_forward.1} parent=11 // pred_check_branch
          %684 = sbr.rel (%p682) target = $region68
        $region67: #{cvae_forward.1} parent=11 // pred_region
          _
        $region68: #{cvae_forward.1} parent=11 // pred_fallthru
          _
        // Predicated region
        $region69: #{cvae_forward.1} parent=11 // pred_check
          %p685 = pneg %p429
        $region70: #{cvae_forward.1} parent=11 // pred_check_branch
          %687 = sbr.rel (%p685) target = $region72
        $region71: #{cvae_forward.1} parent=11 // pred_region
          _
        $region72: #{cvae_forward.1} parent=11 // pred_fallthru
          _
        // Predicated region
        $region73: #{cvae_forward.1} parent=11 // pred_check
          %p688 = pneg %p450
        $region74: #{cvae_forward.1} parent=11 // pred_check_branch
          %690 = sbr.rel (%p688) target = $region76
        $region75: #{cvae_forward.1} parent=11 // pred_region
          _
        $region76: #{cvae_forward.1} parent=11 // pred_fallthru
          _
        // Predicated region
        $region77: #{cvae_forward.1} parent=11 // pred_check
          %p691 = pneg %p471
        $region78: #{cvae_forward.1} parent=11 // pred_check_branch
          %693 = sbr.rel (%p691) target = $region80
        $region79: #{cvae_forward.1} parent=11 // pred_region
          _
        $region80: #{cvae_forward.1} parent=11 // pred_fallthru
          _
        // Predicated region
        $region81: #{cvae_forward.1} parent=11 // pred_check
          %p694 = pneg %p492
        $region82: #{cvae_forward.1} parent=11 // pred_check_branch
          %696 = sbr.rel (%p694) target = $region84
        $region83: #{cvae_forward.1} parent=11 // pred_region
          _
        $region84: #{cvae_forward.1} parent=11 // pred_fallthru
          _
        // Predicated region
        $region85: #{cvae_forward.1} parent=11 // pred_check
          %p697 = pneg %p513
        $region86: #{cvae_forward.1} parent=11 // pred_check_branch
          %699 = sbr.rel (%p697) target = $region88
        $region87: #{cvae_forward.1} parent=11 // pred_region
          _
        $region88: #{cvae_forward.1} parent=11 // pred_fallthru
          _
        // Predicated region
        $region89: #{cvae_forward.1} parent=11 // pred_check
          %p700 = pneg %p534
        $region90: #{cvae_forward.1} parent=11 // pred_check_branch
          %702 = sbr.rel (%p700) target = $region92
        $region91: #{cvae_forward.1} parent=11 // pred_region
          _
        $region92: #{cvae_forward.1} parent=11 // pred_fallthru
          _
        // Predicated region
        $region93: #{cvae_forward.1} parent=11 // pred_check
          %p703 = pneg %p555
        $region94: #{cvae_forward.1} parent=11 // pred_check_branch
          %705 = sbr.rel (%p703) target = $region96
        $region95: #{cvae_forward.1} parent=11 // pred_region
          _
        $region96: #{cvae_forward.1} parent=11 // pred_fallthru
          _
        // Predicated region
        $region97: #{cvae_forward.1} parent=11 // pred_check
          %p706 = pneg %p576
        $region98: #{cvae_forward.1} parent=11 // pred_check_branch
          %708 = sbr.rel (%p706) target = $region100
        $region99: #{cvae_forward.1} parent=11 // pred_region
          _
        $region100: #{cvae_forward.1} parent=11 // pred_fallthru
          _
      $region12: #{cvae_forward.1} parent=5 // pred_fallthru
        _
      %p709 = scmp.lt.s32.totalorder %s36, 2
      // Predicated region
      $region101: #{cvae_forward.1} parent=5 // pred_check
        %p710 = pneg %p709
      $region102: #{cvae_forward.1} parent=5 // pred_check_branch
        %712 = sbr.rel (%p710) target = $region104
      $region103: #{cvae_forward.1} parent=5 // pred_region
        // Predicated region
        $region105: #{cvae_forward.1} parent=103 // pred_check
          %p713 = pneg %p56
        $region106: #{cvae_forward.1} parent=103 // pred_check_branch
          %715 = sbr.rel (%p713) target = $region108
        $region107: #{cvae_forward.1} parent=103 // pred_region
          %p716 = scmp.lt.s32.totalorder %s36, 1
          %s717 = scalar_select %p716, %s36, 1
          %s718 = smul.addr %s717, 8
          %s719 = scalar_lea.vmem %s0, %s718
        $region108: #{cvae_forward.1} parent=103 // pred_fallthru
          _
        // Predicated region
        $region109: #{cvae_forward.1} parent=103 // pred_check
          %p720 = pneg %p82
        $region110: #{cvae_forward.1} parent=103 // pred_check_branch
          %722 = sbr.rel (%p720) target = $region112
        $region111: #{cvae_forward.1} parent=103 // pred_region
          %p723 = scmp.lt.s32.totalorder %s36, 1
          %s724 = scalar_select %p723, %s36, 1
          %s725 = smul.addr %s724, 8
          %s726 = scalar_lea.vmem %s1, %s725
        $region112: #{cvae_forward.1} parent=103 // pred_fallthru
          _
        // Predicated region
        $region113: #{cvae_forward.1} parent=103 // pred_check
          %p727 = pneg %p108
        $region114: #{cvae_forward.1} parent=103 // pred_check_branch
          %729 = sbr.rel (%p727) target = $region116
        $region115: #{cvae_forward.1} parent=103 // pred_region
          %p730 = scmp.lt.s32.totalorder %s36, 1
          %s731 = scalar_select %p730, %s36, 1
          %s732 = smul.addr %s731, 8
          %s733 = scalar_lea.vmem %s2, %s732
        $region116: #{cvae_forward.1} parent=103 // pred_fallthru
          _
      $region104: #{cvae_forward.1} parent=5 // pred_fallthru
        _
      %p734 = scmp.le.s32.totalorder 1, %s36
      %p735 = scmp.lt.s32.totalorder %s36, 3
      %p736 = pnand %p734, %p735
      %p737 = pneg %p736
      // Predicated region
      $region117: #{cvae_forward.1} parent=5 // pred_check
        _
      $region118: #{cvae_forward.1} parent=5 // pred_check_branch
        %739 = sbr.rel (%p736) target = $region120
      $region119: #{cvae_forward.1} parent=5 // pred_region
        %s740 = ssub.s32 %s36, 1
        %p741 = scmp.lt.s32.totalorder %s41, 1
        %s742 = scalar_select %p741, %s41, 1
        %s743 = smul.addr %s742, 8
        %s744 = scalar_lea.vmem %s0, %s743
        %p745 = pneg %p62
        %p746 = pneg %p59
        %p747 = scmp.lt.s32.totalorder %s41, 1
        %s748 = scalar_select %p747, %s41, 1
        %s749 = smul.addr %s748, 8
        %s750 = scalar_lea.vmem %s1, %s749
        %p751 = pneg %p88
        %p752 = pneg %p85
        %p753 = scmp.lt.s32.totalorder %s41, 1
        %s754 = scalar_select %p753, %s41, 1
        %s755 = smul.addr %s754, 8
        %s756 = scalar_lea.vmem %s2, %s755
        %p757 = pneg %p114
        %p758 = pneg %p111
        %p759 = pneg %p135
        %p760 = pneg %p132
        %p761 = pneg %p156
        %p762 = pneg %p153
        %p763 = pneg %p177
        %p764 = pneg %p174
        %p765 = pneg %p198
        %p766 = pneg %p195
        %p767 = pneg %p219
        %p768 = pneg %p216
        %p769 = pneg %p240
        %p770 = pneg %p237
        %p771 = pneg %p261
        %p772 = pneg %p258
        %p773 = pneg %p282
        %p774 = pneg %p279
        %p775 = pneg %p303
        %p776 = pneg %p300
        %p777 = pneg %p324
        %p778 = pneg %p321
        %p779 = pneg %p345
        %p780 = pneg %p342
        %p781 = pneg %p366
        %p782 = pneg %p363
        %p783 = pneg %p387
        %p784 = pneg %p384
        %p785 = pneg %p408
        %p786 = pneg %p405
        %p787 = pneg %p429
        %p788 = pneg %p426
        %p789 = pneg %p450
        %p790 = pneg %p447
        %p791 = pneg %p471
        %p792 = pneg %p468
        %p793 = pneg %p492
        %p794 = pneg %p489
        %p795 = pneg %p513
        %p796 = pneg %p510
        %p797 = pneg %p534
        %p798 = pneg %p531
        %p799 = pneg %p555
        %p800 = pneg %p552
        %p801 = pneg %p576
        %p802 = pneg %p573
        %p803 = pneg %p602
        %p804 = pneg %p599
        %s805 = sand.u32 %s589, 1
        %s806 = scalar_lea.sflag [#allocation3], %s805
        %s807 = sand.u32 %s589, 1
        %s808 = smul.addr %s807, 8
        %s809 = scalar_lea.vmem [#allocation2], %s808
        %p810 = pneg %p628
        %p811 = pneg %p625
        %p812 = scmp.lt.s32.totalorder %s41, 1
        %s813 = scalar_select %p812, %s41, 1
        %s814 = smul.addr %s813, 8
        %s815 = scalar_lea.vmem %s26, %s814
        %p816 = scmp.lt.s32.totalorder %s41, 1
        %s817 = scalar_select %p816, %s41, 1
        %s818 = smul.addr %s817, 8
        %s819 = scalar_lea.vmem %s0, %s818
        %p820 = scmp.lt.s32.totalorder %s41, 1
        %s821 = scalar_select %p820, %s41, 1
        %s822 = smul.addr %s821, 8
        %s823 = scalar_lea.vmem %s1, %s822
        %p824 = scmp.lt.s32.totalorder %s41, 1
        %s825 = scalar_select %p824, %s41, 1
        %s826 = smul.addr %s825, 8
        %s827 = scalar_lea.vmem %s2, %s826
        %p828 = scmp.lt.s32.totalorder %s41, 1
        %s829 = scalar_select %p828, %s41, 1
        %s830 = smul.addr %s829, 8
        %s831 = scalar_lea.vmem %s26, %s830
        %v833 = vld [vmem:[%s819] sm:$0xff]
        %v834 = vld [vmem:[%s823] sm:$0xff]
        %v835 = vld [vmem:[%s827] sm:$0xff]
        %v836 = vpack.c.bf16 %v833, %v833
        %v837 = vld [vmem:[%s4] sm:$0xf]
        %v838 = vld [vmem:[%s4 + $0x4] sm:$0xf]
        %v839 = vld [vmem:[%s5] sm:$0x1]
        %v841 = vlaneseq
        %v842 = vshrl.u32 %v841, 7
        %v843 = vsub.s32 0, %v842
        %v844 = vrot.slane %v839, %v843
        %v848 = vunpack.c.l.b16 %v837
        %v849 = vunpack.c.l.b16 %v838
        %v850 = vpack.c.b16 %v849, %v848
        %vm852 = vcmask 130048
        %v854 = vsel %vm852, %v836, 0
        %856 = vmatprep.subr.bf16.mxu0 0
        %857 = vmatpush1.bf16.msra.mxu0 %v850
        %858 = vmatprep.subr.bf16.mxu0 0
        %859 = vmatpush1.bf16.msra.mxu0 0
        %860 = vmatprep.subr.bf16.mxu0 0
        %861 = vmatpush1.bf16.msra.mxu0 0
        %862 = vmatprep.subr.bf16.mxu0 0
        %863 = vmatpush1.bf16.msra.mxu0 0
        %864 = vmatprep.subr.bf16.mxu0 0
        %865 = vmatpush1.bf16.msra.mxu0 0
        %866 = vmatprep.subr.bf16.mxu0 0
        %867 = vmatpush1.bf16.msra.mxu0 0
        %868 = vmatprep.subr.bf16.mxu0 0
        %869 = vmatpush1.bf16.msra.mxu0 0
        %870 = vmatprep.subr.bf16.mxu0 0
        %871 = vmatpush1.bf16.msra.mxu0 0
        %872 = vmatprep.subr.bf16.mxu0 0
        %873 = vmatpush1.bf16.msra.mxu0 0
        %874 = vmatprep.subr.bf16.mxu0 0
        %875 = vmatpush1.bf16.msra.mxu0 0
        %876 = vmatprep.subr.bf16.mxu0 0
        %877 = vmatpush1.bf16.msra.mxu0 0
        %878 = vmatprep.subr.bf16.mxu0 0
        %879 = vmatpush1.bf16.msra.mxu0 0
        %880 = vmatprep.subr.bf16.mxu0 0
        %881 = vmatpush1.bf16.msra.mxu0 0
        %882 = vmatprep.subr.bf16.mxu0 0
        %883 = vmatpush1.bf16.msra.mxu0 0
        %884 = vmatprep.subr.bf16.mxu0 0
        %885 = vmatpush1.bf16.msra.mxu0 0
        %886 = vmatprep.subr.bf16.mxu0 0
        %887 = vmatpush1.bf16.msra.mxu0 0
        %888 = vmatprep.mubr.bf16.mxu0 0
        %889 = vmatmul.mubr.bf16.gmra.mrb[0].mxu0 %v854
        %v890 = vpop.f32.mrb[0].mxu0
        %v891 = vadd.f32 %v844, %v890
        %v892 = vpop.f32.mrb[0].mxu0
        %v893 = vpop.f32.mrb[0].mxu0
        %v894 = vpop.f32.mrb[0].mxu0
        %895 = vdwg.mxu0
        %v896 = vpack.c.bf16 %v891, %v891
        %v897 = vld [vmem:[%s6] sm:$0xf]
        %v898 = vld [vmem:[%s6 + $0x4] sm:$0xf]
        %v899 = vld [vmem:[%s6 + $0x8] sm:$0xf]
        %v900 = vld [vmem:[%s6 + $0xc] sm:$0xf]
        %v901 = vld [vmem:[%s7] sm:$0x1]
        %v903 = vlaneseq
        %v904 = vshrl.u32 %v903, 7
        %v905 = vsub.s32 0, %v904
        %v906 = vrot.slane %v901, %v905
        %v912 = vunpack.c.l.b16 %v897
        %v913 = vunpack.c.l.b16 %v898
        %v914 = vunpack.c.l.b16 %v899
        %v915 = vunpack.c.l.b16 %v900
        %v916 = vpack.c.b16 %v913, %v912
        %v917 = vpack.c.b16 %v915, %v914
        %vm920 = vcmask 261120
        %v922 = vsel %vm920, %v896, 0
        %924 = vmatprep.subr.bf16.mxu0 0
        %925 = vmatpush1.bf16.msra.mxu0 %v916
        %926 = vmatprep.subr.bf16.mxu0 0
        %927 = vmatpush1.bf16.msra.mxu0 %v917
        %928 = vmatprep.subr.bf16.mxu0 0
        %929 = vmatpush1.bf16.msra.mxu0 0
        %930 = vmatprep.subr.bf16.mxu0 0
        %931 = vmatpush1.bf16.msra.mxu0 0
        %932 = vmatprep.subr.bf16.mxu0 0
        %933 = vmatpush1.bf16.msra.mxu0 0
        %934 = vmatprep.subr.bf16.mxu0 0
        %935 = vmatpush1.bf16.msra.mxu0 0
        %936 = vmatprep.subr.bf16.mxu0 0
        %937 = vmatpush1.bf16.msra.mxu0 0
        %938 = vmatprep.subr.bf16.mxu0 0
        %939 = vmatpush1.bf16.msra.mxu0 0
        %940 = vmatprep.subr.bf16.mxu0 0
        %941 = vmatpush1.bf16.msra.mxu0 0
        %942 = vmatprep.subr.bf16.mxu0 0
        %943 = vmatpush1.bf16.msra.mxu0 0
        %944 = vmatprep.subr.bf16.mxu0 0
        %945 = vmatpush1.bf16.msra.mxu0 0
        %946 = vmatprep.subr.bf16.mxu0 0
        %947 = vmatpush1.bf16.msra.mxu0 0
        %948 = vmatprep.subr.bf16.mxu0 0
        %949 = vmatpush1.bf16.msra.mxu0 0
        %950 = vmatprep.subr.bf16.mxu0 0
        %951 = vmatpush1.bf16.msra.mxu0 0
        %952 = vmatprep.subr.bf16.mxu0 0
        %953 = vmatpush1.bf16.msra.mxu0 0
        %954 = vmatprep.subr.bf16.mxu0 0
        %955 = vmatpush1.bf16.msra.mxu0 0
        %956 = vmatprep.mubr.bf16.mxu0 0
        %957 = vmatmul.mubr.bf16.gmra.mrb[0].mxu0 %v922
        %v958 = vpop.f32.mrb[0].mxu0
        %v959 = vadd.f32 %v906, %v958
        %v960 = vpop.f32.mrb[0].mxu0
        %v961 = vpop.f32.mrb[0].mxu0
        %v962 = vpop.f32.mrb[0].mxu0
        %963 = vdwg.mxu0
        %v964 = vld [vmem:[%s3] sm:$0x1]
        %v965 = vld [vmem:[%s3 + $0x1] sm:$0x1]
        %v966 = vld [vmem:[%s3 + $0x2] sm:$0x1]
        %v967 = vld [vmem:[%s3 + $0x3] sm:$0x1]
        %v968 = vld [vmem:[%s3 + $0x4] sm:$0x1]
        %v969 = vld [vmem:[%s3 + $0x5] sm:$0x1]
        %v970 = vld [vmem:[%s3 + $0x6] sm:$0x1]
        %v971 = vld [vmem:[%s3 + $0x7] sm:$0x1]
        %v980 = vlaneseq
        %v981 = vshrl.u32 %v980, 7
        %v982 = vsub.s32 0, %v981
        %v983 = vrot.slane %v964, %v982
        %v984 = vlaneseq
        %v985 = vshrl.u32 %v984, 7
        %v986 = vsub.s32 0, %v985
        %v987 = vrot.slane %v965, %v986
        %v988 = vlaneseq
        %v989 = vshrl.u32 %v988, 7
        %v990 = vsub.s32 0, %v989
        %v991 = vrot.slane %v966, %v990
        %v992 = vlaneseq
        %v993 = vshrl.u32 %v992, 7
        %v994 = vsub.s32 0, %v993
        %v995 = vrot.slane %v967, %v994
        %v996 = vlaneseq
        %v997 = vshrl.u32 %v996, 7
        %v998 = vsub.s32 0, %v997
        %v999 = vrot.slane %v968, %v998
        %v1000 = vlaneseq
        %v1001 = vshrl.u32 %v1000, 7
        %v1002 = vsub.s32 0, %v1001
        %v1003 = vrot.slane %v969, %v1002
        %v1004 = vlaneseq
        %v1005 = vshrl.u32 %v1004, 7
        %v1006 = vsub.s32 0, %v1005
        %v1007 = vrot.slane %v970, %v1006
        %v1008 = vlaneseq
        %v1009 = vshrl.u32 %v1008, 7
        %v1010 = vsub.s32 0, %v1009
        %v1011 = vrot.slane %v971, %v1010
        %v1020 = vmul.f32 %v959, %v983
        %v1021 = vmul.f32 %v959, %v987
        %v1022 = vmul.f32 %v959, %v991
        %v1023 = vmul.f32 %v959, %v995
        %v1024 = vmul.f32 %v959, %v999
        %v1025 = vmul.f32 %v959, %v1003
        %v1026 = vmul.f32 %v959, %v1007
        %v1027 = vmul.f32 %v959, %v1011
        %1029 = vrot.lane.b32.xlu0 %v959, 96
        %v1030 = vpop.permute.xlu0 %1029
        %v1032 = vsel %vm920, %v1020, 0
        %v1035 = vsel %vm920, %v1021, 0
        %v1038 = vsel %vm920, %v1022, 0
        %v1041 = vsel %vm920, %v1023, 0
        %v1044 = vsel %vm920, %v1024, 0
        %v1047 = vsel %vm920, %v1025, 0
        %v1050 = vsel %vm920, %v1026, 0
        %v1053 = vsel %vm920, %v1027, 0
        %v1055 = vsel %vm920, %v1030, 0
        %1057 = vmatprep.subr.mxu0 0.0
        %1058 = vmatpush1.xpose.msra.mxu0 %v1055
        %1059 = vmatprep.subr.mxu0 0.0
        %1060 = vmatpush1.xpose.msra.mxu0 0.0
        %1061 = vmatprep.subr.mxu0 0.0
        %1062 = vmatpush1.xpose.msra.mxu0 0.0
        %1063 = vmatprep.subr.mxu0 0.0
        %1064 = vmatpush1.xpose.msra.mxu0 0.0
        %1065 = vmatprep.subr.mxu0 0.0
        %1066 = vmatpush1.xpose.msra.mxu0 0.0
        %1067 = vmatprep.subr.mxu0 0.0
        %1068 = vmatpush1.xpose.msra.mxu0 0.0
        %1069 = vmatprep.subr.mxu0 0.0
        %1070 = vmatpush1.xpose.msra.mxu0 0.0
        %1071 = vmatprep.subr.mxu0 0.0
        %1072 = vmatpush1.xpose.msra.mxu0 0.0
        %1073 = vmatprep.subr.mxu0 0.0
        %1074 = vmatpush1.xpose.msra.mxu0 0.0
        %1075 = vmatprep.subr.mxu0 0.0
        %1076 = vmatpush1.xpose.msra.mxu0 0.0
        %1077 = vmatprep.subr.mxu0 0.0
        %1078 = vmatpush1.xpose.msra.mxu0 0.0
        %1079 = vmatprep.subr.mxu0 0.0
        %1080 = vmatpush1.xpose.msra.mxu0 0.0
        %1081 = vmatprep.subr.mxu0 0.0
        %1082 = vmatpush1.xpose.msra.mxu0 0.0
        %1083 = vmatprep.subr.mxu0 0.0
        %1084 = vmatpush1.xpose.msra.mxu0 0.0
        %1085 = vmatprep.subr.mxu0 0.0
        %1086 = vmatpush1.xpose.msra.mxu0 0.0
        %1087 = vmatprep.subr.mxu0 0.0
        %1088 = vmatpush1.xpose.msra.mxu0 0.0
        %1089 = vmatprep.subr.mxu0 0.0
        %1090 = vmatpush1.xpose.msra.mxu0 0.0
        %1091 = vmatprep.subr.mxu0 0.0
        %1092 = vmatpush1.xpose.msra.mxu0 0.0
        %1093 = vmatprep.subr.mxu0 0.0
        %1094 = vmatpush1.xpose.msra.mxu0 0.0
        %1095 = vmatprep.subr.mxu0 0.0
        %1096 = vmatpush1.xpose.msra.mxu0 0.0
        %1097 = vmatprep.subr.mxu0 0.0
        %1098 = vmatpush1.xpose.msra.mxu0 0.0
        %1099 = vmatprep.subr.mxu0 0.0
        %1100 = vmatpush1.xpose.msra.mxu0 0.0
        %1101 = vmatprep.subr.mxu0 0.0
        %1102 = vmatpush1.xpose.msra.mxu0 0.0
        %1103 = vmatprep.subr.mxu0 0.0
        %1104 = vmatpush1.xpose.msra.mxu0 0.0
        %1105 = vmatprep.subr.mxu0 0.0
        %1106 = vmatpush1.xpose.msra.mxu0 0.0
        %1107 = vmatprep.subr.mxu0 0.0
        %1108 = vmatpush1.xpose.msra.mxu0 0.0
        %1109 = vmatprep.subr.mxu0 0.0
        %1110 = vmatpush1.xpose.msra.mxu0 0.0
        %1111 = vmatprep.subr.mxu0 0.0
        %1112 = vmatpush1.xpose.msra.mxu0 0.0
        %1113 = vmatprep.subr.mxu0 0.0
        %1114 = vmatpush1.xpose.msra.mxu0 0.0
        %1115 = vmatprep.subr.mxu0 0.0
        %1116 = vmatpush1.xpose.msra.mxu0 0.0
        %1117 = vmatprep.subr.mxu0 0.0
        %1118 = vmatpush1.xpose.msra.mxu0 0.0
        %1119 = vmatprep.subr.mxu0 0.0
        %1120 = vmatpush1.xpose.msra.mxu0 0.0
        %1121 = vmatprep.mubr.f32.mxu0 0.0
        %1122 = vmatmul.mubr.f32.gmra.mrb[0].mxu0 %v1032
        %v1123 = vpop.f32.mrb[0].mxu0
        %v1124 = vadd.f32 0.0, %v1123
        %v1125 = vpop.f32.mrb[0].mxu0
        %1126 = vmatprep.mubr.f32.mxu0 0.0
        %1127 = vmatmul.mubr.f32.gmra.mrb[0].mxu0 %v1035
        %v1128 = vpop.f32.mrb[0].mxu0
        %v1129 = vadd.f32 0.0, %v1128
        %v1130 = vpop.f32.mrb[0].mxu0
        %1131 = vmatprep.mubr.f32.mxu0 0.0
        %1132 = vmatmul.mubr.f32.gmra.mrb[0].mxu0 %v1038
        %v1133 = vpop.f32.mrb[0].mxu0
        %v1134 = vadd.f32 0.0, %v1133
        %v1135 = vpop.f32.mrb[0].mxu0
        %1136 = vmatprep.mubr.f32.mxu0 0.0
        %1137 = vmatmul.mubr.f32.gmra.mrb[0].mxu0 %v1041
        %v1138 = vpop.f32.mrb[0].mxu0
        %v1139 = vadd.f32 0.0, %v1138
        %v1140 = vpop.f32.mrb[0].mxu0
        %1141 = vmatprep.mubr.f32.mxu0 0.0
        %1142 = vmatmul.mubr.f32.gmra.mrb[0].mxu0 %v1044
        %v1143 = vpop.f32.mrb[0].mxu0
        %v1144 = vadd.f32 0.0, %v1143
        %v1145 = vpop.f32.mrb[0].mxu0
        %1146 = vmatprep.mubr.f32.mxu0 0.0
        %1147 = vmatmul.mubr.f32.gmra.mrb[0].mxu0 %v1047
        %v1148 = vpop.f32.mrb[0].mxu0
        %v1149 = vadd.f32 0.0, %v1148
        %v1150 = vpop.f32.mrb[0].mxu0
        %1151 = vmatprep.mubr.f32.mxu0 0.0
        %1152 = vmatmul.mubr.f32.gmra.mrb[0].mxu0 %v1050
        %v1153 = vpop.f32.mrb[0].mxu0
        %v1154 = vadd.f32 0.0, %v1153
        %v1155 = vpop.f32.mrb[0].mxu0
        %1156 = vmatprep.mubr.f32.mxu0 0.0
        %1157 = vmatmul.mubr.f32.gmra.mrb[0].mxu0 %v1053
        %v1158 = vpop.f32.mrb[0].mxu0
        %v1159 = vadd.f32 0.0, %v1158
        %v1160 = vpop.f32.mrb[0].mxu0
        %1161 = vdwg.mxu0
        %vm1162 = vcmask 64512
        %v1163 = vsel %vm1162, %v1124, -inf
        %1164 = vmax.xlane.f32.xlu0 %v1163
        %v1165 = vpop.xlane.xlu0 %1164
        %v1166 = vsel %vm1162, %v1129, -inf
        %1167 = vmax.xlane.f32.xlu0 %v1166
        %v1168 = vpop.xlane.xlu0 %1167
        %v1169 = vsel %vm1162, %v1134, -inf
        %1170 = vmax.xlane.f32.xlu0 %v1169
        %v1171 = vpop.xlane.xlu0 %1170
        %v1172 = vsel %vm1162, %v1139, -inf
        %1173 = vmax.xlane.f32.xlu0 %v1172
        %v1174 = vpop.xlane.xlu0 %1173
        %v1175 = vsel %vm1162, %v1144, -inf
        %1176 = vmax.xlane.f32.xlu0 %v1175
        %v1177 = vpop.xlane.xlu0 %1176
        %v1178 = vsel %vm1162, %v1149, -inf
        %1179 = vmax.xlane.f32.xlu0 %v1178
        %v1180 = vpop.xlane.xlu0 %1179
        %v1181 = vsel %vm1162, %v1154, -inf
        %1182 = vmax.xlane.f32.xlu0 %v1181
        %v1183 = vpop.xlane.xlu0 %1182
        %v1184 = vsel %vm1162, %v1159, -inf
        %1185 = vmax.xlane.f32.xlu0 %v1184
        %v1186 = vpop.xlane.xlu0 %1185
        %v1187 = vsub.f32 %v1124, %v1165
        %v1188 = vsub.f32 %v1129, %v1168
        %v1189 = vsub.f32 %v1134, %v1171
        %v1190 = vsub.f32 %v1139, %v1174
        %v1191 = vsub.f32 %v1144, %v1177
        %v1192 = vsub.f32 %v1149, %v1180
        %v1193 = vsub.f32 %v1154, %v1183
        %v1194 = vsub.f32 %v1159, %v1186
        %v1195 = vmul.f32 %v1187, 1.442695
        %v1196 = vpow.pop %v1195
        %v1197 = vmul.f32 %v1188, 1.442695
        %v1198 = vpow.pop %v1197
        %v1199 = vmul.f32 %v1189, 1.442695
        %v1200 = vpow.pop %v1199
        %v1201 = vmul.f32 %v1190, 1.442695
        %v1202 = vpow.pop %v1201
        %v1203 = vmul.f32 %v1191, 1.442695
        %v1204 = vpow.pop %v1203
        %v1205 = vmul.f32 %v1192, 1.442695
        %v1206 = vpow.pop %v1205
        %v1207 = vmul.f32 %v1193, 1.442695
        %v1208 = vpow.pop %v1207
        %v1209 = vmul.f32 %v1194, 1.442695
        %v1210 = vpow.pop %v1209
        %v1211 = vsel %vm1162, %v1196, 0.0
        %1212 = vadd.xlane.f32.xlu0 %v1211
        %v1213 = vpop.xlane.xlu0 %1212
        %v1214 = vsel %vm1162, %v1198, 0.0
        %1215 = vadd.xlane.f32.xlu0 %v1214
        %v1216 = vpop.xlane.xlu0 %1215
        %v1217 = vsel %vm1162, %v1200, 0.0
        %1218 = vadd.xlane.f32.xlu0 %v1217
        %v1219 = vpop.xlane.xlu0 %1218
        %v1220 = vsel %vm1162, %v1202, 0.0
        %1221 = vadd.xlane.f32.xlu0 %v1220
        %v1222 = vpop.xlane.xlu0 %1221
        %v1223 = vsel %vm1162, %v1204, 0.0
        %1224 = vadd.xlane.f32.xlu0 %v1223
        %v1225 = vpop.xlane.xlu0 %1224
        %v1226 = vsel %vm1162, %v1206, 0.0
        %1227 = vadd.xlane.f32.xlu0 %v1226
        %v1228 = vpop.xlane.xlu0 %1227
        %v1229 = vsel %vm1162, %v1208, 0.0
        %1230 = vadd.xlane.f32.xlu0 %v1229
        %v1231 = vpop.xlane.xlu0 %1230
        %v1232 = vsel %vm1162, %v1210, 0.0
        %1233 = vadd.xlane.f32.xlu0 %v1232
        %v1234 = vpop.xlane.xlu0 %1233
        %v1235 = vrcp.pop %v1213
        %v1236 = vrcp.pop %v1216
        %v1237 = vrcp.pop %v1219
        %v1238 = vrcp.pop %v1222
        %v1239 = vrcp.pop %v1225
        %v1240 = vrcp.pop %v1228
        %v1241 = vrcp.pop %v1231
        %v1242 = vrcp.pop %v1234
        %v1243 = vmul.f32 %v1196, %v1235
        %v1244 = vmul.f32 %v1198, %v1236
        %v1245 = vmul.f32 %v1200, %v1237
        %v1246 = vmul.f32 %v1202, %v1238
        %v1247 = vmul.f32 %v1204, %v1239
        %v1248 = vmul.f32 %v1206, %v1240
        %v1249 = vmul.f32 %v1208, %v1241
        %v1250 = vmul.f32 %v1210, %v1242
        %1251 = vrot.lane.b32.xlu0 %v959, 64
        %v1252 = vpop.permute.xlu0 %1251
        %v1255 = vsel %vm1162, %v1243, 0
        %v1258 = vsel %vm1162, %v1244, 0
        %v1261 = vsel %vm1162, %v1245, 0
        %v1264 = vsel %vm1162, %v1246, 0
        %v1267 = vsel %vm1162, %v1247, 0
        %v1270 = vsel %vm1162, %v1248, 0
        %v1273 = vsel %vm1162, %v1249, 0
        %v1276 = vsel %vm1162, %v1250, 0
        %1278 = vmatprep.subr.mxu0 0.0
        %1279 = vmatpush1.msra.mxu0 %v1252
        %1280 = vmatprep.subr.mxu0 0.0
        %1281 = vmatpush1.msra.mxu0 0.0
        %1282 = vmatprep.subr.mxu0 0.0
        %1283 = vmatpush1.msra.mxu0 0.0
        %1284 = vmatprep.subr.mxu0 0.0
        %1285 = vmatpush1.msra.mxu0 0.0
        %1286 = vmatprep.subr.mxu0 0.0
        %1287 = vmatpush1.msra.mxu0 0.0
        %1288 = vmatprep.subr.mxu0 0.0
        %1289 = vmatpush1.msra.mxu0 0.0
        %1290 = vmatprep.subr.mxu0 0.0
        %1291 = vmatpush1.msra.mxu0 0.0
        %1292 = vmatprep.subr.mxu0 0.0
        %1293 = vmatpush1.msra.mxu0 0.0
        %1294 = vmatprep.subr.mxu0 0.0
        %1295 = vmatpush1.msra.mxu0 0.0
        %1296 = vmatprep.subr.mxu0 0.0
        %1297 = vmatpush1.msra.mxu0 0.0
        %1298 = vmatprep.subr.mxu0 0.0
        %1299 = vmatpush1.msra.mxu0 0.0
        %1300 = vmatprep.subr.mxu0 0.0
        %1301 = vmatpush1.msra.mxu0 0.0
        %1302 = vmatprep.subr.mxu0 0.0
        %1303 = vmatpush1.msra.mxu0 0.0
        %1304 = vmatprep.subr.mxu0 0.0
        %1305 = vmatpush1.msra.mxu0 0.0
        %1306 = vmatprep.subr.mxu0 0.0
        %1307 = vmatpush1.msra.mxu0 0.0
        %1308 = vmatprep.subr.mxu0 0.0
        %1309 = vmatpush1.msra.mxu0 0.0
        %1310 = vmatprep.subr.mxu0 0.0
        %1311 = vmatpush1.msra.mxu0 0.0
        %1312 = vmatprep.subr.mxu0 0.0
        %1313 = vmatpush1.msra.mxu0 0.0
        %1314 = vmatprep.subr.mxu0 0.0
        %1315 = vmatpush1.msra.mxu0 0.0
        %1316 = vmatprep.subr.mxu0 0.0
        %1317 = vmatpush1.msra.mxu0 0.0
        %1318 = vmatprep.subr.mxu0 0.0
        %1319 = vmatpush1.msra.mxu0 0.0
        %1320 = vmatprep.subr.mxu0 0.0
        %1321 = vmatpush1.msra.mxu0 0.0
        %1322 = vmatprep.subr.mxu0 0.0
        %1323 = vmatpush1.msra.mxu0 0.0
        %1324 = vmatprep.subr.mxu0 0.0
        %1325 = vmatpush1.msra.mxu0 0.0
        %1326 = vmatprep.subr.mxu0 0.0
        %1327 = vmatpush1.msra.mxu0 0.0
        %1328 = vmatprep.subr.mxu0 0.0
        %1329 = vmatpush1.msra.mxu0 0.0
        %1330 = vmatprep.subr.mxu0 0.0
        %1331 = vmatpush1.msra.mxu0 0.0
        %1332 = vmatprep.subr.mxu0 0.0
        %1333 = vmatpush1.msra.mxu0 0.0
        %1334 = vmatprep.subr.mxu0 0.0
        %1335 = vmatpush1.msra.mxu0 0.0
        %1336 = vmatprep.subr.mxu0 0.0
        %1337 = vmatpush1.msra.mxu0 0.0
        %1338 = vmatprep.subr.mxu0 0.0
        %1339 = vmatpush1.msra.mxu0 0.0
        %1340 = vmatprep.subr.mxu0 0.0
        %1341 = vmatpush1.msra.mxu0 0.0
        %1342 = vmatprep.mubr.f32.mxu0 0.0
        %1343 = vmatmul.mubr.f32.gmra.mrb[0].mxu0 %v1255
        %v1344 = vpop.f32.mrb[0].mxu0
        %v1345 = vadd.f32 0.0, %v1344
        %v1346 = vpop.f32.mrb[0].mxu0
        %1347 = vmatprep.mubr.f32.mxu0 0.0
        %1348 = vmatmul.mubr.f32.gmra.mrb[0].mxu0 %v1258
        %v1349 = vpop.f32.mrb[0].mxu0
        %v1350 = vadd.f32 0.0, %v1349
        %v1351 = vpop.f32.mrb[0].mxu0
        %1352 = vmatprep.mubr.f32.mxu0 0.0
        %1353 = vmatmul.mubr.f32.gmra.mrb[0].mxu0 %v1261
        %v1354 = vpop.f32.mrb[0].mxu0
        %v1355 = vadd.f32 0.0, %v1354
        %v1356 = vpop.f32.mrb[0].mxu0
        %1357 = vmatprep.mubr.f32.mxu0 0.0
        %1358 = vmatmul.mubr.f32.gmra.mrb[0].mxu0 %v1264
        %v1359 = vpop.f32.mrb[0].mxu0
        %v1360 = vadd.f32 0.0, %v1359
        %v1361 = vpop.f32.mrb[0].mxu0
        %1362 = vmatprep.mubr.f32.mxu0 0.0
        %1363 = vmatmul.mubr.f32.gmra.mrb[0].mxu0 %v1267
        %v1364 = vpop.f32.mrb[0].mxu0
        %v1365 = vadd.f32 0.0, %v1364
        %v1366 = vpop.f32.mrb[0].mxu0
        %1367 = vmatprep.mubr.f32.mxu0 0.0
        %1368 = vmatmul.mubr.f32.gmra.mrb[0].mxu0 %v1270
        %v1369 = vpop.f32.mrb[0].mxu0
        %v1370 = vadd.f32 0.0, %v1369
        %v1371 = vpop.f32.mrb[0].mxu0
        %1372 = vmatprep.mubr.f32.mxu0 0.0
        %1373 = vmatmul.mubr.f32.gmra.mrb[0].mxu0 %v1273
        %v1374 = vpop.f32.mrb[0].mxu0
        %v1375 = vadd.f32 0.0, %v1374
        %v1376 = vpop.f32.mrb[0].mxu0
        %1377 = vmatprep.mubr.f32.mxu0 0.0
        %1378 = vmatmul.mubr.f32.gmra.mrb[0].mxu0 %v1276
        %v1379 = vpop.f32.mrb[0].mxu0
        %v1380 = vadd.f32 0.0, %v1379
        %v1381 = vpop.f32.mrb[0].mxu0
        %1382 = vdwg.mxu0
        %v1383 = vmul.f32 %v1345, %v983
        %v1384 = vmul.f32 %v1350, %v987
        %v1385 = vmul.f32 %v1355, %v991
        %v1386 = vmul.f32 %v1360, %v995
        %v1387 = vmul.f32 %v1365, %v999
        %v1388 = vmul.f32 %v1370, %v1003
        %v1389 = vmul.f32 %v1375, %v1007
        %v1390 = vmul.f32 %v1380, %v1011
        %v1391 = vsel %vm920, %v1383, 0.0
        %v1392 = vsel %vm920, %v1384, 0.0
        %v1393 = vadd.f32 %v1391, %v1392
        %v1394 = vsel %vm920, %v1385, 0.0
        %v1395 = vadd.f32 %v1393, %v1394
        %v1396 = vsel %vm920, %v1386, 0.0
        %v1397 = vadd.f32 %v1395, %v1396
        %v1398 = vsel %vm920, %v1387, 0.0
        %v1399 = vadd.f32 %v1397, %v1398
        %v1400 = vsel %vm920, %v1388, 0.0
        %v1401 = vadd.f32 %v1399, %v1400
        %v1402 = vsel %vm920, %v1389, 0.0
        %v1403 = vadd.f32 %v1401, %v1402
        %v1404 = vsel %vm920, %v1390, 0.0
        %v1405 = vadd.f32 %v1403, %v1404
        %v1406 = vpack.c.bf16 %v1405, %v1405
        %v1407 = vld [vmem:[%s8] sm:$0xf]
        %v1408 = vld [vmem:[%s8 + $0x4] sm:$0xf]
        %v1409 = vld [vmem:[%s8 + $0x8] sm:$0xf]
        %v1410 = vld [vmem:[%s8 + $0xc] sm:$0xf]
        %v1411 = vld [vmem:[%s9] sm:$0x1]
        %v1413 = vlaneseq
        %v1414 = vshrl.u32 %v1413, 7
        %v1415 = vsub.s32 0, %v1414
        %v1416 = vrot.slane %v1411, %v1415
        %v1422 = vunpack.c.l.b16 %v1407
        %v1423 = vunpack.c.l.b16 %v1408
        %v1424 = vunpack.c.l.b16 %v1409
        %v1425 = vunpack.c.l.b16 %v1410
        %v1426 = vpack.c.b16 %v1423, %v1422
        %v1427 = vpack.c.b16 %v1425, %v1424
        %v1431 = vsel %vm920, %v1406, 0
        %1433 = vmatprep.subr.bf16.mxu0 0
        %1434 = vmatpush1.bf16.msra.mxu0 %v1426
        %1435 = vmatprep.subr.bf16.mxu0 0
        %1436 = vmatpush1.bf16.msra.mxu0 %v1427
        %1437 = vmatprep.subr.bf16.mxu0 0
        %1438 = vmatpush1.bf16.msra.mxu0 0
        %1439 = vmatprep.subr.bf16.mxu0 0
        %1440 = vmatpush1.bf16.msra.mxu0 0
        %1441 = vmatprep.subr.bf16.mxu0 0
        %1442 = vmatpush1.bf16.msra.mxu0 0
        %1443 = vmatprep.subr.bf16.mxu0 0
        %1444 = vmatpush1.bf16.msra.mxu0 0
        %1445 = vmatprep.subr.bf16.mxu0 0
        %1446 = vmatpush1.bf16.msra.mxu0 0
        %1447 = vmatprep.subr.bf16.mxu0 0
        %1448 = vmatpush1.bf16.msra.mxu0 0
        %1449 = vmatprep.subr.bf16.mxu0 0
        %1450 = vmatpush1.bf16.msra.mxu0 0
        %1451 = vmatprep.subr.bf16.mxu0 0
        %1452 = vmatpush1.bf16.msra.mxu0 0
        %1453 = vmatprep.subr.bf16.mxu0 0
        %1454 = vmatpush1.bf16.msra.mxu0 0
        %1455 = vmatprep.subr.bf16.mxu0 0
        %1456 = vmatpush1.bf16.msra.mxu0 0
        %1457 = vmatprep.subr.bf16.mxu0 0
        %1458 = vmatpush1.bf16.msra.mxu0 0
        %1459 = vmatprep.subr.bf16.mxu0 0
        %1460 = vmatpush1.bf16.msra.mxu0 0
        %1461 = vmatprep.subr.bf16.mxu0 0
        %1462 = vmatpush1.bf16.msra.mxu0 0
        %1463 = vmatprep.subr.bf16.mxu0 0
        %1464 = vmatpush1.bf16.msra.mxu0 0
        %1465 = vmatprep.mubr.bf16.mxu0 0
        %1466 = vmatmul.mubr.bf16.gmra.mrb[0].mxu0 %v1431
        %v1467 = vpop.f32.mrb[0].mxu0
        %v1468 = vadd.f32 %v1416, %v1467
        %v1469 = vpop.f32.mrb[0].mxu0
        %v1470 = vpop.f32.mrb[0].mxu0
        %v1471 = vpop.f32.mrb[0].mxu0
        %1472 = vdwg.mxu0
        %v1473 = vadd.f32 %v891, %v1468
        %v1474 = vld [vmem:[%s10] sm:$0x1]
        %v1475 = vld [vmem:[%s11] sm:$0x1]
        %v1476 = vsel %vm920, %v1473, 0.0
        %1477 = vadd.xlane.f32.xlu0 %v1476
        %v1478 = vpop.xlane.xlu0 %1477
        %v1479 = vrcp.pop 32.0
        %v1480 = vmul.f32 %v1478, %v1479
        %v1481 = vsub.f32 %v1473, %v1480
        %v1482 = vmul.f32 %v1481, %v1481
        %v1483 = vsel %vm920, %v1482, 0.0
        %1484 = vadd.xlane.f32.xlu0 %v1483
        %v1485 = vpop.xlane.xlu0 %1484
        %v1486 = vmul.f32 %v1485, %v1479
        %v1487 = vadd.f32 %v1486, 1e-05
        %v1488 = vrsqrt.pop %v1487
        %v1489 = vmul.f32 %v1481, %v1488
        %v1491 = vlaneseq
        %v1492 = vshrl.u32 %v1491, 7
        %v1493 = vsub.s32 0, %v1492
        %v1494 = vrot.slane %v1474, %v1493
        %v1496 = vmul.f32 %v1489, %v1494
        %v1498 = vlaneseq
        %v1499 = vshrl.u32 %v1498, 7
        %v1500 = vsub.s32 0, %v1499
        %v1501 = vrot.slane %v1475, %v1500
        %v1503 = vadd.f32 %v1496, %v1501
        %v1504 = vpack.c.bf16 %v1503, %v1503
        %v1505 = vld [vmem:[%s12] sm:$0xff]
        %v1506 = vld [vmem:[%s12 + $0x8] sm:$0xff]
        %v1507 = vld [vmem:[%s12 + $0x10] sm:$0xff]
        %v1508 = vld [vmem:[%s12 + $0x18] sm:$0xff]
        %v1509 = vld [vmem:[%s12 + $0x20] sm:$0xff]
        %v1510 = vld [vmem:[%s12 + $0x28] sm:$0xff]
        %v1511 = vld [vmem:[%s12 + $0x30] sm:$0xff]
        %v1512 = vld [vmem:[%s12 + $0x38] sm:$0xff]
        %v1513 = vld [vmem:[%s12 + $0x40] sm:$0xff]
        %v1514 = vld [vmem:[%s12 + $0x48] sm:$0xff]
        %v1515 = vld [vmem:[%s12 + $0x50] sm:$0xff]
        %v1516 = vld [vmem:[%s12 + $0x58] sm:$0xff]
        %v1517 = vld [vmem:[%s12 + $0x60] sm:$0xff]
        %v1518 = vld [vmem:[%s12 + $0x68] sm:$0xff]
        %v1519 = vld [vmem:[%s12 + $0x70] sm:$0xff]
        %v1520 = vld [vmem:[%s12 + $0x78] sm:$0xff]
        %v1521 = vld [vmem:[%s12 + $0x80] sm:$0xff]
        %v1522 = vld [vmem:[%s12 + $0x88] sm:$0xff]
        %v1523 = vld [vmem:[%s12 + $0x90] sm:$0xff]
        %v1524 = vld [vmem:[%s12 + $0x98] sm:$0xff]
        %v1525 = vld [vmem:[%s12 + $0xa0] sm:$0xff]
        %v1526 = vld [vmem:[%s12 + $0xa8] sm:$0xff]
        %v1527 = vld [vmem:[%s12 + $0xb0] sm:$0xff]
        %v1528 = vld [vmem:[%s12 + $0xb8] sm:$0xff]
        %v1529 = vld [vmem:[%s12 + $0xc0] sm:$0xff]
        %v1530 = vld [vmem:[%s12 + $0xc8] sm:$0xff]
        %v1531 = vld [vmem:[%s12 + $0xd0] sm:$0xff]
        %v1532 = vld [vmem:[%s12 + $0xd8] sm:$0xff]
        %v1533 = vld [vmem:[%s12 + $0xe0] sm:$0xff]
        %v1534 = vld [vmem:[%s12 + $0xe8] sm:$0xff]
        %v1535 = vld [vmem:[%s12 + $0xf0] sm:$0xff]
        %v1536 = vld [vmem:[%s12 + $0xf8] sm:$0xff]
        %v1537 = vld [vmem:[%s13] sm:$0xff]
        %v1538 = vld [vmem:[%s13 + $0x8] sm:$0xff]
        %v1541 = vlaneseq
        %v1542 = vshrl.u32 %v1541, 7
        %v1543 = vsub.s32 0, %v1542
        %v1544 = vrot.slane %v1537, %v1543
        %v1545 = vlaneseq
        %v1546 = vshrl.u32 %v1545, 7
        %v1547 = vsub.s32 1, %v1546
        %v1548 = vrot.slane %v1537, %v1547
        %v1549 = vlaneseq
        %v1550 = vshrl.u32 %v1549, 7
        %v1551 = vsub.s32 2, %v1550
        %v1552 = vrot.slane %v1537, %v1551
        %v1553 = vlaneseq
        %v1554 = vshrl.u32 %v1553, 7
        %v1555 = vsub.s32 3, %v1554
        %v1556 = vrot.slane %v1537, %v1555
        %v1557 = vlaneseq
        %v1558 = vshrl.u32 %v1557, 7
        %v1559 = vsub.s32 4, %v1558
        %v1560 = vrot.slane %v1537, %v1559
        %v1561 = vlaneseq
        %v1562 = vshrl.u32 %v1561, 7
        %v1563 = vsub.s32 5, %v1562
        %v1564 = vrot.slane %v1537, %v1563
        %v1565 = vlaneseq
        %v1566 = vshrl.u32 %v1565, 7
        %v1567 = vsub.s32 6, %v1566
        %v1568 = vrot.slane %v1537, %v1567
        %v1569 = vlaneseq
        %v1570 = vshrl.u32 %v1569, 7
        %v1571 = vsub.s32 7, %v1570
        %v1572 = vrot.slane %v1537, %v1571
        %v1573 = vlaneseq
        %v1574 = vshrl.u32 %v1573, 7
        %v1575 = vsub.s32 0, %v1574
        %v1576 = vrot.slane %v1538, %v1575
        %v1577 = vlaneseq
        %v1578 = vshrl.u32 %v1577, 7
        %v1579 = vsub.s32 1, %v1578
        %v1580 = vrot.slane %v1538, %v1579
        %v1581 = vlaneseq
        %v1582 = vshrl.u32 %v1581, 7
        %v1583 = vsub.s32 2, %v1582
        %v1584 = vrot.slane %v1538, %v1583
        %v1585 = vlaneseq
        %v1586 = vshrl.u32 %v1585, 7
        %v1587 = vsub.s32 3, %v1586
        %v1588 = vrot.slane %v1538, %v1587
        %v1589 = vlaneseq
        %v1590 = vshrl.u32 %v1589, 7
        %v1591 = vsub.s32 4, %v1590
        %v1592 = vrot.slane %v1538, %v1591
        %v1593 = vlaneseq
        %v1594 = vshrl.u32 %v1593, 7
        %v1595 = vsub.s32 5, %v1594
        %v1596 = vrot.slane %v1538, %v1595
        %v1597 = vlaneseq
        %v1598 = vshrl.u32 %v1597, 7
        %v1599 = vsub.s32 6, %v1598
        %v1600 = vrot.slane %v1538, %v1599
        %v1601 = vlaneseq
        %v1602 = vshrl.u32 %v1601, 7
        %v1603 = vsub.s32 7, %v1602
        %v1604 = vrot.slane %v1538, %v1603
        %v1653 = vunpack.c.l.b16 %v1505
        %v1654 = vunpack.c.h.b16 %v1505
        %v1655 = vunpack.c.l.b16 %v1506
        %v1656 = vunpack.c.h.b16 %v1506
        %v1657 = vunpack.c.l.b16 %v1507
        %v1658 = vunpack.c.h.b16 %v1507
        %v1659 = vunpack.c.l.b16 %v1508
        %v1660 = vunpack.c.h.b16 %v1508
        %v1661 = vunpack.c.l.b16 %v1509
        %v1662 = vunpack.c.h.b16 %v1509
        %v1663 = vunpack.c.l.b16 %v1510
        %v1664 = vunpack.c.h.b16 %v1510
        %v1665 = vunpack.c.l.b16 %v1511
        %v1666 = vunpack.c.h.b16 %v1511
        %v1667 = vunpack.c.l.b16 %v1512
        %v1668 = vunpack.c.h.b16 %v1512
        %v1669 = vunpack.c.l.b16 %v1513
        %v1670 = vunpack.c.h.b16 %v1513
        %v1671 = vunpack.c.l.b16 %v1514
        %v1672 = vunpack.c.h.b16 %v1514
        %v1673 = vunpack.c.l.b16 %v1515
        %v1674 = vunpack.c.h.b16 %v1515
        %v1675 = vunpack.c.l.b16 %v1516
        %v1676 = vunpack.c.h.b16 %v1516
        %v1677 = vunpack.c.l.b16 %v1517
        %v1678 = vunpack.c.h.b16 %v1517
        %v1679 = vunpack.c.l.b16 %v1518
        %v1680 = vunpack.c.h.b16 %v1518
        %v1681 = vunpack.c.l.b16 %v1519
        %v1682 = vunpack.c.h.b16 %v1519
        %v1683 = vunpack.c.l.b16 %v1520
        %v1684 = vunpack.c.h.b16 %v1520
        %v1685 = vunpack.c.l.b16 %v1521
        %v1686 = vunpack.c.h.b16 %v1521
        %v1687 = vunpack.c.l.b16 %v1522
        %v1688 = vunpack.c.h.b16 %v1522
        %v1689 = vunpack.c.l.b16 %v1523
        %v1690 = vunpack.c.h.b16 %v1523
        %v1691 = vunpack.c.l.b16 %v1524
        %v1692 = vunpack.c.h.b16 %v1524
        %v1693 = vunpack.c.l.b16 %v1525
        %v1694 = vunpack.c.h.b16 %v1525
        %v1695 = vunpack.c.l.b16 %v1526
        %v1696 = vunpack.c.h.b16 %v1526
        %v1697 = vunpack.c.l.b16 %v1527
        %v1698 = vunpack.c.h.b16 %v1527
        %v1699 = vunpack.c.l.b16 %v1528
        %v1700 = vunpack.c.h.b16 %v1528
        %v1701 = vunpack.c.l.b16 %v1529
        %v1702 = vunpack.c.h.b16 %v1529
        %v1703 = vunpack.c.l.b16 %v1530
        %v1704 = vunpack.c.h.b16 %v1530
        %v1705 = vunpack.c.l.b16 %v1531
        %v1706 = vunpack.c.h.b16 %v1531
        %v1707 = vunpack.c.l.b16 %v1532
        %v1708 = vunpack.c.h.b16 %v1532
        %v1709 = vunpack.c.l.b16 %v1533
        %v1710 = vunpack.c.h.b16 %v1533
        %v1711 = vunpack.c.l.b16 %v1534
        %v1712 = vunpack.c.h.b16 %v1534
        %v1713 = vunpack.c.l.b16 %v1535
        %v1714 = vunpack.c.h.b16 %v1535
        %v1715 = vunpack.c.l.b16 %v1536
        %v1716 = vunpack.c.h.b16 %v1536
        %v1717 = vpack.c.b16 %v1669, %v1653
        %v1718 = vpack.c.b16 %v1670, %v1654
        %v1719 = vpack.c.b16 %v1671, %v1655
        %v1720 = vpack.c.b16 %v1672, %v1656
        %v1721 = vpack.c.b16 %v1673, %v1657
        %v1722 = vpack.c.b16 %v1674, %v1658
        %v1723 = vpack.c.b16 %v1675, %v1659
        %v1724 = vpack.c.b16 %v1676, %v1660
        %v1725 = vpack.c.b16 %v1677, %v1661
        %v1726 = vpack.c.b16 %v1678, %v1662
        %v1727 = vpack.c.b16 %v1679, %v1663
        %v1728 = vpack.c.b16 %v1680, %v1664
        %v1729 = vpack.c.b16 %v1681, %v1665
        %v1730 = vpack.c.b16 %v1682, %v1666
        %v1731 = vpack.c.b16 %v1683, %v1667
        %v1732 = vpack.c.b16 %v1684, %v1668
        %v1733 = vpack.c.b16 %v1701, %v1685
        %v1734 = vpack.c.b16 %v1702, %v1686
        %v1735 = vpack.c.b16 %v1703, %v1687
        %v1736 = vpack.c.b16 %v1704, %v1688
        %v1737 = vpack.c.b16 %v1705, %v1689
        %v1738 = vpack.c.b16 %v1706, %v1690
        %v1739 = vpack.c.b16 %v1707, %v1691
        %v1740 = vpack.c.b16 %v1708, %v1692
        %v1741 = vpack.c.b16 %v1709, %v1693
        %v1742 = vpack.c.b16 %v1710, %v1694
        %v1743 = vpack.c.b16 %v1711, %v1695
        %v1744 = vpack.c.b16 %v1712, %v1696
        %v1745 = vpack.c.b16 %v1713, %v1697
        %v1746 = vpack.c.b16 %v1714, %v1698
        %v1747 = vpack.c.b16 %v1715, %v1699
        %v1748 = vpack.c.b16 %v1716, %v1700
        %v1782 = vsel %vm920, %v1504, 0
        %1784 = vmatprep.subr.bf16.mxu0 %v1718
        %1785 = vmatpush1.bf16.msra.mxu0 %v1717
        %1786 = vmatprep.subr.bf16.mxu0 %v1734
        %1787 = vmatpush1.bf16.msra.mxu0 %v1733
        %1788 = vmatprep.subr.bf16.mxu0 0
        %1789 = vmatpush1.bf16.msra.mxu0 0
        %1790 = vmatprep.subr.bf16.mxu0 0
        %1791 = vmatpush1.bf16.msra.mxu0 0
        %1792 = vmatprep.subr.bf16.mxu0 0
        %1793 = vmatpush1.bf16.msra.mxu0 0
        %1794 = vmatprep.subr.bf16.mxu0 0
        %1795 = vmatpush1.bf16.msra.mxu0 0
        %1796 = vmatprep.subr.bf16.mxu0 0
        %1797 = vmatpush1.bf16.msra.mxu0 0
        %1798 = vmatprep.subr.bf16.mxu0 0
        %1799 = vmatpush1.bf16.msra.mxu0 0
        %1800 = vmatprep.subr.bf16.mxu0 0
        %1801 = vmatpush1.bf16.msra.mxu0 0
        %1802 = vmatprep.subr.bf16.mxu0 0
        %1803 = vmatpush1.bf16.msra.mxu0 0
        %1804 = vmatprep.subr.bf16.mxu0 0
        %1805 = vmatpush1.bf16.msra.mxu0 0
        %1806 = vmatprep.subr.bf16.mxu0 0
        %1807 = vmatpush1.bf16.msra.mxu0 0
        %1808 = vmatprep.subr.bf16.mxu0 0
        %1809 = vmatpush1.bf16.msra.mxu0 0
        %1810 = vmatprep.subr.bf16.mxu0 0
        %1811 = vmatpush1.bf16.msra.mxu0 0
        %1812 = vmatprep.subr.bf16.mxu0 0
        %1813 = vmatpush1.bf16.msra.mxu0 0
        %1814 = vmatprep.subr.bf16.mxu0 0
        %1815 = vmatpush1.bf16.msra.mxu0 0
        %1816 = vmatprep.mubr.bf16.mxu0 0
        %1817 = vmatmul.mubr.bf16.gmra.mrb[0].mxu0 %v1782
        %v1818 = vpop.f32.mrb[0].mxu0
        %v1819 = vadd.f32 %v1544, %v1818
        %v1820 = vpop.f32.mrb[0].mxu0
        %v1821 = vadd.f32 %v1548, %v1820
        %v1822 = vpop.f32.mrb[0].mxu0
        %v1823 = vpop.f32.mrb[0].mxu0
        %1824 = vdwg.mxu0
        %1825 = vmatprep.subr.bf16.mxu0 %v1720
        %1826 = vmatpush1.bf16.msra.mxu0 %v1719
        %1827 = vmatprep.subr.bf16.mxu0 %v1736
        %1828 = vmatpush1.bf16.msra.mxu0 %v1735
        %1829 = vmatprep.subr.bf16.mxu0 0
        %1830 = vmatpush1.bf16.msra.mxu0 0
        %1831 = vmatprep.subr.bf16.mxu0 0
        %1832 = vmatpush1.bf16.msra.mxu0 0
        %1833 = vmatprep.subr.bf16.mxu0 0
        %1834 = vmatpush1.bf16.msra.mxu0 0
        %1835 = vmatprep.subr.bf16.mxu0 0
        %1836 = vmatpush1.bf16.msra.mxu0 0
        %1837 = vmatprep.subr.bf16.mxu0 0
        %1838 = vmatpush1.bf16.msra.mxu0 0
        %1839 = vmatprep.subr.bf16.mxu0 0
        %1840 = vmatpush1.bf16.msra.mxu0 0
        %1841 = vmatprep.subr.bf16.mxu0 0
        %1842 = vmatpush1.bf16.msra.mxu0 0
        %1843 = vmatprep.subr.bf16.mxu0 0
        %1844 = vmatpush1.bf16.msra.mxu0 0
        %1845 = vmatprep.subr.bf16.mxu0 0
        %1846 = vmatpush1.bf16.msra.mxu0 0
        %1847 = vmatprep.subr.bf16.mxu0 0
        %1848 = vmatpush1.bf16.msra.mxu0 0
        %1849 = vmatprep.subr.bf16.mxu0 0
        %1850 = vmatpush1.bf16.msra.mxu0 0
        %1851 = vmatprep.subr.bf16.mxu0 0
        %1852 = vmatpush1.bf16.msra.mxu0 0
        %1853 = vmatprep.subr.bf16.mxu0 0
        %1854 = vmatpush1.bf16.msra.mxu0 0
        %1855 = vmatprep.subr.bf16.mxu0 0
        %1856 = vmatpush1.bf16.msra.mxu0 0
        %1857 = vmatprep.mubr.bf16.mxu0 0
        %1858 = vmatmul.mubr.bf16.gmra.mrb[0].mxu0 %v1782
        %v1859 = vpop.f32.mrb[0].mxu0
        %v1860 = vadd.f32 %v1552, %v1859
        %v1861 = vpop.f32.mrb[0].mxu0
        %v1862 = vadd.f32 %v1556, %v1861
        %v1863 = vpop.f32.mrb[0].mxu0
        %v1864 = vpop.f32.mrb[0].mxu0
        %1865 = vdwg.mxu0
        %1866 = vmatprep.subr.bf16.mxu0 %v1722
        %1867 = vmatpush1.bf16.msra.mxu0 %v1721
        %1868 = vmatprep.subr.bf16.mxu0 %v1738
        %1869 = vmatpush1.bf16.msra.mxu0 %v1737
        %1870 = vmatprep.subr.bf16.mxu0 0
        %1871 = vmatpush1.bf16.msra.mxu0 0
        %1872 = vmatprep.subr.bf16.mxu0 0
        %1873 = vmatpush1.bf16.msra.mxu0 0
        %1874 = vmatprep.subr.bf16.mxu0 0
        %1875 = vmatpush1.bf16.msra.mxu0 0
        %1876 = vmatprep.subr.bf16.mxu0 0
        %1877 = vmatpush1.bf16.msra.mxu0 0
        %1878 = vmatprep.subr.bf16.mxu0 0
        %1879 = vmatpush1.bf16.msra.mxu0 0
        %1880 = vmatprep.subr.bf16.mxu0 0
        %1881 = vmatpush1.bf16.msra.mxu0 0
        %1882 = vmatprep.subr.bf16.mxu0 0
        %1883 = vmatpush1.bf16.msra.mxu0 0
        %1884 = vmatprep.subr.bf16.mxu0 0
        %1885 = vmatpush1.bf16.msra.mxu0 0
        %1886 = vmatprep.subr.bf16.mxu0 0
        %1887 = vmatpush1.bf16.msra.mxu0 0
        %1888 = vmatprep.subr.bf16.mxu0 0
        %1889 = vmatpush1.bf16.msra.mxu0 0
        %1890 = vmatprep.subr.bf16.mxu0 0
        %1891 = vmatpush1.bf16.msra.mxu0 0
        %1892 = vmatprep.subr.bf16.mxu0 0
        %1893 = vmatpush1.bf16.msra.mxu0 0
        %1894 = vmatprep.subr.bf16.mxu0 0
        %1895 = vmatpush1.bf16.msra.mxu0 0
        %1896 = vmatprep.subr.bf16.mxu0 0
        %1897 = vmatpush1.bf16.msra.mxu0 0
        %1898 = vmatprep.mubr.bf16.mxu0 0
        %1899 = vmatmul.mubr.bf16.gmra.mrb[0].mxu0 %v1782
        %v1900 = vpop.f32.mrb[0].mxu0
        %v1901 = vadd.f32 %v1560, %v1900
        %v1902 = vpop.f32.mrb[0].mxu0
        %v1903 = vadd.f32 %v1564, %v1902
        %v1904 = vpop.f32.mrb[0].mxu0
        %v1905 = vpop.f32.mrb[0].mxu0
        %1906 = vdwg.mxu0
        %1907 = vmatprep.subr.bf16.mxu0 %v1724
        %1908 = vmatpush1.bf16.msra.mxu0 %v1723
        %1909 = vmatprep.subr.bf16.mxu0 %v1740
        %1910 = vmatpush1.bf16.msra.mxu0 %v1739
        %1911 = vmatprep.subr.bf16.mxu0 0
        %1912 = vmatpush1.bf16.msra.mxu0 0
        %1913 = vmatprep.subr.bf16.mxu0 0
        %1914 = vmatpush1.bf16.msra.mxu0 0
        %1915 = vmatprep.subr.bf16.mxu0 0
        %1916 = vmatpush1.bf16.msra.mxu0 0
        %1917 = vmatprep.subr.bf16.mxu0 0
        %1918 = vmatpush1.bf16.msra.mxu0 0
        %1919 = vmatprep.subr.bf16.mxu0 0
        %1920 = vmatpush1.bf16.msra.mxu0 0
        %1921 = vmatprep.subr.bf16.mxu0 0
        %1922 = vmatpush1.bf16.msra.mxu0 0
        %1923 = vmatprep.subr.bf16.mxu0 0
        %1924 = vmatpush1.bf16.msra.mxu0 0
        %1925 = vmatprep.subr.bf16.mxu0 0
        %1926 = vmatpush1.bf16.msra.mxu0 0
        %1927 = vmatprep.subr.bf16.mxu0 0
        %1928 = vmatpush1.bf16.msra.mxu0 0
        %1929 = vmatprep.subr.bf16.mxu0 0
        %1930 = vmatpush1.bf16.msra.mxu0 0
        %1931 = vmatprep.subr.bf16.mxu0 0
        %1932 = vmatpush1.bf16.msra.mxu0 0
        %1933 = vmatprep.subr.bf16.mxu0 0
        %1934 = vmatpush1.bf16.msra.mxu0 0
        %1935 = vmatprep.subr.bf16.mxu0 0
        %1936 = vmatpush1.bf16.msra.mxu0 0
        %1937 = vmatprep.subr.bf16.mxu0 0
        %1938 = vmatpush1.bf16.msra.mxu0 0
        %1939 = vmatprep.mubr.bf16.mxu0 0
        %1940 = vmatmul.mubr.bf16.gmra.mrb[0].mxu0 %v1782
        %v1941 = vpop.f32.mrb[0].mxu0
        %v1942 = vadd.f32 %v1568, %v1941
        %v1943 = vpop.f32.mrb[0].mxu0
        %v1944 = vadd.f32 %v1572, %v1943
        %v1945 = vpop.f32.mrb[0].mxu0
        %v1946 = vpop.f32.mrb[0].mxu0
        %1947 = vdwg.mxu0
        %1948 = vmatprep.subr.bf16.mxu0 %v1726
        %1949 = vmatpush1.bf16.msra.mxu0 %v1725
        %1950 = vmatprep.subr.bf16.mxu0 %v1742
        %1951 = vmatpush1.bf16.msra.mxu0 %v1741
        %1952 = vmatprep.subr.bf16.mxu0 0
        %1953 = vmatpush1.bf16.msra.mxu0 0
        %1954 = vmatprep.subr.bf16.mxu0 0
        %1955 = vmatpush1.bf16.msra.mxu0 0
        %1956 = vmatprep.subr.bf16.mxu0 0
        %1957 = vmatpush1.bf16.msra.mxu0 0
        %1958 = vmatprep.subr.bf16.mxu0 0
        %1959 = vmatpush1.bf16.msra.mxu0 0
        %1960 = vmatprep.subr.bf16.mxu0 0
        %1961 = vmatpush1.bf16.msra.mxu0 0
        %1962 = vmatprep.subr.bf16.mxu0 0
        %1963 = vmatpush1.bf16.msra.mxu0 0
        %1964 = vmatprep.subr.bf16.mxu0 0
        %1965 = vmatpush1.bf16.msra.mxu0 0
        %1966 = vmatprep.subr.bf16.mxu0 0
        %1967 = vmatpush1.bf16.msra.mxu0 0
        %1968 = vmatprep.subr.bf16.mxu0 0
        %1969 = vmatpush1.bf16.msra.mxu0 0
        %1970 = vmatprep.subr.bf16.mxu0 0
        %1971 = vmatpush1.bf16.msra.mxu0 0
        %1972 = vmatprep.subr.bf16.mxu0 0
        %1973 = vmatpush1.bf16.msra.mxu0 0
        %1974 = vmatprep.subr.bf16.mxu0 0
        %1975 = vmatpush1.bf16.msra.mxu0 0
        %1976 = vmatprep.subr.bf16.mxu0 0
        %1977 = vmatpush1.bf16.msra.mxu0 0
        %1978 = vmatprep.subr.bf16.mxu0 0
        %1979 = vmatpush1.bf16.msra.mxu0 0
        %1980 = vmatprep.mubr.bf16.mxu0 0
        %1981 = vmatmul.mubr.bf16.gmra.mrb[0].mxu0 %v1782
        %v1982 = vpop.f32.mrb[0].mxu0
        %v1983 = vadd.f32 %v1576, %v1982
        %v1984 = vpop.f32.mrb[0].mxu0
        %v1985 = vadd.f32 %v1580, %v1984
        %v1986 = vpop.f32.mrb[0].mxu0
        %v1987 = vpop.f32.mrb[0].mxu0
        %1988 = vdwg.mxu0
        %1989 = vmatprep.subr.bf16.mxu0 %v1728
        %1990 = vmatpush1.bf16.msra.mxu0 %v1727
        %1991 = vmatprep.subr.bf16.mxu0 %v1744
        %1992 = vmatpush1.bf16.msra.mxu0 %v1743
        %1993 = vmatprep.subr.bf16.mxu0 0
        %1994 = vmatpush1.bf16.msra.mxu0 0
        %1995 = vmatprep.subr.bf16.mxu0 0
        %1996 = vmatpush1.bf16.msra.mxu0 0
        %1997 = vmatprep.subr.bf16.mxu0 0
        %1998 = vmatpush1.bf16.msra.mxu0 0
        %1999 = vmatprep.subr.bf16.mxu0 0
        %2000 = vmatpush1.bf16.msra.mxu0 0
        %2001 = vmatprep.subr.bf16.mxu0 0
        %2002 = vmatpush1.bf16.msra.mxu0 0
        %2003 = vmatprep.subr.bf16.mxu0 0
        %2004 = vmatpush1.bf16.msra.mxu0 0
        %2005 = vmatprep.subr.bf16.mxu0 0
        %2006 = vmatpush1.bf16.msra.mxu0 0
        %2007 = vmatprep.subr.bf16.mxu0 0
        %2008 = vmatpush1.bf16.msra.mxu0 0
        %2009 = vmatprep.subr.bf16.mxu0 0
        %2010 = vmatpush1.bf16.msra.mxu0 0
        %2011 = vmatprep.subr.bf16.mxu0 0
        %2012 = vmatpush1.bf16.msra.mxu0 0
        %2013 = vmatprep.subr.bf16.mxu0 0
        %2014 = vmatpush1.bf16.msra.mxu0 0
        %2015 = vmatprep.subr.bf16.mxu0 0
        %2016 = vmatpush1.bf16.msra.mxu0 0
        %2017 = vmatprep.subr.bf16.mxu0 0
        %2018 = vmatpush1.bf16.msra.mxu0 0
        %2019 = vmatprep.subr.bf16.mxu0 0
        %2020 = vmatpush1.bf16.msra.mxu0 0
        %2021 = vmatprep.mubr.bf16.mxu0 0
        %2022 = vmatmul.mubr.bf16.gmra.mrb[0].mxu0 %v1782
        %v2023 = vpop.f32.mrb[0].mxu0
        %v2024 = vadd.f32 %v1584, %v2023
        %v2025 = vpop.f32.mrb[0].mxu0
        %v2026 = vadd.f32 %v1588, %v2025
        %v2027 = vpop.f32.mrb[0].mxu0
        %v2028 = vpop.f32.mrb[0].mxu0
        %2029 = vdwg.mxu0
        %2030 = vmatprep.subr.bf16.mxu0 %v1730
        %2031 = vmatpush1.bf16.msra.mxu0 %v1729
        %2032 = vmatprep.subr.bf16.mxu0 %v1746
        %2033 = vmatpush1.bf16.msra.mxu0 %v1745
        %2034 = vmatprep.subr.bf16.mxu0 0
        %2035 = vmatpush1.bf16.msra.mxu0 0
        %2036 = vmatprep.subr.bf16.mxu0 0
        %2037 = vmatpush1.bf16.msra.mxu0 0
        %2038 = vmatprep.subr.bf16.mxu0 0
        %2039 = vmatpush1.bf16.msra.mxu0 0
        %2040 = vmatprep.subr.bf16.mxu0 0
        %2041 = vmatpush1.bf16.msra.mxu0 0
        %2042 = vmatprep.subr.bf16.mxu0 0
        %2043 = vmatpush1.bf16.msra.mxu0 0
        %2044 = vmatprep.subr.bf16.mxu0 0
        %2045 = vmatpush1.bf16.msra.mxu0 0
        %2046 = vmatprep.subr.bf16.mxu0 0
        %2047 = vmatpush1.bf16.msra.mxu0 0
        %2048 = vmatprep.subr.bf16.mxu0 0
        %2049 = vmatpush1.bf16.msra.mxu0 0
        %2050 = vmatprep.subr.bf16.mxu0 0
        %2051 = vmatpush1.bf16.msra.mxu0 0
        %2052 = vmatprep.subr.bf16.mxu0 0
        %2053 = vmatpush1.bf16.msra.mxu0 0
        %2054 = vmatprep.subr.bf16.mxu0 0
        %2055 = vmatpush1.bf16.msra.mxu0 0
        %2056 = vmatprep.subr.bf16.mxu0 0
        %2057 = vmatpush1.bf16.msra.mxu0 0
        %2058 = vmatprep.subr.bf16.mxu0 0
        %2059 = vmatpush1.bf16.msra.mxu0 0
        %2060 = vmatprep.subr.bf16.mxu0 0
        %2061 = vmatpush1.bf16.msra.mxu0 0
        %2062 = vmatprep.mubr.bf16.mxu0 0
        %2063 = vmatmul.mubr.bf16.gmra.mrb[0].mxu0 %v1782
        %v2064 = vpop.f32.mrb[0].mxu0
        %v2065 = vadd.f32 %v1592, %v2064
        %v2066 = vpop.f32.mrb[0].mxu0
        %v2067 = vadd.f32 %v1596, %v2066
        %v2068 = vpop.f32.mrb[0].mxu0
        %v2069 = vpop.f32.mrb[0].mxu0
        %2070 = vdwg.mxu0
        %2071 = vmatprep.subr.bf16.mxu0 %v1732
        %2072 = vmatpush1.bf16.msra.mxu0 %v1731
        %2073 = vmatprep.subr.bf16.mxu0 %v1748
        %2074 = vmatpush1.bf16.msra.mxu0 %v1747
        %2075 = vmatprep.subr.bf16.mxu0 0
        %2076 = vmatpush1.bf16.msra.mxu0 0
        %2077 = vmatprep.subr.bf16.mxu0 0
        %2078 = vmatpush1.bf16.msra.mxu0 0
        %2079 = vmatprep.subr.bf16.mxu0 0
        %2080 = vmatpush1.bf16.msra.mxu0 0
        %2081 = vmatprep.subr.bf16.mxu0 0
        %2082 = vmatpush1.bf16.msra.mxu0 0
        %2083 = vmatprep.subr.bf16.mxu0 0
        %2084 = vmatpush1.bf16.msra.mxu0 0
        %2085 = vmatprep.subr.bf16.mxu0 0
        %2086 = vmatpush1.bf16.msra.mxu0 0
        %2087 = vmatprep.subr.bf16.mxu0 0
        %2088 = vmatpush1.bf16.msra.mxu0 0
        %2089 = vmatprep.subr.bf16.mxu0 0
        %2090 = vmatpush1.bf16.msra.mxu0 0
        %2091 = vmatprep.subr.bf16.mxu0 0
        %2092 = vmatpush1.bf16.msra.mxu0 0
        %2093 = vmatprep.subr.bf16.mxu0 0
        %2094 = vmatpush1.bf16.msra.mxu0 0
        %2095 = vmatprep.subr.bf16.mxu0 0
        %2096 = vmatpush1.bf16.msra.mxu0 0
        %2097 = vmatprep.subr.bf16.mxu0 0
        %2098 = vmatpush1.bf16.msra.mxu0 0
        %2099 = vmatprep.subr.bf16.mxu0 0
        %2100 = vmatpush1.bf16.msra.mxu0 0
        %2101 = vmatprep.subr.bf16.mxu0 0
        %2102 = vmatpush1.bf16.msra.mxu0 0
        %2103 = vmatprep.mubr.bf16.mxu0 0
        %2104 = vmatmul.mubr.bf16.gmra.mrb[0].mxu0 %v1782
        %v2105 = vpop.f32.mrb[0].mxu0
        %v2106 = vadd.f32 %v1600, %v2105
        %v2107 = vpop.f32.mrb[0].mxu0
        %v2108 = vadd.f32 %v1604, %v2107
        %v2109 = vpop.f32.mrb[0].mxu0
        %v2110 = vpop.f32.mrb[0].mxu0
        %2111 = vdwg.mxu0
        %v2112 = vmax.f32 %v1819, 0.0
        %v2113 = vmax.f32 %v1821, 0.0
        %v2114 = vmax.f32 %v1860, 0.0
        %v2115 = vmax.f32 %v1862, 0.0
        %v2116 = vmax.f32 %v1901, 0.0
        %v2117 = vmax.f32 %v1903, 0.0
        %v2118 = vmax.f32 %v1942, 0.0
        %v2119 = vmax.f32 %v1944, 0.0
        %v2120 = vmax.f32 %v1983, 0.0
        %v2121 = vmax.f32 %v1985, 0.0
        %v2122 = vmax.f32 %v2024, 0.0
        %v2123 = vmax.f32 %v2026, 0.0
        %v2124 = vmax.f32 %v2065, 0.0
        %v2125 = vmax.f32 %v2067, 0.0
        %v2126 = vmax.f32 %v2106, 0.0
        %v2127 = vmax.f32 %v2108, 0.0
        %v2128 = vpack.c.bf16 %v2112, %v2112
        %v2129 = vpack.c.bf16 %v2113, %v2113
        %v2130 = vpack.c.bf16 %v2114, %v2114
        %v2131 = vpack.c.bf16 %v2115, %v2115
        %v2132 = vpack.c.bf16 %v2116, %v2116
        %v2133 = vpack.c.bf16 %v2117, %v2117
        %v2134 = vpack.c.bf16 %v2118, %v2118
        %v2135 = vpack.c.bf16 %v2119, %v2119
        %v2136 = vpack.c.bf16 %v2120, %v2120
        %v2137 = vpack.c.bf16 %v2121, %v2121
        %v2138 = vpack.c.bf16 %v2122, %v2122
        %v2139 = vpack.c.bf16 %v2123, %v2123
        %v2140 = vpack.c.bf16 %v2124, %v2124
        %v2141 = vpack.c.bf16 %v2125, %v2125
        %v2142 = vpack.c.bf16 %v2126, %v2126
        %v2143 = vpack.c.bf16 %v2127, %v2127
        %v2144 = vld [vmem:[%s14] sm:$0xf]
        %v2145 = vld [vmem:[%s14 + $0x4] sm:$0xf]
        %v2146 = vld [vmem:[%s14 + $0x8] sm:$0xf]
        %v2147 = vld [vmem:[%s14 + $0xc] sm:$0xf]
        %v2148 = vld [vmem:[%s14 + $0x10] sm:$0xf]
        %v2149 = vld [vmem:[%s14 + $0x14] sm:$0xf]
        %v2150 = vld [vmem:[%s14 + $0x18] sm:$0xf]
        %v2151 = vld [vmem:[%s14 + $0x1c] sm:$0xf]
        %v2152 = vld [vmem:[%s14 + $0x20] sm:$0xf]
        %v2153 = vld [vmem:[%s14 + $0x24] sm:$0xf]
        %v2154 = vld [vmem:[%s14 + $0x28] sm:$0xf]
        %v2155 = vld [vmem:[%s14 + $0x2c] sm:$0xf]
        %v2156 = vld [vmem:[%s14 + $0x30] sm:$0xf]
        %v2157 = vld [vmem:[%s14 + $0x34] sm:$0xf]
        %v2158 = vld [vmem:[%s14 + $0x38] sm:$0xf]
        %v2159 = vld [vmem:[%s14 + $0x3c] sm:$0xf]
        %v2160 = vld [vmem:[%s14 + $0x40] sm:$0xf]
        %v2161 = vld [vmem:[%s14 + $0x44] sm:$0xf]
        %v2162 = vld [vmem:[%s14 + $0x48] sm:$0xf]
        %v2163 = vld [vmem:[%s14 + $0x4c] sm:$0xf]
        %v2164 = vld [vmem:[%s14 + $0x50] sm:$0xf]
        %v2165 = vld [vmem:[%s14 + $0x54] sm:$0xf]
        %v2166 = vld [vmem:[%s14 + $0x58] sm:$0xf]
        %v2167 = vld [vmem:[%s14 + $0x5c] sm:$0xf]
        %v2168 = vld [vmem:[%s14 + $0x60] sm:$0xf]
        %v2169 = vld [vmem:[%s14 + $0x64] sm:$0xf]
        %v2170 = vld [vmem:[%s14 + $0x68] sm:$0xf]
        %v2171 = vld [vmem:[%s14 + $0x6c] sm:$0xf]
        %v2172 = vld [vmem:[%s14 + $0x70] sm:$0xf]
        %v2173 = vld [vmem:[%s14 + $0x74] sm:$0xf]
        %v2174 = vld [vmem:[%s14 + $0x78] sm:$0xf]
        %v2175 = vld [vmem:[%s14 + $0x7c] sm:$0xf]
        %v2176 = vld [vmem:[%s14 + $0x80] sm:$0xf]
        %v2177 = vld [vmem:[%s14 + $0x84] sm:$0xf]
        %v2178 = vld [vmem:[%s14 + $0x88] sm:$0xf]
        %v2179 = vld [vmem:[%s14 + $0x8c] sm:$0xf]
        %v2180 = vld [vmem:[%s14 + $0x90] sm:$0xf]
        %v2181 = vld [vmem:[%s14 + $0x94] sm:$0xf]
        %v2182 = vld [vmem:[%s14 + $0x98] sm:$0xf]
        %v2183 = vld [vmem:[%s14 + $0x9c] sm:$0xf]
        %v2184 = vld [vmem:[%s14 + $0xa0] sm:$0xf]
        %v2185 = vld [vmem:[%s14 + $0xa4] sm:$0xf]
        %v2186 = vld [vmem:[%s14 + $0xa8] sm:$0xf]
        %v2187 = vld [vmem:[%s14 + $0xac] sm:$0xf]
        %v2188 = vld [vmem:[%s14 + $0xb0] sm:$0xf]
        %v2189 = vld [vmem:[%s14 + $0xb4] sm:$0xf]
        %v2190 = vld [vmem:[%s14 + $0xb8] sm:$0xf]
        %v2191 = vld [vmem:[%s14 + $0xbc] sm:$0xf]
        %v2192 = vld [vmem:[%s14 + $0xc0] sm:$0xf]
        %v2193 = vld [vmem:[%s14 + $0xc4] sm:$0xf]
        %v2194 = vld [vmem:[%s14 + $0xc8] sm:$0xf]
        %v2195 = vld [vmem:[%s14 + $0xcc] sm:$0xf]
        %v2196 = vld [vmem:[%s14 + $0xd0] sm:$0xf]
        %v2197 = vld [vmem:[%s14 + $0xd4] sm:$0xf]
        %v2198 = vld [vmem:[%s14 + $0xd8] sm:$0xf]
        %v2199 = vld [vmem:[%s14 + $0xdc] sm:$0xf]
        %v2200 = vld [vmem:[%s14 + $0xe0] sm:$0xf]
        %v2201 = vld [vmem:[%s14 + $0xe4] sm:$0xf]
        %v2202 = vld [vmem:[%s14 + $0xe8] sm:$0xf]
        %v2203 = vld [vmem:[%s14 + $0xec] sm:$0xf]
        %v2204 = vld [vmem:[%s14 + $0xf0] sm:$0xf]
        %v2205 = vld [vmem:[%s14 + $0xf4] sm:$0xf]
        %v2206 = vld [vmem:[%s14 + $0xf8] sm:$0xf]
        %v2207 = vld [vmem:[%s14 + $0xfc] sm:$0xf]
        %v2208 = vld [vmem:[%s14 + $0x100] sm:$0xf]
        %v2209 = vld [vmem:[%s14 + $0x104] sm:$0xf]
        %v2210 = vld [vmem:[%s14 + $0x108] sm:$0xf]
        %v2211 = vld [vmem:[%s14 + $0x10c] sm:$0xf]
        %v2212 = vld [vmem:[%s14 + $0x110] sm:$0xf]
        %v2213 = vld [vmem:[%s14 + $0x114] sm:$0xf]
        %v2214 = vld [vmem:[%s14 + $0x118] sm:$0xf]
        %v2215 = vld [vmem:[%s14 + $0x11c] sm:$0xf]
        %v2216 = vld [vmem:[%s14 + $0x120] sm:$0xf]
        %v2217 = vld [vmem:[%s14 + $0x124] sm:$0xf]
        %v2218 = vld [vmem:[%s14 + $0x128] sm:$0xf]
        %v2219 = vld [vmem:[%s14 + $0x12c] sm:$0xf]
        %v2220 = vld [vmem:[%s14 + $0x130] sm:$0xf]
        %v2221 = vld [vmem:[%s14 + $0x134] sm:$0xf]
        %v2222 = vld [vmem:[%s14 + $0x138] sm:$0xf]
        %v2223 = vld [vmem:[%s14 + $0x13c] sm:$0xf]
        %v2224 = vld [vmem:[%s14 + $0x140] sm:$0xf]
        %v2225 = vld [vmem:[%s14 + $0x144] sm:$0xf]
        %v2226 = vld [vmem:[%s14 + $0x148] sm:$0xf]
        %v2227 = vld [vmem:[%s14 + $0x14c] sm:$0xf]
        %v2228 = vld [vmem:[%s14 + $0x150] sm:$0xf]
        %v2229 = vld [vmem:[%s14 + $0x154] sm:$0xf]
        %v2230 = vld [vmem:[%s14 + $0x158] sm:$0xf]
        %v2231 = vld [vmem:[%s14 + $0x15c] sm:$0xf]
        %v2232 = vld [vmem:[%s14 + $0x160] sm:$0xf]
        %v2233 = vld [vmem:[%s14 + $0x164] sm:$0xf]
        %v2234 = vld [vmem:[%s14 + $0x168] sm:$0xf]
        %v2235 = vld [vmem:[%s14 + $0x16c] sm:$0xf]
        %v2236 = vld [vmem:[%s14 + $0x170] sm:$0xf]
        %v2237 = vld [vmem:[%s14 + $0x174] sm:$0xf]
        %v2238 = vld [vmem:[%s14 + $0x178] sm:$0xf]
        %v2239 = vld [vmem:[%s14 + $0x17c] sm:$0xf]
        %v2240 = vld [vmem:[%s14 + $0x180] sm:$0xf]
        %v2241 = vld [vmem:[%s14 + $0x184] sm:$0xf]
        %v2242 = vld [vmem:[%s14 + $0x188] sm:$0xf]
        %v2243 = vld [vmem:[%s14 + $0x18c] sm:$0xf]
        %v2244 = vld [vmem:[%s14 + $0x190] sm:$0xf]
        %v2245 = vld [vmem:[%s14 + $0x194] sm:$0xf]
        %v2246 = vld [vmem:[%s14 + $0x198] sm:$0xf]
        %v2247 = vld [vmem:[%s14 + $0x19c] sm:$0xf]
        %v2248 = vld [vmem:[%s14 + $0x1a0] sm:$0xf]
        %v2249 = vld [vmem:[%s14 + $0x1a4] sm:$0xf]
        %v2250 = vld [vmem:[%s14 + $0x1a8] sm:$0xf]
        %v2251 = vld [vmem:[%s14 + $0x1ac] sm:$0xf]
        %v2252 = vld [vmem:[%s14 + $0x1b0] sm:$0xf]
        %v2253 = vld [vmem:[%s14 + $0x1b4] sm:$0xf]
        %v2254 = vld [vmem:[%s14 + $0x1b8] sm:$0xf]
        %v2255 = vld [vmem:[%s14 + $0x1bc] sm:$0xf]
        %v2256 = vld [vmem:[%s14 + $0x1c0] sm:$0xf]
        %v2257 = vld [vmem:[%s14 + $0x1c4] sm:$0xf]
        %v2258 = vld [vmem:[%s14 + $0x1c8] sm:$0xf]
        %v2259 = vld [vmem:[%s14 + $0x1cc] sm:$0xf]
        %v2260 = vld [vmem:[%s14 + $0x1d0] sm:$0xf]
        %v2261 = vld [vmem:[%s14 + $0x1d4] sm:$0xf]
        %v2262 = vld [vmem:[%s14 + $0x1d8] sm:$0xf]
        %v2263 = vld [vmem:[%s14 + $0x1dc] sm:$0xf]
        %v2264 = vld [vmem:[%s14 + $0x1e0] sm:$0xf]
        %v2265 = vld [vmem:[%s14 + $0x1e4] sm:$0xf]
        %v2266 = vld [vmem:[%s14 + $0x1e8] sm:$0xf]
        %v2267 = vld [vmem:[%s14 + $0x1ec] sm:$0xf]
        %v2268 = vld [vmem:[%s14 + $0x1f0] sm:$0xf]
        %v2269 = vld [vmem:[%s14 + $0x1f4] sm:$0xf]
        %v2270 = vld [vmem:[%s14 + $0x1f8] sm:$0xf]
        %v2271 = vld [vmem:[%s14 + $0x1fc] sm:$0xf]
        %v2272 = vld [vmem:[%s14 + $0x200] sm:$0xf]
        %v2273 = vld [vmem:[%s14 + $0x204] sm:$0xf]
        %v2274 = vld [vmem:[%s14 + $0x208] sm:$0xf]
        %v2275 = vld [vmem:[%s14 + $0x20c] sm:$0xf]
        %v2276 = vld [vmem:[%s14 + $0x210] sm:$0xf]
        %v2277 = vld [vmem:[%s14 + $0x214] sm:$0xf]
        %v2278 = vld [vmem:[%s14 + $0x218] sm:$0xf]
        %v2279 = vld [vmem:[%s14 + $0x21c] sm:$0xf]
        %v2280 = vld [vmem:[%s14 + $0x220] sm:$0xf]
        %v2281 = vld [vmem:[%s14 + $0x224] sm:$0xf]
        %v2282 = vld [vmem:[%s14 + $0x228] sm:$0xf]
        %v2283 = vld [vmem:[%s14 + $0x22c] sm:$0xf]
        %v2284 = vld [vmem:[%s14 + $0x230] sm:$0xf]
        %v2285 = vld [vmem:[%s14 + $0x234] sm:$0xf]
        %v2286 = vld [vmem:[%s14 + $0x238] sm:$0xf]
        %v2287 = vld [vmem:[%s14 + $0x23c] sm:$0xf]
        %v2288 = vld [vmem:[%s14 + $0x240] sm:$0xf]
        %v2289 = vld [vmem:[%s14 + $0x244] sm:$0xf]
        %v2290 = vld [vmem:[%s14 + $0x248] sm:$0xf]
        %v2291 = vld [vmem:[%s14 + $0x24c] sm:$0xf]
        %v2292 = vld [vmem:[%s14 + $0x250] sm:$0xf]
        %v2293 = vld [vmem:[%s14 + $0x254] sm:$0xf]
        %v2294 = vld [vmem:[%s14 + $0x258] sm:$0xf]
        %v2295 = vld [vmem:[%s14 + $0x25c] sm:$0xf]
        %v2296 = vld [vmem:[%s14 + $0x260] sm:$0xf]
        %v2297 = vld [vmem:[%s14 + $0x264] sm:$0xf]
        %v2298 = vld [vmem:[%s14 + $0x268] sm:$0xf]
        %v2299 = vld [vmem:[%s14 + $0x26c] sm:$0xf]
        %v2300 = vld [vmem:[%s14 + $0x270] sm:$0xf]
        %v2301 = vld [vmem:[%s14 + $0x274] sm:$0xf]
        %v2302 = vld [vmem:[%s14 + $0x278] sm:$0xf]
        %v2303 = vld [vmem:[%s14 + $0x27c] sm:$0xf]
        %v2304 = vld [vmem:[%s14 + $0x280] sm:$0xf]
        %v2305 = vld [vmem:[%s14 + $0x284] sm:$0xf]
        %v2306 = vld [vmem:[%s14 + $0x288] sm:$0xf]
        %v2307 = vld [vmem:[%s14 + $0x28c] sm:$0xf]
        %v2308 = vld [vmem:[%s14 + $0x290] sm:$0xf]
        %v2309 = vld [vmem:[%s14 + $0x294] sm:$0xf]
        %v2310 = vld [vmem:[%s14 + $0x298] sm:$0xf]
        %v2311 = vld [vmem:[%s14 + $0x29c] sm:$0xf]
        %v2312 = vld [vmem:[%s14 + $0x2a0] sm:$0xf]
        %v2313 = vld [vmem:[%s14 + $0x2a4] sm:$0xf]
        %v2314 = vld [vmem:[%s14 + $0x2a8] sm:$0xf]
        %v2315 = vld [vmem:[%s14 + $0x2ac] sm:$0xf]
        %v2316 = vld [vmem:[%s14 + $0x2b0] sm:$0xf]
        %v2317 = vld [vmem:[%s14 + $0x2b4] sm:$0xf]
        %v2318 = vld [vmem:[%s14 + $0x2b8] sm:$0xf]
        %v2319 = vld [vmem:[%s14 + $0x2bc] sm:$0xf]
        %v2320 = vld [vmem:[%s14 + $0x2c0] sm:$0xf]
        %v2321 = vld [vmem:[%s14 + $0x2c4] sm:$0xf]
        %v2322 = vld [vmem:[%s14 + $0x2c8] sm:$0xf]
        %v2323 = vld [vmem:[%s14 + $0x2cc] sm:$0xf]
        %v2324 = vld [vmem:[%s14 + $0x2d0] sm:$0xf]
        %v2325 = vld [vmem:[%s14 + $0x2d4] sm:$0xf]
        %v2326 = vld [vmem:[%s14 + $0x2d8] sm:$0xf]
        %v2327 = vld [vmem:[%s14 + $0x2dc] sm:$0xf]
        %v2328 = vld [vmem:[%s14 + $0x2e0] sm:$0xf]
        %v2329 = vld [vmem:[%s14 + $0x2e4] sm:$0xf]
        %v2330 = vld [vmem:[%s14 + $0x2e8] sm:$0xf]
        %v2331 = vld [vmem:[%s14 + $0x2ec] sm:$0xf]
        %v2332 = vld [vmem:[%s14 + $0x2f0] sm:$0xf]
        %v2333 = vld [vmem:[%s14 + $0x2f4] sm:$0xf]
        %v2334 = vld [vmem:[%s14 + $0x2f8] sm:$0xf]
        %v2335 = vld [vmem:[%s14 + $0x2fc] sm:$0xf]
        %v2336 = vld [vmem:[%s14 + $0x300] sm:$0xf]
        %v2337 = vld [vmem:[%s14 + $0x304] sm:$0xf]
        %v2338 = vld [vmem:[%s14 + $0x308] sm:$0xf]
        %v2339 = vld [vmem:[%s14 + $0x30c] sm:$0xf]
        %v2340 = vld [vmem:[%s14 + $0x310] sm:$0xf]
        %v2341 = vld [vmem:[%s14 + $0x314] sm:$0xf]
        %v2342 = vld [vmem:[%s14 + $0x318] sm:$0xf]
        %v2343 = vld [vmem:[%s14 + $0x31c] sm:$0xf]
        %v2344 = vld [vmem:[%s14 + $0x320] sm:$0xf]
        %v2345 = vld [vmem:[%s14 + $0x324] sm:$0xf]
        %v2346 = vld [vmem:[%s14 + $0x328] sm:$0xf]
        %v2347 = vld [vmem:[%s14 + $0x32c] sm:$0xf]
        %v2348 = vld [vmem:[%s14 + $0x330] sm:$0xf]
        %v2349 = vld [vmem:[%s14 + $0x334] sm:$0xf]
        %v2350 = vld [vmem:[%s14 + $0x338] sm:$0xf]
        %v2351 = vld [vmem:[%s14 + $0x33c] sm:$0xf]
        %v2352 = vld [vmem:[%s14 + $0x340] sm:$0xf]
        %v2353 = vld [vmem:[%s14 + $0x344] sm:$0xf]
        %v2354 = vld [vmem:[%s14 + $0x348] sm:$0xf]
        %v2355 = vld [vmem:[%s14 + $0x34c] sm:$0xf]
        %v2356 = vld [vmem:[%s14 + $0x350] sm:$0xf]
        %v2357 = vld [vmem:[%s14 + $0x354] sm:$0xf]
        %v2358 = vld [vmem:[%s14 + $0x358] sm:$0xf]
        %v2359 = vld [vmem:[%s14 + $0x35c] sm:$0xf]
        %v2360 = vld [vmem:[%s14 + $0x360] sm:$0xf]
        %v2361 = vld [vmem:[%s14 + $0x364] sm:$0xf]
        %v2362 = vld [vmem:[%s14 + $0x368] sm:$0xf]
        %v2363 = vld [vmem:[%s14 + $0x36c] sm:$0xf]
        %v2364 = vld [vmem:[%s14 + $0x370] sm:$0xf]
        %v2365 = vld [vmem:[%s14 + $0x374] sm:$0xf]
        %v2366 = vld [vmem:[%s14 + $0x378] sm:$0xf]
        %v2367 = vld [vmem:[%s14 + $0x37c] sm:$0xf]
        %v2368 = vld [vmem:[%s14 + $0x380] sm:$0xf]
        %v2369 = vld [vmem:[%s14 + $0x384] sm:$0xf]
        %v2370 = vld [vmem:[%s14 + $0x388] sm:$0xf]
        %v2371 = vld [vmem:[%s14 + $0x38c] sm:$0xf]
        %v2372 = vld [vmem:[%s14 + $0x390] sm:$0xf]
        %v2373 = vld [vmem:[%s14 + $0x394] sm:$0xf]
        %v2374 = vld [vmem:[%s14 + $0x398] sm:$0xf]
        %v2375 = vld [vmem:[%s14 + $0x39c] sm:$0xf]
        %v2376 = vld [vmem:[%s14 + $0x3a0] sm:$0xf]
        %v2377 = vld [vmem:[%s14 + $0x3a4] sm:$0xf]
        %v2378 = vld [vmem:[%s14 + $0x3a8] sm:$0xf]
        %v2379 = vld [vmem:[%s14 + $0x3ac] sm:$0xf]
        %v2380 = vld [vmem:[%s14 + $0x3b0] sm:$0xf]
        %v2381 = vld [vmem:[%s14 + $0x3b4] sm:$0xf]
        %v2382 = vld [vmem:[%s14 + $0x3b8] sm:$0xf]
        %v2383 = vld [vmem:[%s14 + $0x3bc] sm:$0xf]
        %v2384 = vld [vmem:[%s14 + $0x3c0] sm:$0xf]
        %v2385 = vld [vmem:[%s14 + $0x3c4] sm:$0xf]
        %v2386 = vld [vmem:[%s14 + $0x3c8] sm:$0xf]
        %v2387 = vld [vmem:[%s14 + $0x3cc] sm:$0xf]
        %v2388 = vld [vmem:[%s14 + $0x3d0] sm:$0xf]
        %v2389 = vld [vmem:[%s14 + $0x3d4] sm:$0xf]
        %v2390 = vld [vmem:[%s14 + $0x3d8] sm:$0xf]
        %v2391 = vld [vmem:[%s14 + $0x3dc] sm:$0xf]
        %v2392 = vld [vmem:[%s14 + $0x3e0] sm:$0xf]
        %v2393 = vld [vmem:[%s14 + $0x3e4] sm:$0xf]
        %v2394 = vld [vmem:[%s14 + $0x3e8] sm:$0xf]
        %v2395 = vld [vmem:[%s14 + $0x3ec] sm:$0xf]
        %v2396 = vld [vmem:[%s14 + $0x3f0] sm:$0xf]
        %v2397 = vld [vmem:[%s14 + $0x3f4] sm:$0xf]
        %v2398 = vld [vmem:[%s14 + $0x3f8] sm:$0xf]
        %v2399 = vld [vmem:[%s14 + $0x3fc] sm:$0xf]
        %v2400 = vld [vmem:[%s15] sm:$0x1]
        %v2402 = vlaneseq
        %v2403 = vshrl.u32 %v2402, 7
        %v2404 = vsub.s32 0, %v2403
        %v2405 = vrot.slane %v2400, %v2404
        %v2663 = vunpack.c.l.b16 %v2144
        %v2664 = vunpack.c.l.b16 %v2145
        %v2665 = vunpack.c.l.b16 %v2146
        %v2666 = vunpack.c.l.b16 %v2147
        %v2667 = vunpack.c.l.b16 %v2148
        %v2668 = vunpack.c.l.b16 %v2149
        %v2669 = vunpack.c.l.b16 %v2150
        %v2670 = vunpack.c.l.b16 %v2151
        %v2671 = vunpack.c.l.b16 %v2152
        %v2672 = vunpack.c.l.b16 %v2153
        %v2673 = vunpack.c.l.b16 %v2154
        %v2674 = vunpack.c.l.b16 %v2155
        %v2675 = vunpack.c.l.b16 %v2156
        %v2676 = vunpack.c.l.b16 %v2157
        %v2677 = vunpack.c.l.b16 %v2158
        %v2678 = vunpack.c.l.b16 %v2159
        %v2679 = vunpack.c.l.b16 %v2160
        %v2680 = vunpack.c.l.b16 %v2161
        %v2681 = vunpack.c.l.b16 %v2162
        %v2682 = vunpack.c.l.b16 %v2163
        %v2683 = vunpack.c.l.b16 %v2164
        %v2684 = vunpack.c.l.b16 %v2165
        %v2685 = vunpack.c.l.b16 %v2166
        %v2686 = vunpack.c.l.b16 %v2167
        %v2687 = vunpack.c.l.b16 %v2168
        %v2688 = vunpack.c.l.b16 %v2169
        %v2689 = vunpack.c.l.b16 %v2170
        %v2690 = vunpack.c.l.b16 %v2171
        %v2691 = vunpack.c.l.b16 %v2172
        %v2692 = vunpack.c.l.b16 %v2173
        %v2693 = vunpack.c.l.b16 %v2174
        %v2694 = vunpack.c.l.b16 %v2175
        %v2695 = vunpack.c.l.b16 %v2176
        %v2696 = vunpack.c.l.b16 %v2177
        %v2697 = vunpack.c.l.b16 %v2178
        %v2698 = vunpack.c.l.b16 %v2179
        %v2699 = vunpack.c.l.b16 %v2180
        %v2700 = vunpack.c.l.b16 %v2181
        %v2701 = vunpack.c.l.b16 %v2182
        %v2702 = vunpack.c.l.b16 %v2183
        %v2703 = vunpack.c.l.b16 %v2184
        %v2704 = vunpack.c.l.b16 %v2185
        %v2705 = vunpack.c.l.b16 %v2186
        %v2706 = vunpack.c.l.b16 %v2187
        %v2707 = vunpack.c.l.b16 %v2188
        %v2708 = vunpack.c.l.b16 %v2189
        %v2709 = vunpack.c.l.b16 %v2190
        %v2710 = vunpack.c.l.b16 %v2191
        %v2711 = vunpack.c.l.b16 %v2192
        %v2712 = vunpack.c.l.b16 %v2193
        %v2713 = vunpack.c.l.b16 %v2194
        %v2714 = vunpack.c.l.b16 %v2195
        %v2715 = vunpack.c.l.b16 %v2196
        %v2716 = vunpack.c.l.b16 %v2197
        %v2717 = vunpack.c.l.b16 %v2198
        %v2718 = vunpack.c.l.b16 %v2199
        %v2719 = vunpack.c.l.b16 %v2200
        %v2720 = vunpack.c.l.b16 %v2201
        %v2721 = vunpack.c.l.b16 %v2202
        %v2722 = vunpack.c.l.b16 %v2203
        %v2723 = vunpack.c.l.b16 %v2204
        %v2724 = vunpack.c.l.b16 %v2205
        %v2725 = vunpack.c.l.b16 %v2206
        %v2726 = vunpack.c.l.b16 %v2207
        %v2727 = vunpack.c.l.b16 %v2208
        %v2728 = vunpack.c.l.b16 %v2209
        %v2729 = vunpack.c.l.b16 %v2210
        %v2730 = vunpack.c.l.b16 %v2211
        %v2731 = vunpack.c.l.b16 %v2212
        %v2732 = vunpack.c.l.b16 %v2213
        %v2733 = vunpack.c.l.b16 %v2214
        %v2734 = vunpack.c.l.b16 %v2215
        %v2735 = vunpack.c.l.b16 %v2216
        %v2736 = vunpack.c.l.b16 %v2217
        %v2737 = vunpack.c.l.b16 %v2218
        %v2738 = vunpack.c.l.b16 %v2219
        %v2739 = vunpack.c.l.b16 %v2220
        %v2740 = vunpack.c.l.b16 %v2221
        %v2741 = vunpack.c.l.b16 %v2222
        %v2742 = vunpack.c.l.b16 %v2223
        %v2743 = vunpack.c.l.b16 %v2224
        %v2744 = vunpack.c.l.b16 %v2225
        %v2745 = vunpack.c.l.b16 %v2226
        %v2746 = vunpack.c.l.b16 %v2227
        %v2747 = vunpack.c.l.b16 %v2228
        %v2748 = vunpack.c.l.b16 %v2229
        %v2749 = vunpack.c.l.b16 %v2230
        %v2750 = vunpack.c.l.b16 %v2231
        %v2751 = vunpack.c.l.b16 %v2232
        %v2752 = vunpack.c.l.b16 %v2233
        %v2753 = vunpack.c.l.b16 %v2234
        %v2754 = vunpack.c.l.b16 %v2235
        %v2755 = vunpack.c.l.b16 %v2236
        %v2756 = vunpack.c.l.b16 %v2237
        %v2757 = vunpack.c.l.b16 %v2238
        %v2758 = vunpack.c.l.b16 %v2239
        %v2759 = vunpack.c.l.b16 %v2240
        %v2760 = vunpack.c.l.b16 %v2241
        %v2761 = vunpack.c.l.b16 %v2242
        %v2762 = vunpack.c.l.b16 %v2243
        %v2763 = vunpack.c.l.b16 %v2244
        %v2764 = vunpack.c.l.b16 %v2245
        %v2765 = vunpack.c.l.b16 %v2246
        %v2766 = vunpack.c.l.b16 %v2247
        %v2767 = vunpack.c.l.b16 %v2248
        %v2768 = vunpack.c.l.b16 %v2249
        %v2769 = vunpack.c.l.b16 %v2250
        %v2770 = vunpack.c.l.b16 %v2251
        %v2771 = vunpack.c.l.b16 %v2252
        %v2772 = vunpack.c.l.b16 %v2253
        %v2773 = vunpack.c.l.b16 %v2254
        %v2774 = vunpack.c.l.b16 %v2255
        %v2775 = vunpack.c.l.b16 %v2256
        %v2776 = vunpack.c.l.b16 %v2257
        %v2777 = vunpack.c.l.b16 %v2258
        %v2778 = vunpack.c.l.b16 %v2259
        %v2779 = vunpack.c.l.b16 %v2260
        %v2780 = vunpack.c.l.b16 %v2261
        %v2781 = vunpack.c.l.b16 %v2262
        %v2782 = vunpack.c.l.b16 %v2263
        %v2783 = vunpack.c.l.b16 %v2264
        %v2784 = vunpack.c.l.b16 %v2265
        %v2785 = vunpack.c.l.b16 %v2266
        %v2786 = vunpack.c.l.b16 %v2267
        %v2787 = vunpack.c.l.b16 %v2268
        %v2788 = vunpack.c.l.b16 %v2269
        %v2789 = vunpack.c.l.b16 %v2270
        %v2790 = vunpack.c.l.b16 %v2271
        %v2791 = vunpack.c.l.b16 %v2272
        %v2792 = vunpack.c.l.b16 %v2273
        %v2793 = vunpack.c.l.b16 %v2274
        %v2794 = vunpack.c.l.b16 %v2275
        %v2795 = vunpack.c.l.b16 %v2276
        %v2796 = vunpack.c.l.b16 %v2277
        %v2797 = vunpack.c.l.b16 %v2278
        %v2798 = vunpack.c.l.b16 %v2279
        %v2799 = vunpack.c.l.b16 %v2280
        %v2800 = vunpack.c.l.b16 %v2281
        %v2801 = vunpack.c.l.b16 %v2282
        %v2802 = vunpack.c.l.b16 %v2283
        %v2803 = vunpack.c.l.b16 %v2284
        %v2804 = vunpack.c.l.b16 %v2285
        %v2805 = vunpack.c.l.b16 %v2286
        %v2806 = vunpack.c.l.b16 %v2287
        %v2807 = vunpack.c.l.b16 %v2288
        %v2808 = vunpack.c.l.b16 %v2289
        %v2809 = vunpack.c.l.b16 %v2290
        %v2810 = vunpack.c.l.b16 %v2291
        %v2811 = vunpack.c.l.b16 %v2292
        %v2812 = vunpack.c.l.b16 %v2293
        %v2813 = vunpack.c.l.b16 %v2294
        %v2814 = vunpack.c.l.b16 %v2295
        %v2815 = vunpack.c.l.b16 %v2296
        %v2816 = vunpack.c.l.b16 %v2297
        %v2817 = vunpack.c.l.b16 %v2298
        %v2818 = vunpack.c.l.b16 %v2299
        %v2819 = vunpack.c.l.b16 %v2300
        %v2820 = vunpack.c.l.b16 %v2301
        %v2821 = vunpack.c.l.b16 %v2302
        %v2822 = vunpack.c.l.b16 %v2303
        %v2823 = vunpack.c.l.b16 %v2304
        %v2824 = vunpack.c.l.b16 %v2305
        %v2825 = vunpack.c.l.b16 %v2306
        %v2826 = vunpack.c.l.b16 %v2307
        %v2827 = vunpack.c.l.b16 %v2308
        %v2828 = vunpack.c.l.b16 %v2309
        %v2829 = vunpack.c.l.b16 %v2310
        %v2830 = vunpack.c.l.b16 %v2311
        %v2831 = vunpack.c.l.b16 %v2312
        %v2832 = vunpack.c.l.b16 %v2313
        %v2833 = vunpack.c.l.b16 %v2314
        %v2834 = vunpack.c.l.b16 %v2315
        %v2835 = vunpack.c.l.b16 %v2316
        %v2836 = vunpack.c.l.b16 %v2317
        %v2837 = vunpack.c.l.b16 %v2318
        %v2838 = vunpack.c.l.b16 %v2319
        %v2839 = vunpack.c.l.b16 %v2320
        %v2840 = vunpack.c.l.b16 %v2321
        %v2841 = vunpack.c.l.b16 %v2322
        %v2842 = vunpack.c.l.b16 %v2323
        %v2843 = vunpack.c.l.b16 %v2324
        %v2844 = vunpack.c.l.b16 %v2325
        %v2845 = vunpack.c.l.b16 %v2326
        %v2846 = vunpack.c.l.b16 %v2327
        %v2847 = vunpack.c.l.b16 %v2328
        %v2848 = vunpack.c.l.b16 %v2329
        %v2849 = vunpack.c.l.b16 %v2330
        %v2850 = vunpack.c.l.b16 %v2331
        %v2851 = vunpack.c.l.b16 %v2332
        %v2852 = vunpack.c.l.b16 %v2333
        %v2853 = vunpack.c.l.b16 %v2334
        %v2854 = vunpack.c.l.b16 %v2335
        %v2855 = vunpack.c.l.b16 %v2336
        %v2856 = vunpack.c.l.b16 %v2337
        %v2857 = vunpack.c.l.b16 %v2338
        %v2858 = vunpack.c.l.b16 %v2339
        %v2859 = vunpack.c.l.b16 %v2340
        %v2860 = vunpack.c.l.b16 %v2341
        %v2861 = vunpack.c.l.b16 %v2342
        %v2862 = vunpack.c.l.b16 %v2343
        %v2863 = vunpack.c.l.b16 %v2344
        %v2864 = vunpack.c.l.b16 %v2345
        %v2865 = vunpack.c.l.b16 %v2346
        %v2866 = vunpack.c.l.b16 %v2347
        %v2867 = vunpack.c.l.b16 %v2348
        %v2868 = vunpack.c.l.b16 %v2349
        %v2869 = vunpack.c.l.b16 %v2350
        %v2870 = vunpack.c.l.b16 %v2351
        %v2871 = vunpack.c.l.b16 %v2352
        %v2872 = vunpack.c.l.b16 %v2353
        %v2873 = vunpack.c.l.b16 %v2354
        %v2874 = vunpack.c.l.b16 %v2355
        %v2875 = vunpack.c.l.b16 %v2356
        %v2876 = vunpack.c.l.b16 %v2357
        %v2877 = vunpack.c.l.b16 %v2358
        %v2878 = vunpack.c.l.b16 %v2359
        %v2879 = vunpack.c.l.b16 %v2360
        %v2880 = vunpack.c.l.b16 %v2361
        %v2881 = vunpack.c.l.b16 %v2362
        %v2882 = vunpack.c.l.b16 %v2363
        %v2883 = vunpack.c.l.b16 %v2364
        %v2884 = vunpack.c.l.b16 %v2365
        %v2885 = vunpack.c.l.b16 %v2366
        %v2886 = vunpack.c.l.b16 %v2367
        %v2887 = vunpack.c.l.b16 %v2368
        %v2888 = vunpack.c.l.b16 %v2369
        %v2889 = vunpack.c.l.b16 %v2370
        %v2890 = vunpack.c.l.b16 %v2371
        %v2891 = vunpack.c.l.b16 %v2372
        %v2892 = vunpack.c.l.b16 %v2373
        %v2893 = vunpack.c.l.b16 %v2374
        %v2894 = vunpack.c.l.b16 %v2375
        %v2895 = vunpack.c.l.b16 %v2376
        %v2896 = vunpack.c.l.b16 %v2377
        %v2897 = vunpack.c.l.b16 %v2378
        %v2898 = vunpack.c.l.b16 %v2379
        %v2899 = vunpack.c.l.b16 %v2380
        %v2900 = vunpack.c.l.b16 %v2381
        %v2901 = vunpack.c.l.b16 %v2382
        %v2902 = vunpack.c.l.b16 %v2383
        %v2903 = vunpack.c.l.b16 %v2384
        %v2904 = vunpack.c.l.b16 %v2385
        %v2905 = vunpack.c.l.b16 %v2386
        %v2906 = vunpack.c.l.b16 %v2387
        %v2907 = vunpack.c.l.b16 %v2388
        %v2908 = vunpack.c.l.b16 %v2389
        %v2909 = vunpack.c.l.b16 %v2390
        %v2910 = vunpack.c.l.b16 %v2391
        %v2911 = vunpack.c.l.b16 %v2392
        %v2912 = vunpack.c.l.b16 %v2393
        %v2913 = vunpack.c.l.b16 %v2394
        %v2914 = vunpack.c.l.b16 %v2395
        %v2915 = vunpack.c.l.b16 %v2396
        %v2916 = vunpack.c.l.b16 %v2397
        %v2917 = vunpack.c.l.b16 %v2398
        %v2918 = vunpack.c.l.b16 %v2399
        %v2919 = vpack.c.b16 %v2664, %v2663
        %v2920 = vpack.c.b16 %v2666, %v2665
        %v2921 = vpack.c.b16 %v2668, %v2667
        %v2922 = vpack.c.b16 %v2670, %v2669
        %v2923 = vpack.c.b16 %v2672, %v2671
        %v2924 = vpack.c.b16 %v2674, %v2673
        %v2925 = vpack.c.b16 %v2676, %v2675
        %v2926 = vpack.c.b16 %v2678, %v2677
        %v2927 = vpack.c.b16 %v2680, %v2679
        %v2928 = vpack.c.b16 %v2682, %v2681
        %v2929 = vpack.c.b16 %v2684, %v2683
        %v2930 = vpack.c.b16 %v2686, %v2685
        %v2931 = vpack.c.b16 %v2688, %v2687
        %v2932 = vpack.c.b16 %v2690, %v2689
        %v2933 = vpack.c.b16 %v2692, %v2691
        %v2934 = vpack.c.b16 %v2694, %v2693
        %v2935 = vpack.c.b16 %v2696, %v2695
        %v2936 = vpack.c.b16 %v2698, %v2697
        %v2937 = vpack.c.b16 %v2700, %v2699
        %v2938 = vpack.c.b16 %v2702, %v2701
        %v2939 = vpack.c.b16 %v2704, %v2703
        %v2940 = vpack.c.b16 %v2706, %v2705
        %v2941 = vpack.c.b16 %v2708, %v2707
        %v2942 = vpack.c.b16 %v2710, %v2709
        %v2943 = vpack.c.b16 %v2712, %v2711
        %v2944 = vpack.c.b16 %v2714, %v2713
        %v2945 = vpack.c.b16 %v2716, %v2715
        %v2946 = vpack.c.b16 %v2718, %v2717
        %v2947 = vpack.c.b16 %v2720, %v2719
        %v2948 = vpack.c.b16 %v2722, %v2721
        %v2949 = vpack.c.b16 %v2724, %v2723
        %v2950 = vpack.c.b16 %v2726, %v2725
        %v2951 = vpack.c.b16 %v2728, %v2727
        %v2952 = vpack.c.b16 %v2730, %v2729
        %v2953 = vpack.c.b16 %v2732, %v2731
        %v2954 = vpack.c.b16 %v2734, %v2733
        %v2955 = vpack.c.b16 %v2736, %v2735
        %v2956 = vpack.c.b16 %v2738, %v2737
        %v2957 = vpack.c.b16 %v2740, %v2739
        %v2958 = vpack.c.b16 %v2742, %v2741
        %v2959 = vpack.c.b16 %v2744, %v2743
        %v2960 = vpack.c.b16 %v2746, %v2745
        %v2961 = vpack.c.b16 %v2748, %v2747
        %v2962 = vpack.c.b16 %v2750, %v2749
        %v2963 = vpack.c.b16 %v2752, %v2751
        %v2964 = vpack.c.b16 %v2754, %v2753
        %v2965 = vpack.c.b16 %v2756, %v2755
        %v2966 = vpack.c.b16 %v2758, %v2757
        %v2967 = vpack.c.b16 %v2760, %v2759
        %v2968 = vpack.c.b16 %v2762, %v2761
        %v2969 = vpack.c.b16 %v2764, %v2763
        %v2970 = vpack.c.b16 %v2766, %v2765
        %v2971 = vpack.c.b16 %v2768, %v2767
        %v2972 = vpack.c.b16 %v2770, %v2769
        %v2973 = vpack.c.b16 %v2772, %v2771
        %v2974 = vpack.c.b16 %v2774, %v2773
        %v2975 = vpack.c.b16 %v2776, %v2775
        %v2976 = vpack.c.b16 %v2778, %v2777
        %v2977 = vpack.c.b16 %v2780, %v2779
        %v2978 = vpack.c.b16 %v2782, %v2781
        %v2979 = vpack.c.b16 %v2784, %v2783
        %v2980 = vpack.c.b16 %v2786, %v2785
        %v2981 = vpack.c.b16 %v2788, %v2787
        %v2982 = vpack.c.b16 %v2790, %v2789
        %v2983 = vpack.c.b16 %v2792, %v2791
        %v2984 = vpack.c.b16 %v2794, %v2793
        %v2985 = vpack.c.b16 %v2796, %v2795
        %v2986 = vpack.c.b16 %v2798, %v2797
        %v2987 = vpack.c.b16 %v2800, %v2799
        %v2988 = vpack.c.b16 %v2802, %v2801
        %v2989 = vpack.c.b16 %v2804, %v2803
        %v2990 = vpack.c.b16 %v2806, %v2805
        %v2991 = vpack.c.b16 %v2808, %v2807
        %v2992 = vpack.c.b16 %v2810, %v2809
        %v2993 = vpack.c.b16 %v2812, %v2811
        %v2994 = vpack.c.b16 %v2814, %v2813
        %v2995 = vpack.c.b16 %v2816, %v2815
        %v2996 = vpack.c.b16 %v2818, %v2817
        %v2997 = vpack.c.b16 %v2820, %v2819
        %v2998 = vpack.c.b16 %v2822, %v2821
        %v2999 = vpack.c.b16 %v2824, %v2823
        %v3000 = vpack.c.b16 %v2826, %v2825
        %v3001 = vpack.c.b16 %v2828, %v2827
        %v3002 = vpack.c.b16 %v2830, %v2829
        %v3003 = vpack.c.b16 %v2832, %v2831
        %v3004 = vpack.c.b16 %v2834, %v2833
        %v3005 = vpack.c.b16 %v2836, %v2835
        %v3006 = vpack.c.b16 %v2838, %v2837
        %v3007 = vpack.c.b16 %v2840, %v2839
        %v3008 = vpack.c.b16 %v2842, %v2841
        %v3009 = vpack.c.b16 %v2844, %v2843
        %v3010 = vpack.c.b16 %v2846, %v2845
        %v3011 = vpack.c.b16 %v2848, %v2847
        %v3012 = vpack.c.b16 %v2850, %v2849
        %v3013 = vpack.c.b16 %v2852, %v2851
        %v3014 = vpack.c.b16 %v2854, %v2853
        %v3015 = vpack.c.b16 %v2856, %v2855
        %v3016 = vpack.c.b16 %v2858, %v2857
        %v3017 = vpack.c.b16 %v2860, %v2859
        %v3018 = vpack.c.b16 %v2862, %v2861
        %v3019 = vpack.c.b16 %v2864, %v2863
        %v3020 = vpack.c.b16 %v2866, %v2865
        %v3021 = vpack.c.b16 %v2868, %v2867
        %v3022 = vpack.c.b16 %v2870, %v2869
        %v3023 = vpack.c.b16 %v2872, %v2871
        %v3024 = vpack.c.b16 %v2874, %v2873
        %v3025 = vpack.c.b16 %v2876, %v2875
        %v3026 = vpack.c.b16 %v2878, %v2877
        %v3027 = vpack.c.b16 %v2880, %v2879
        %v3028 = vpack.c.b16 %v2882, %v2881
        %v3029 = vpack.c.b16 %v2884, %v2883
        %v3030 = vpack.c.b16 %v2886, %v2885
        %v3031 = vpack.c.b16 %v2888, %v2887
        %v3032 = vpack.c.b16 %v2890, %v2889
        %v3033 = vpack.c.b16 %v2892, %v2891
        %v3034 = vpack.c.b16 %v2894, %v2893
        %v3035 = vpack.c.b16 %v2896, %v2895
        %v3036 = vpack.c.b16 %v2898, %v2897
        %v3037 = vpack.c.b16 %v2900, %v2899
        %v3038 = vpack.c.b16 %v2902, %v2901
        %v3039 = vpack.c.b16 %v2904, %v2903
        %v3040 = vpack.c.b16 %v2906, %v2905
        %v3041 = vpack.c.b16 %v2908, %v2907
        %v3042 = vpack.c.b16 %v2910, %v2909
        %v3043 = vpack.c.b16 %v2912, %v2911
        %v3044 = vpack.c.b16 %v2914, %v2913
        %v3045 = vpack.c.b16 %v2916, %v2915
        %v3046 = vpack.c.b16 %v2918, %v2917
        %3175 = vmatprep.subr.bf16.mxu0 0
        %3176 = vmatpush1.bf16.msra.mxu0 %v2919
        %3177 = vmatprep.subr.bf16.mxu0 0
        %3178 = vmatpush1.bf16.msra.mxu0 %v2920
        %3179 = vmatprep.subr.bf16.mxu0 0
        %3180 = vmatpush1.bf16.msra.mxu0 %v2921
        %3181 = vmatprep.subr.bf16.mxu0 0
        %3182 = vmatpush1.bf16.msra.mxu0 %v2922
        %3183 = vmatprep.subr.bf16.mxu0 0
        %3184 = vmatpush1.bf16.msra.mxu0 %v2923
        %3185 = vmatprep.subr.bf16.mxu0 0
        %3186 = vmatpush1.bf16.msra.mxu0 %v2924
        %3187 = vmatprep.subr.bf16.mxu0 0
        %3188 = vmatpush1.bf16.msra.mxu0 %v2925
        %3189 = vmatprep.subr.bf16.mxu0 0
        %3190 = vmatpush1.bf16.msra.mxu0 %v2926
        %3191 = vmatprep.subr.bf16.mxu0 0
        %3192 = vmatpush1.bf16.msra.mxu0 %v2927
        %3193 = vmatprep.subr.bf16.mxu0 0
        %3194 = vmatpush1.bf16.msra.mxu0 %v2928
        %3195 = vmatprep.subr.bf16.mxu0 0
        %3196 = vmatpush1.bf16.msra.mxu0 %v2929
        %3197 = vmatprep.subr.bf16.mxu0 0
        %3198 = vmatpush1.bf16.msra.mxu0 %v2930
        %3199 = vmatprep.subr.bf16.mxu0 0
        %3200 = vmatpush1.bf16.msra.mxu0 %v2931
        %3201 = vmatprep.subr.bf16.mxu0 0
        %3202 = vmatpush1.bf16.msra.mxu0 %v2932
        %3203 = vmatprep.subr.bf16.mxu0 0
        %3204 = vmatpush1.bf16.msra.mxu0 %v2933
        %3205 = vmatprep.subr.bf16.mxu0 0
        %3206 = vmatpush1.bf16.msra.mxu0 %v2934
        %3207 = vmatprep.mubr.bf16.mxu0 %v2129
        %3208 = vmatmul.mubr.bf16.gmra.mrb[0].mxu0 %v2128
        %v3209 = vpop.f32.mrb[0].mxu0
        %v3210 = vadd.f32 %v2405, %v3209
        %v3211 = vpop.f32.mrb[0].mxu0
        %v3212 = vpop.f32.mrb[0].mxu0
        %v3213 = vpop.f32.mrb[0].mxu0
        %3214 = vdwg.mxu0
        %3215 = vmatprep.subr.bf16.mxu0 0
        %3216 = vmatpush1.bf16.msra.mxu0 %v2935
        %3217 = vmatprep.subr.bf16.mxu0 0
        %3218 = vmatpush1.bf16.msra.mxu0 %v2936
        %3219 = vmatprep.subr.bf16.mxu0 0
        %3220 = vmatpush1.bf16.msra.mxu0 %v2937
        %3221 = vmatprep.subr.bf16.mxu0 0
        %3222 = vmatpush1.bf16.msra.mxu0 %v2938
        %3223 = vmatprep.subr.bf16.mxu0 0
        %3224 = vmatpush1.bf16.msra.mxu0 %v2939
        %3225 = vmatprep.subr.bf16.mxu0 0
        %3226 = vmatpush1.bf16.msra.mxu0 %v2940
        %3227 = vmatprep.subr.bf16.mxu0 0
        %3228 = vmatpush1.bf16.msra.mxu0 %v2941
        %3229 = vmatprep.subr.bf16.mxu0 0
        %3230 = vmatpush1.bf16.msra.mxu0 %v2942
        %3231 = vmatprep.subr.bf16.mxu0 0
        %3232 = vmatpush1.bf16.msra.mxu0 %v2943
        %3233 = vmatprep.subr.bf16.mxu0 0
        %3234 = vmatpush1.bf16.msra.mxu0 %v2944
        %3235 = vmatprep.subr.bf16.mxu0 0
        %3236 = vmatpush1.bf16.msra.mxu0 %v2945
        %3237 = vmatprep.subr.bf16.mxu0 0
        %3238 = vmatpush1.bf16.msra.mxu0 %v2946
        %3239 = vmatprep.subr.bf16.mxu0 0
        %3240 = vmatpush1.bf16.msra.mxu0 %v2947
        %3241 = vmatprep.subr.bf16.mxu0 0
        %3242 = vmatpush1.bf16.msra.mxu0 %v2948
        %3243 = vmatprep.subr.bf16.mxu0 0
        %3244 = vmatpush1.bf16.msra.mxu0 %v2949
        %3245 = vmatprep.subr.bf16.mxu0 0
        %3246 = vmatpush1.bf16.msra.mxu0 %v2950
        %3247 = vmatprep.mubr.bf16.mxu0 %v2131
        %3248 = vmatmul.mubr.bf16.gmra.mrb[0].mxu0 %v2130
        %v3249 = vpop.f32.mrb[0].mxu0
        %v3250 = vadd.f32 %v3210, %v3249
        %v3251 = vpop.f32.mrb[0].mxu0
        %v3252 = vpop.f32.mrb[0].mxu0
        %v3253 = vpop.f32.mrb[0].mxu0
        %3254 = vdwg.mxu0
        %3255 = vmatprep.subr.bf16.mxu0 0
        %3256 = vmatpush1.bf16.msra.mxu0 %v2951
        %3257 = vmatprep.subr.bf16.mxu0 0
        %3258 = vmatpush1.bf16.msra.mxu0 %v2952
        %3259 = vmatprep.subr.bf16.mxu0 0
        %3260 = vmatpush1.bf16.msra.mxu0 %v2953
        %3261 = vmatprep.subr.bf16.mxu0 0
        %3262 = vmatpush1.bf16.msra.mxu0 %v2954
        %3263 = vmatprep.subr.bf16.mxu0 0
        %3264 = vmatpush1.bf16.msra.mxu0 %v2955
        %3265 = vmatprep.subr.bf16.mxu0 0
        %3266 = vmatpush1.bf16.msra.mxu0 %v2956
        %3267 = vmatprep.subr.bf16.mxu0 0
        %3268 = vmatpush1.bf16.msra.mxu0 %v2957
        %3269 = vmatprep.subr.bf16.mxu0 0
        %3270 = vmatpush1.bf16.msra.mxu0 %v2958
        %3271 = vmatprep.subr.bf16.mxu0 0
        %3272 = vmatpush1.bf16.msra.mxu0 %v2959
        %3273 = vmatprep.subr.bf16.mxu0 0
        %3274 = vmatpush1.bf16.msra.mxu0 %v2960
        %3275 = vmatprep.subr.bf16.mxu0 0
        %3276 = vmatpush1.bf16.msra.mxu0 %v2961
        %3277 = vmatprep.subr.bf16.mxu0 0
        %3278 = vmatpush1.bf16.msra.mxu0 %v2962
        %3279 = vmatprep.subr.bf16.mxu0 0
        %3280 = vmatpush1.bf16.msra.mxu0 %v2963
        %3281 = vmatprep.subr.bf16.mxu0 0
        %3282 = vmatpush1.bf16.msra.mxu0 %v2964
        %3283 = vmatprep.subr.bf16.mxu0 0
        %3284 = vmatpush1.bf16.msra.mxu0 %v2965
        %3285 = vmatprep.subr.bf16.mxu0 0
        %3286 = vmatpush1.bf16.msra.mxu0 %v2966
        %3287 = vmatprep.mubr.bf16.mxu0 %v2133
        %3288 = vmatmul.mubr.bf16.gmra.mrb[0].mxu0 %v2132
        %v3289 = vpop.f32.mrb[0].mxu0
        %v3290 = vadd.f32 %v3250, %v3289
        %v3291 = vpop.f32.mrb[0].mxu0
        %v3292 = vpop.f32.mrb[0].mxu0
        %v3293 = vpop.f32.mrb[0].mxu0
        %3294 = vdwg.mxu0
        %3295 = vmatprep.subr.bf16.mxu0 0
        %3296 = vmatpush1.bf16.msra.mxu0 %v2967
        %3297 = vmatprep.subr.bf16.mxu0 0
        %3298 = vmatpush1.bf16.msra.mxu0 %v2968
        %3299 = vmatprep.subr.bf16.mxu0 0
        %3300 = vmatpush1.bf16.msra.mxu0 %v2969
        %3301 = vmatprep.subr.bf16.mxu0 0
        %3302 = vmatpush1.bf16.msra.mxu0 %v2970
        %3303 = vmatprep.subr.bf16.mxu0 0
        %3304 = vmatpush1.bf16.msra.mxu0 %v2971
        %3305 = vmatprep.subr.bf16.mxu0 0
        %3306 = vmatpush1.bf16.msra.mxu0 %v2972
        %3307 = vmatprep.subr.bf16.mxu0 0
        %3308 = vmatpush1.bf16.msra.mxu0 %v2973
        %3309 = vmatprep.subr.bf16.mxu0 0
        %3310 = vmatpush1.bf16.msra.mxu0 %v2974
        %3311 = vmatprep.subr.bf16.mxu0 0
        %3312 = vmatpush1.bf16.msra.mxu0 %v2975
        %3313 = vmatprep.subr.bf16.mxu0 0
        %3314 = vmatpush1.bf16.msra.mxu0 %v2976
        %3315 = vmatprep.subr.bf16.mxu0 0
        %3316 = vmatpush1.bf16.msra.mxu0 %v2977
        %3317 = vmatprep.subr.bf16.mxu0 0
        %3318 = vmatpush1.bf16.msra.mxu0 %v2978
        %3319 = vmatprep.subr.bf16.mxu0 0
        %3320 = vmatpush1.bf16.msra.mxu0 %v2979
        %3321 = vmatprep.subr.bf16.mxu0 0
        %3322 = vmatpush1.bf16.msra.mxu0 %v2980
        %3323 = vmatprep.subr.bf16.mxu0 0
        %3324 = vmatpush1.bf16.msra.mxu0 %v2981
        %3325 = vmatprep.subr.bf16.mxu0 0
        %3326 = vmatpush1.bf16.msra.mxu0 %v2982
        %3327 = vmatprep.mubr.bf16.mxu0 %v2135
        %3328 = vmatmul.mubr.bf16.gmra.mrb[0].mxu0 %v2134
        %v3329 = vpop.f32.mrb[0].mxu0
        %v3330 = vadd.f32 %v3290, %v3329
        %v3331 = vpop.f32.mrb[0].mxu0
        %v3332 = vpop.f32.mrb[0].mxu0
        %v3333 = vpop.f32.mrb[0].mxu0
        %3334 = vdwg.mxu0
        %3335 = vmatprep.subr.bf16.mxu0 0
        %3336 = vmatpush1.bf16.msra.mxu0 %v2983
        %3337 = vmatprep.subr.bf16.mxu0 0
        %3338 = vmatpush1.bf16.msra.mxu0 %v2984
        %3339 = vmatprep.subr.bf16.mxu0 0
        %3340 = vmatpush1.bf16.msra.mxu0 %v2985
        %3341 = vmatprep.subr.bf16.mxu0 0
        %3342 = vmatpush1.bf16.msra.mxu0 %v2986
        %3343 = vmatprep.subr.bf16.mxu0 0
        %3344 = vmatpush1.bf16.msra.mxu0 %v2987
        %3345 = vmatprep.subr.bf16.mxu0 0
        %3346 = vmatpush1.bf16.msra.mxu0 %v2988
        %3347 = vmatprep.subr.bf16.mxu0 0
        %3348 = vmatpush1.bf16.msra.mxu0 %v2989
        %3349 = vmatprep.subr.bf16.mxu0 0
        %3350 = vmatpush1.bf16.msra.mxu0 %v2990
        %3351 = vmatprep.subr.bf16.mxu0 0
        %3352 = vmatpush1.bf16.msra.mxu0 %v2991
        %3353 = vmatprep.subr.bf16.mxu0 0
        %3354 = vmatpush1.bf16.msra.mxu0 %v2992
        %3355 = vmatprep.subr.bf16.mxu0 0
        %3356 = vmatpush1.bf16.msra.mxu0 %v2993
        %3357 = vmatprep.subr.bf16.mxu0 0
        %3358 = vmatpush1.bf16.msra.mxu0 %v2994
        %3359 = vmatprep.subr.bf16.mxu0 0
        %3360 = vmatpush1.bf16.msra.mxu0 %v2995
        %3361 = vmatprep.subr.bf16.mxu0 0
        %3362 = vmatpush1.bf16.msra.mxu0 %v2996
        %3363 = vmatprep.subr.bf16.mxu0 0
        %3364 = vmatpush1.bf16.msra.mxu0 %v2997
        %3365 = vmatprep.subr.bf16.mxu0 0
        %3366 = vmatpush1.bf16.msra.mxu0 %v2998
        %3367 = vmatprep.mubr.bf16.mxu0 %v2137
        %3368 = vmatmul.mubr.bf16.gmra.mrb[0].mxu0 %v2136
        %v3369 = vpop.f32.mrb[0].mxu0
        %v3370 = vadd.f32 %v3330, %v3369
        %v3371 = vpop.f32.mrb[0].mxu0
        %v3372 = vpop.f32.mrb[0].mxu0
        %v3373 = vpop.f32.mrb[0].mxu0
        %3374 = vdwg.mxu0
        %3375 = vmatprep.subr.bf16.mxu0 0
        %3376 = vmatpush1.bf16.msra.mxu0 %v2999
        %3377 = vmatprep.subr.bf16.mxu0 0
        %3378 = vmatpush1.bf16.msra.mxu0 %v3000
        %3379 = vmatprep.subr.bf16.mxu0 0
        %3380 = vmatpush1.bf16.msra.mxu0 %v3001
        %3381 = vmatprep.subr.bf16.mxu0 0
        %3382 = vmatpush1.bf16.msra.mxu0 %v3002
        %3383 = vmatprep.subr.bf16.mxu0 0
        %3384 = vmatpush1.bf16.msra.mxu0 %v3003
        %3385 = vmatprep.subr.bf16.mxu0 0
        %3386 = vmatpush1.bf16.msra.mxu0 %v3004
        %3387 = vmatprep.subr.bf16.mxu0 0
        %3388 = vmatpush1.bf16.msra.mxu0 %v3005
        %3389 = vmatprep.subr.bf16.mxu0 0
        %3390 = vmatpush1.bf16.msra.mxu0 %v3006
        %3391 = vmatprep.subr.bf16.mxu0 0
        %3392 = vmatpush1.bf16.msra.mxu0 %v3007
        %3393 = vmatprep.subr.bf16.mxu0 0
        %3394 = vmatpush1.bf16.msra.mxu0 %v3008
        %3395 = vmatprep.subr.bf16.mxu0 0
        %3396 = vmatpush1.bf16.msra.mxu0 %v3009
        %3397 = vmatprep.subr.bf16.mxu0 0
        %3398 = vmatpush1.bf16.msra.mxu0 %v3010
        %3399 = vmatprep.subr.bf16.mxu0 0
        %3400 = vmatpush1.bf16.msra.mxu0 %v3011
        %3401 = vmatprep.subr.bf16.mxu0 0
        %3402 = vmatpush1.bf16.msra.mxu0 %v3012
        %3403 = vmatprep.subr.bf16.mxu0 0
        %3404 = vmatpush1.bf16.msra.mxu0 %v3013
        %3405 = vmatprep.subr.bf16.mxu0 0
        %3406 = vmatpush1.bf16.msra.mxu0 %v3014
        %3407 = vmatprep.mubr.bf16.mxu0 %v2139
        %3408 = vmatmul.mubr.bf16.gmra.mrb[0].mxu0 %v2138
        %v3409 = vpop.f32.mrb[0].mxu0
        %v3410 = vadd.f32 %v3370, %v3409
        %v3411 = vpop.f32.mrb[0].mxu0
        %v3412 = vpop.f32.mrb[0].mxu0
        %v3413 = vpop.f32.mrb[0].mxu0
        %3414 = vdwg.mxu0
        %3415 = vmatprep.subr.bf16.mxu0 0
        %3416 = vmatpush1.bf16.msra.mxu0 %v3015
        %3417 = vmatprep.subr.bf16.mxu0 0
        %3418 = vmatpush1.bf16.msra.mxu0 %v3016
        %3419 = vmatprep.subr.bf16.mxu0 0
        %3420 = vmatpush1.bf16.msra.mxu0 %v3017
        %3421 = vmatprep.subr.bf16.mxu0 0
        %3422 = vmatpush1.bf16.msra.mxu0 %v3018
        %3423 = vmatprep.subr.bf16.mxu0 0
        %3424 = vmatpush1.bf16.msra.mxu0 %v3019
        %3425 = vmatprep.subr.bf16.mxu0 0
        %3426 = vmatpush1.bf16.msra.mxu0 %v3020
        %3427 = vmatprep.subr.bf16.mxu0 0
        %3428 = vmatpush1.bf16.msra.mxu0 %v3021
        %3429 = vmatprep.subr.bf16.mxu0 0
        %3430 = vmatpush1.bf16.msra.mxu0 %v3022
        %3431 = vmatprep.subr.bf16.mxu0 0
        %3432 = vmatpush1.bf16.msra.mxu0 %v3023
        %3433 = vmatprep.subr.bf16.mxu0 0
        %3434 = vmatpush1.bf16.msra.mxu0 %v3024
        %3435 = vmatprep.subr.bf16.mxu0 0
        %3436 = vmatpush1.bf16.msra.mxu0 %v3025
        %3437 = vmatprep.subr.bf16.mxu0 0
        %3438 = vmatpush1.bf16.msra.mxu0 %v3026
        %3439 = vmatprep.subr.bf16.mxu0 0
        %3440 = vmatpush1.bf16.msra.mxu0 %v3027
        %3441 = vmatprep.subr.bf16.mxu0 0
        %3442 = vmatpush1.bf16.msra.mxu0 %v3028
        %3443 = vmatprep.subr.bf16.mxu0 0
        %3444 = vmatpush1.bf16.msra.mxu0 %v3029
        %3445 = vmatprep.subr.bf16.mxu0 0
        %3446 = vmatpush1.bf16.msra.mxu0 %v3030
        %3447 = vmatprep.mubr.bf16.mxu0 %v2141
        %3448 = vmatmul.mubr.bf16.gmra.mrb[0].mxu0 %v2140
        %v3449 = vpop.f32.mrb[0].mxu0
        %v3450 = vadd.f32 %v3410, %v3449
        %v3451 = vpop.f32.mrb[0].mxu0
        %v3452 = vpop.f32.mrb[0].mxu0
        %v3453 = vpop.f32.mrb[0].mxu0
        %3454 = vdwg.mxu0
        %3455 = vmatprep.subr.bf16.mxu0 0
        %3456 = vmatpush1.bf16.msra.mxu0 %v3031
        %3457 = vmatprep.subr.bf16.mxu0 0
        %3458 = vmatpush1.bf16.msra.mxu0 %v3032
        %3459 = vmatprep.subr.bf16.mxu0 0
        %3460 = vmatpush1.bf16.msra.mxu0 %v3033
        %3461 = vmatprep.subr.bf16.mxu0 0
        %3462 = vmatpush1.bf16.msra.mxu0 %v3034
        %3463 = vmatprep.subr.bf16.mxu0 0
        %3464 = vmatpush1.bf16.msra.mxu0 %v3035
        %3465 = vmatprep.subr.bf16.mxu0 0
        %3466 = vmatpush1.bf16.msra.mxu0 %v3036
        %3467 = vmatprep.subr.bf16.mxu0 0
        %3468 = vmatpush1.bf16.msra.mxu0 %v3037
        %3469 = vmatprep.subr.bf16.mxu0 0
        %3470 = vmatpush1.bf16.msra.mxu0 %v3038
        %3471 = vmatprep.subr.bf16.mxu0 0
        %3472 = vmatpush1.bf16.msra.mxu0 %v3039
        %3473 = vmatprep.subr.bf16.mxu0 0
        %3474 = vmatpush1.bf16.msra.mxu0 %v3040
        %3475 = vmatprep.subr.bf16.mxu0 0
        %3476 = vmatpush1.bf16.msra.mxu0 %v3041
        %3477 = vmatprep.subr.bf16.mxu0 0
        %3478 = vmatpush1.bf16.msra.mxu0 %v3042
        %3479 = vmatprep.subr.bf16.mxu0 0
        %3480 = vmatpush1.bf16.msra.mxu0 %v3043
        %3481 = vmatprep.subr.bf16.mxu0 0
        %3482 = vmatpush1.bf16.msra.mxu0 %v3044
        %3483 = vmatprep.subr.bf16.mxu0 0
        %3484 = vmatpush1.bf16.msra.mxu0 %v3045
        %3485 = vmatprep.subr.bf16.mxu0 0
        %3486 = vmatpush1.bf16.msra.mxu0 %v3046
        %3487 = vmatprep.mubr.bf16.mxu0 %v2143
        %3488 = vmatmul.mubr.bf16.gmra.mrb[0].mxu0 %v2142
        %v3489 = vpop.f32.mrb[0].mxu0
        %v3490 = vadd.f32 %v3450, %v3489
        %v3491 = vpop.f32.mrb[0].mxu0
        %v3492 = vpop.f32.mrb[0].mxu0
        %v3493 = vpop.f32.mrb[0].mxu0
        %3494 = vdwg.mxu0
        %v3495 = vadd.f32 %v1503, %v3490
        %v3496 = vld [vmem:[%s16] sm:$0x1]
        %v3497 = vld [vmem:[%s17] sm:$0x1]
        %v3498 = vsel %vm920, %v3495, 0.0
        %3499 = vadd.xlane.f32.xlu0 %v3498
        %v3500 = vpop.xlane.xlu0 %3499
        %v3501 = vmul.f32 %v3500, %v1479
        %v3502 = vsub.f32 %v3495, %v3501
        %v3503 = vmul.f32 %v3502, %v3502
        %v3504 = vsel %vm920, %v3503, 0.0
        %3505 = vadd.xlane.f32.xlu0 %v3504
        %v3506 = vpop.xlane.xlu0 %3505
        %v3507 = vmul.f32 %v3506, %v1479
        %v3508 = vadd.f32 %v3507, 1e-05
        %v3509 = vrsqrt.pop %v3508
        %v3510 = vmul.f32 %v3502, %v3509
        %v3512 = vlaneseq
        %v3513 = vshrl.u32 %v3512, 7
        %v3514 = vsub.s32 0, %v3513
        %v3515 = vrot.slane %v3496, %v3514
        %v3517 = vmul.f32 %v3510, %v3515
        %v3519 = vlaneseq
        %v3520 = vshrl.u32 %v3519, 7
        %v3521 = vsub.s32 0, %v3520
        %v3522 = vrot.slane %v3497, %v3521
        %v3524 = vadd.f32 %v3517, %v3522
        %v3525 = vpack.c.bf16 %v3524, %v3524
        %v3526 = vld [vmem:[%s18] sm:$0xf]
        %v3527 = vld [vmem:[%s18 + $0x4] sm:$0xf]
        %v3528 = vld [vmem:[%s18 + $0x8] sm:$0xf]
        %v3529 = vld [vmem:[%s18 + $0xc] sm:$0xf]
        %v3530 = vld [vmem:[%s19] sm:$0x1]
        %v3532 = vlaneseq
        %v3533 = vshrl.u32 %v3532, 7
        %v3534 = vsub.s32 0, %v3533
        %v3535 = vrot.slane %v3530, %v3534
        %v3541 = vunpack.c.l.b16 %v3526
        %v3542 = vunpack.c.l.b16 %v3527
        %v3543 = vunpack.c.l.b16 %v3528
        %v3544 = vunpack.c.l.b16 %v3529
        %v3545 = vpack.c.b16 %v3542, %v3541
        %v3546 = vpack.c.b16 %v3544, %v3543
        %v3550 = vsel %vm920, %v3525, 0
        %3552 = vmatprep.subr.bf16.mxu0 0
        %3553 = vmatpush1.bf16.msra.mxu0 %v3545
        %3554 = vmatprep.subr.bf16.mxu0 0
        %3555 = vmatpush1.bf16.msra.mxu0 %v3546
        %3556 = vmatprep.subr.bf16.mxu0 0
        %3557 = vmatpush1.bf16.msra.mxu0 0
        %3558 = vmatprep.subr.bf16.mxu0 0
        %3559 = vmatpush1.bf16.msra.mxu0 0
        %3560 = vmatprep.subr.bf16.mxu0 0
        %3561 = vmatpush1.bf16.msra.mxu0 0
        %3562 = vmatprep.subr.bf16.mxu0 0
        %3563 = vmatpush1.bf16.msra.mxu0 0
        %3564 = vmatprep.subr.bf16.mxu0 0
        %3565 = vmatpush1.bf16.msra.mxu0 0
        %3566 = vmatprep.subr.bf16.mxu0 0
        %3567 = vmatpush1.bf16.msra.mxu0 0
        %3568 = vmatprep.subr.bf16.mxu0 0
        %3569 = vmatpush1.bf16.msra.mxu0 0
        %3570 = vmatprep.subr.bf16.mxu0 0
        %3571 = vmatpush1.bf16.msra.mxu0 0
        %3572 = vmatprep.subr.bf16.mxu0 0
        %3573 = vmatpush1.bf16.msra.mxu0 0
        %3574 = vmatprep.subr.bf16.mxu0 0
        %3575 = vmatpush1.bf16.msra.mxu0 0
        %3576 = vmatprep.subr.bf16.mxu0 0
        %3577 = vmatpush1.bf16.msra.mxu0 0
        %3578 = vmatprep.subr.bf16.mxu0 0
        %3579 = vmatpush1.bf16.msra.mxu0 0
        %3580 = vmatprep.subr.bf16.mxu0 0
        %3581 = vmatpush1.bf16.msra.mxu0 0
        %3582 = vmatprep.subr.bf16.mxu0 0
        %3583 = vmatpush1.bf16.msra.mxu0 0
        %3584 = vmatprep.mubr.bf16.mxu0 0
        %3585 = vmatmul.mubr.bf16.gmra.mrb[0].mxu0 %v3550
        %v3586 = vpop.f32.mrb[0].mxu0
        %v3587 = vadd.f32 %v3535, %v3586
        %v3588 = vpop.f32.mrb[0].mxu0
        %v3589 = vpop.f32.mrb[0].mxu0
        %v3590 = vpop.f32.mrb[0].mxu0
        %3591 = vdwg.mxu0
        %v3592 = vmul.f32 %v3587, 0.5
        %v3593 = vmul.f32 %v3592, 1.442695
        %v3594 = vpow.pop %v3593
        %3596 = vrot.lane.b32.xlu0 %v3594, 112
        %v3597 = vpop.permute.xlu0 %3596
        %v3599 = vmul.f32 %v835, %v3597
        %v3600 = vadd.f32 %v3587, %v3599
        %v3601 = vpack.c.bf16 %v3600, %v3600
        %v3602 = vld [vmem:[%s20] sm:$0xf]
        %v3603 = vld [vmem:[%s20 + $0x4] sm:$0xf]
        %v3604 = vld [vmem:[%s21] sm:$0x1]
        %v3606 = vlaneseq
        %v3607 = vshrl.u32 %v3606, 7
        %v3608 = vsub.s32 0, %v3607
        %v3609 = vrot.slane %v3604, %v3608
        %v3613 = vunpack.c.l.b16 %v3602
        %v3614 = vunpack.c.l.b16 %v3603
        %v3615 = vpack.c.b16 %v3614, %v3613
        %v3618 = vsel %vm852, %v3601, 0
        %3620 = vmatprep.subr.bf16.mxu0 0
        %3621 = vmatpush1.bf16.msra.mxu0 %v3615
        %3622 = vmatprep.subr.bf16.mxu0 0
        %3623 = vmatpush1.bf16.msra.mxu0 0
        %3624 = vmatprep.subr.bf16.mxu0 0
        %3625 = vmatpush1.bf16.msra.mxu0 0
        %3626 = vmatprep.subr.bf16.mxu0 0
        %3627 = vmatpush1.bf16.msra.mxu0 0
        %3628 = vmatprep.subr.bf16.mxu0 0
        %3629 = vmatpush1.bf16.msra.mxu0 0
        %3630 = vmatprep.subr.bf16.mxu0 0
        %3631 = vmatpush1.bf16.msra.mxu0 0
        %3632 = vmatprep.subr.bf16.mxu0 0
        %3633 = vmatpush1.bf16.msra.mxu0 0
        %3634 = vmatprep.subr.bf16.mxu0 0
        %3635 = vmatpush1.bf16.msra.mxu0 0
        %3636 = vmatprep.subr.bf16.mxu0 0
        %3637 = vmatpush1.bf16.msra.mxu0 0
        %3638 = vmatprep.subr.bf16.mxu0 0
        %3639 = vmatpush1.bf16.msra.mxu0 0
        %3640 = vmatprep.subr.bf16.mxu0 0
        %3641 = vmatpush1.bf16.msra.mxu0 0
        %3642 = vmatprep.subr.bf16.mxu0 0
        %3643 = vmatpush1.bf16.msra.mxu0 0
        %3644 = vmatprep.subr.bf16.mxu0 0
        %3645 = vmatpush1.bf16.msra.mxu0 0
        %3646 = vmatprep.subr.bf16.mxu0 0
        %3647 = vmatpush1.bf16.msra.mxu0 0
        %3648 = vmatprep.subr.bf16.mxu0 0
        %3649 = vmatpush1.bf16.msra.mxu0 0
        %3650 = vmatprep.subr.bf16.mxu0 0
        %3651 = vmatpush1.bf16.msra.mxu0 0
        %3652 = vmatprep.mubr.bf16.mxu0 0
        %3653 = vmatmul.mubr.bf16.gmra.mrb[0].mxu0 %v3618
        %v3654 = vpop.f32.mrb[0].mxu0
        %v3655 = vadd.f32 %v3609, %v3654
        %v3656 = vpop.f32.mrb[0].mxu0
        %v3657 = vpop.f32.mrb[0].mxu0
        %v3658 = vpop.f32.mrb[0].mxu0
        %3659 = vdwg.mxu0
        %v3660 = vpack.c.bf16 %v3655, %v3655
        %v3661 = vld [vmem:[%s22] sm:$0xf]
        %v3662 = vld [vmem:[%s22 + $0x4] sm:$0xf]
        %v3663 = vld [vmem:[%s22 + $0x8] sm:$0xf]
        %v3664 = vld [vmem:[%s22 + $0xc] sm:$0xf]
        %v3665 = vpack.c.bf16 %v834, %v834
        %v3666 = vld [vmem:[%s23] sm:$0xf]
        %v3667 = vld [vmem:[%s23 + $0x4] sm:$0xf]
        %v3670 = vunpack.c.l.b16 %v3666
        %v3671 = vunpack.c.l.b16 %v3667
        %v3672 = vpack.c.b16 %v3671, %v3670
        %v3675 = vsel %vm852, %v3665, 0
        %3677 = vmatprep.subr.bf16.mxu0 0
        %3678 = vmatpush1.bf16.msra.mxu0 %v3672
        %3679 = vmatprep.subr.bf16.mxu0 0
        %3680 = vmatpush1.bf16.msra.mxu0 0
        %3681 = vmatprep.subr.bf16.mxu0 0
        %3682 = vmatpush1.bf16.msra.mxu0 0
        %3683 = vmatprep.subr.bf16.mxu0 0
        %3684 = vmatpush1.bf16.msra.mxu0 0
        %3685 = vmatprep.subr.bf16.mxu0 0
        %3686 = vmatpush1.bf16.msra.mxu0 0
        %3687 = vmatprep.subr.bf16.mxu0 0
        %3688 = vmatpush1.bf16.msra.mxu0 0
        %3689 = vmatprep.subr.bf16.mxu0 0
        %3690 = vmatpush1.bf16.msra.mxu0 0
        %3691 = vmatprep.subr.bf16.mxu0 0
        %3692 = vmatpush1.bf16.msra.mxu0 0
        %3693 = vmatprep.subr.bf16.mxu0 0
        %3694 = vmatpush1.bf16.msra.mxu0 0
        %3695 = vmatprep.subr.bf16.mxu0 0
        %3696 = vmatpush1.bf16.msra.mxu0 0
        %3697 = vmatprep.subr.bf16.mxu0 0
        %3698 = vmatpush1.bf16.msra.mxu0 0
        %3699 = vmatprep.subr.bf16.mxu0 0
        %3700 = vmatpush1.bf16.msra.mxu0 0
        %3701 = vmatprep.subr.bf16.mxu0 0
        %3702 = vmatpush1.bf16.msra.mxu0 0
        %3703 = vmatprep.subr.bf16.mxu0 0
        %3704 = vmatpush1.bf16.msra.mxu0 0
        %3705 = vmatprep.subr.bf16.mxu0 0
        %3706 = vmatpush1.bf16.msra.mxu0 0
        %3707 = vmatprep.subr.bf16.mxu0 0
        %3708 = vmatpush1.bf16.msra.mxu0 0
        %3709 = vmatprep.mubr.bf16.mxu0 0
        %3710 = vmatmul.mubr.bf16.gmra.mrb[0].mxu0 %v3675
        %v3711 = vpop.f32.mrb[0].mxu0
        %v3712 = vadd.f32 0.0, %v3711
        %v3713 = vpop.f32.mrb[0].mxu0
        %v3714 = vpop.f32.mrb[0].mxu0
        %v3715 = vpop.f32.mrb[0].mxu0
        %3716 = vdwg.mxu0
        %v3721 = vunpack.c.l.b16 %v3661
        %v3722 = vunpack.c.l.b16 %v3662
        %v3723 = vunpack.c.l.b16 %v3663
        %v3724 = vunpack.c.l.b16 %v3664
        %v3725 = vpack.c.b16 %v3722, %v3721
        %v3726 = vpack.c.b16 %v3724, %v3723
        %v3730 = vsel %vm920, %v3660, 0
        %3732 = vmatprep.subr.bf16.mxu0 0
        %3733 = vmatpush1.bf16.msra.mxu0 %v3725
        %3734 = vmatprep.subr.bf16.mxu0 0
        %3735 = vmatpush1.bf16.msra.mxu0 %v3726
        %3736 = vmatprep.subr.bf16.mxu0 0
        %3737 = vmatpush1.bf16.msra.mxu0 0
        %3738 = vmatprep.subr.bf16.mxu0 0
        %3739 = vmatpush1.bf16.msra.mxu0 0
        %3740 = vmatprep.subr.bf16.mxu0 0
        %3741 = vmatpush1.bf16.msra.mxu0 0
        %3742 = vmatprep.subr.bf16.mxu0 0
        %3743 = vmatpush1.bf16.msra.mxu0 0
        %3744 = vmatprep.subr.bf16.mxu0 0
        %3745 = vmatpush1.bf16.msra.mxu0 0
        %3746 = vmatprep.subr.bf16.mxu0 0
        %3747 = vmatpush1.bf16.msra.mxu0 0
        %3748 = vmatprep.subr.bf16.mxu0 0
        %3749 = vmatpush1.bf16.msra.mxu0 0
        %3750 = vmatprep.subr.bf16.mxu0 0
        %3751 = vmatpush1.bf16.msra.mxu0 0
        %3752 = vmatprep.subr.bf16.mxu0 0
        %3753 = vmatpush1.bf16.msra.mxu0 0
        %3754 = vmatprep.subr.bf16.mxu0 0
        %3755 = vmatpush1.bf16.msra.mxu0 0
        %3756 = vmatprep.subr.bf16.mxu0 0
        %3757 = vmatpush1.bf16.msra.mxu0 0
        %3758 = vmatprep.subr.bf16.mxu0 0
        %3759 = vmatpush1.bf16.msra.mxu0 0
        %3760 = vmatprep.subr.bf16.mxu0 0
        %3761 = vmatpush1.bf16.msra.mxu0 0
        %3762 = vmatprep.subr.bf16.mxu0 0
        %3763 = vmatpush1.bf16.msra.mxu0 0
        %3764 = vmatprep.mubr.bf16.mxu0 0
        %3765 = vmatmul.mubr.bf16.gmra.mrb[0].mxu0 %v3730
        %v3766 = vpop.f32.mrb[0].mxu0
        %v3767 = vadd.f32 %v3712, %v3766
        %v3768 = vpop.f32.mrb[0].mxu0
        %v3769 = vpop.f32.mrb[0].mxu0
        %v3770 = vpop.f32.mrb[0].mxu0
        %3771 = vdwg.mxu0
        %v3772 = vld [vmem:[%s24] sm:$0x1]
        %v3774 = vlaneseq
        %v3775 = vshrl.u32 %v3774, 7
        %v3776 = vsub.s32 0, %v3775
        %v3777 = vrot.slane %v3772, %v3776
        %v3779 = vadd.f32 %v3767, %v3777
        %3780 = vst [vmem:[%s809] sm:$0xff] %v3779
        %3781 = vst.msk [vmem:[%s831] sm:$0xff] %vm920, %v3587
        %s3782 = sand.u32 %s589, 1
        %s3783 = scalar_lea.sflag [#allocation3], %s3782
        %s3784 = sand.u32 %s589, 1
        %s3785 = smul.addr %s3784, 8
        %s3786 = scalar_lea.vmem [#allocation2], %s3785
        %p3787 = scmp.lt.s32.totalorder %s41, 1
        %s3788 = scalar_select %p3787, %s41, 1
        %s3789 = smul.addr %s3788, 8
        %s3790 = scalar_lea.vmem %s26, %s3789
        // Predicated region
        $region121: #{cvae_forward.1} parent=119 // pred_check
          %p3791 = pneg %p599
        $region122: #{cvae_forward.1} parent=119 // pred_check_branch
          %3793 = sbr.rel (%p3791) target = $region124
        $region123: #{cvae_forward.1} parent=119 // pred_region
          %s3795 = ssub.s32 128, 128
          %3796 = vsyncadd %s3783, %s3795
          %s3797 = smul.addr %s41, 128
          %s3798 = scalar_lea.hbm %s25, %s3797
          %s3800 = sshll.u32 %s3786, 4
          %s3801 = int_to_ptr.vmem [resolvable:$true] %s3800
          %3803 = dma.vmem_to_hbm [thread:$0]  %s3801, 128, %s3798, %s3783
        $region124: #{cvae_forward.1} parent=119 // pred_fallthru
          _
        // Predicated region
        $region125: #{cvae_forward.1} parent=119 // pred_check
          %p3804 = pneg %p625
        $region126: #{cvae_forward.1} parent=119 // pred_check_branch
          %3806 = sbr.rel (%p3804) target = $region128
        $region127: #{cvae_forward.1} parent=119 // pred_region
          _
        $region128: #{cvae_forward.1} parent=119 // pred_fallthru
          _
      $region120: #{cvae_forward.1} parent=5 // pred_fallthru
        _
      %p3807 = scmp.le.s32.totalorder 2, %s36
      // Predicated region
      $region129: #{cvae_forward.1} parent=5 // pred_check
        %p3808 = pneg %p3807
      $region130: #{cvae_forward.1} parent=5 // pred_check_branch
        %3810 = sbr.rel (%p3808) target = $region132
      $region131: #{cvae_forward.1} parent=5 // pred_region
        %s3811 = ssub.s32 %s36, 2
        // Predicated region
        $region133: #{cvae_forward.1} parent=131 // pred_check
          %p3812 = pneg %p605
        $region134: #{cvae_forward.1} parent=131 // pred_check_branch
          %3814 = sbr.rel (%p3812) target = $region136
        $region135: #{cvae_forward.1} parent=131 // pred_region
          %s3815 = sand.u32 %s590, 1
          %s3816 = scalar_lea.sflag [#allocation3], %s3815
          %s3817 = sand.u32 %s590, 1
          %s3818 = smul.addr %s3817, 8
          %s3819 = scalar_lea.vmem [#allocation2], %s3818
          %3820 = dma.done %s3816, 128
        $region136: #{cvae_forward.1} parent=131 // pred_fallthru
          _
        // Predicated region
        $region137: #{cvae_forward.1} parent=131 // pred_check
          %p3821 = pneg %p631
        $region138: #{cvae_forward.1} parent=131 // pred_check_branch
          %3823 = sbr.rel (%p3821) target = $region140
        $region139: #{cvae_forward.1} parent=131 // pred_region
          %p3824 = scmp.lt.s32.totalorder %s42, 1
          %s3825 = scalar_select %p3824, %s42, 1
          %s3826 = smul.addr %s3825, 8
          %s3827 = scalar_lea.vmem %s26, %s3826
        $region140: #{cvae_forward.1} parent=131 // pred_fallthru
          _
      $region132: #{cvae_forward.1} parent=5 // pred_fallthru
        _
    $region6: #{cvae_forward.1} parent=1 // loop_footer
      %s40 = sadd.s32 1, %s36
    $region7: #{cvae_forward.1} parent=1 // loop_footer_branch
      %35 = sbr.rel target = $region3
    $region8: #{cvae_forward.1} parent=1 // loop_exit
      _
    %3828 = vsyncpa [#allocation3], 1
    %s3829 = scalar_lea.sflag [#allocation3], 1
    %3830 = vsyncpa %s3829, 1

</llo_original>
